<compile_context>
chip_gen: v7x
topology: tpu7x:2x2x1
jax: 0.10.0
libtpu: 0.0.40
codegen_flags: <defaults>
</compile_context>

<pallas_src>
import functools

import jax
import jax.numpy as jnp
from jax.experimental import pallas as pl
from jax.experimental.pallas import tpu as pltpu


LANE = 128      # TPU lane width; classifier output is padded to this.
SUBLANE = 8     # TPU sublane width; kernel output rows padded to this.


# ------------------------------ fused kernel -------------------------------

def _layernorm(x, g, b, eps):
    mu = jnp.mean(x, axis=-1, keepdims=True)
    xc = x - mu
    var = jnp.mean(xc * xc, axis=-1, keepdims=True)
    return (xc * jax.lax.rsqrt(var + eps)) * g + b


def _fused_forward_kernel(
    emb_ref, mask_ref,
    emb_ln_g_ref, emb_ln_b_ref,
    wqkv_ref, bqkv_ref,
    wo_ref, bo_ref, ln1_g_ref, ln1_b_ref,
    wi_ref, bi_ref, wo2_ref, bo2_ref, ln2_g_ref, ln2_b_ref,
    wp_ref, bp_ref, wc_ref, bc_ref,
    out_ref,
    *, num_layers, batch, seq, heads, head_dim, eps,
):
    H = heads * head_dim
    scale = 1.0 / (head_dim ** 0.5)

    # --- embedding layernorm (embedding dropout = identity at inference) ---
    x = _layernorm(emb_ref[...], emb_ln_g_ref[...], emb_ln_b_ref[...], eps)
    add_mask = mask_ref[...]                     # (B, S) additive mask

    # --- transformer encoder layers (static unrolled loop) ---
    for l in range(num_layers):
        # fused QKV projection: one (M,H) x (H,3H) MXU pass
        qkv = (jnp.dot(x, wqkv_ref[l], preferred_element_type=jnp.float32)
               + bqkv_ref[l])                    # (M, 3H)
        q = qkv[:, 0:H]                          # 128-aligned lane slices
        k = qkv[:, H:2 * H]
        v = qkv[:, 2 * H:3 * H]

        # scaled-dot-product attention, per batch item / head (static loops)
        ctx_rows = []
        for b in range(batch):
            r0 = b * seq
            q_b = q[r0:r0 + seq, :]
            k_b = k[r0:r0 + seq, :]
            v_b = v[r0:r0 + seq, :]
            m_b = add_mask[b:b + 1, :]           # (1, S), broadcast over queries
            head_ctx = []
            for h in range(heads):
                c0 = h * head_dim
                q_h = q_b[:, c0:c0 + head_dim]   # (S, Dh)
                k_h = k_b[:, c0:c0 + head_dim]
                v_h = v_b[:, c0:c0 + head_dim]
                # contract last axes of both operands -> no in-kernel transpose
                s = jax.lax.dot_general(
                    q_h, k_h, (((1,), (1,)), ((), ())),
                    preferred_element_type=jnp.float32) * scale      # (S, S)
                s = s + m_b
                s = s - jnp.max(s, axis=-1, keepdims=True)
                p = jnp.exp(s)
                p = p / jnp.sum(p, axis=-1, keepdims=True)
                head_ctx.append(
                    jnp.dot(p, v_h, preferred_element_type=jnp.float32))
            ctx_rows.append(jnp.concatenate(head_ctx, axis=-1))       # (S, H)
        ctx = jnp.concatenate(ctx_rows, axis=0)                       # (M, H)

        # attention output projection + residual + LN1 (fused)
        attn_out = (jnp.dot(ctx, wo_ref[l], preferred_element_type=jnp.float32)
                    + bo_ref[l])
        x = _layernorm(x + attn_out, ln1_g_ref[l], ln1_b_ref[l], eps)

        # FFN: dense -> GELU -> dense + residual + LN2 (fused)
        inter = (jnp.dot(x, wi_ref[l], preferred_element_type=jnp.float32)
                 + bi_ref[l])
        # TODO(synk): HF BERT uses exact erf-GELU; tanh-approx used here.
        inter = jax.nn.gelu(inter, approximate=True)
        ffn_out = (jnp.dot(inter, wo2_ref[l], preferred_element_type=jnp.float32)
                   + bo2_ref[l])
        x = _layernorm(x + ffn_out, ln2_g_ref[l], ln2_b_ref[l], eps)

    # --- CLS-row extraction + pooler(tanh) + classifier (fused) ---
    # Only the CLS row (token 0) of each sequence matters; pad the row count
    # to the output's sublane-padded height so the store stays dense.
    cls_rows = [x[b * seq:b * seq + 1, :] for b in range(batch)]
    cls = jnp.concatenate(cls_rows, axis=0)                           # (B, H)
    pad_rows = out_ref.shape[0] - batch
    if pad_rows > 0:
        cls = jnp.concatenate(
            [cls, jnp.zeros((pad_rows, H), dtype=cls.dtype)], axis=0)

    pooled = jnp.tanh(
        jnp.dot(cls, wp_ref[...], preferred_element_type=jnp.float32)
        + bp_ref[...])
    # nn.Dropout(0.1) on pooled_output -> identity at inference.
    # TODO(synk): training-mode dropout (mask * 1/0.9 scaling) not implemented.
    logits_pad = (jnp.dot(pooled, wc_ref[...], preferred_element_type=jnp.float32)
                  + bc_ref[...])
    out_ref[...] = logits_pad.astype(out_ref.dtype)


# ----------------------------- model (glue) --------------------------------

CFG = dict(
    vocab=64,
    max_pos=8,
    hidden=128,
    heads=2,
    intermediate=256,
    layers=2,
    num_classes=2,
)


def init_params(key, cfg):
    H, I, L = cfg["hidden"], cfg["intermediate"], cfg["layers"]
    NC = cfg["num_classes"]

    def nrm(k, shape):
        return 0.02 * jax.random.normal(k, shape, dtype=jnp.float32)

    keys = iter(jax.random.split(key, 5 + 6 * L))

    wc = nrm(next(keys), (H, NC))
    wc_pad = jnp.zeros((H, LANE), jnp.float32).at[:, :NC].set(wc)

    p = {
        "word_emb": nrm(next(keys), (cfg["vocab"], H)),
        "pos_emb": nrm(next(keys), (cfg["max_pos"], H)),
        "type_emb": nrm(next(keys), (2, H)),
        "emb_ln_g": jnp.ones((1, H), jnp.float32),
        "emb_ln_b": jnp.zeros((1, H), jnp.float32),
        "wp": nrm(next(keys), (H, H)),                  # BERT pooler
        "bp": jnp.zeros((1, H), jnp.float32),
        "wc_pad": wc_pad,                               # classifier, lane-padded
        "bc_pad": jnp.zeros((1, LANE), jnp.float32),
    }

    wqkv, wo, wi, wo2 = [], [], [], []
    for _ in range(L):
        wq = nrm(next(keys), (H, H))
        wk = nrm(next(keys), (H, H))
        wv = nrm(next(keys), (H, H))
        wqkv.append(jnp.concatenate([wq, wk, wv], axis=1))   # fused QKV weight
        wo.append(nrm(next(keys), (H, H)))
        wi.append(nrm(next(keys), (H, I)))
        wo2.append(nrm(next(keys), (I, H)))

    p.update({
        "wqkv": jnp.stack(wqkv),                     # (L, H, 3H)
        "bqkv": jnp.zeros((L, 1, 3 * H), jnp.float32),
        "wo": jnp.stack(wo),                         # (L, H, H)
        "bo": jnp.zeros((L, 1, H), jnp.float32),
        "ln1_g": jnp.ones((L, 1, H), jnp.float32),
        "ln1_b": jnp.zeros((L, 1, H), jnp.float32),
        "wi": jnp.stack(wi),                         # (L, H, I)
        "bi": jnp.zeros((L, 1, I), jnp.float32),
        "wo2": jnp.stack(wo2),                       # (L, I, H)
        "bo2": jnp.zeros((L, 1, H), jnp.float32),
        "ln2_g": jnp.ones((L, 1, H), jnp.float32),
        "ln2_b": jnp.zeros((L, 1, H), jnp.float32),
    })
    return p


def forward(params, input_ids, attention_mask, cfg):
    B, S = input_ids.shape
    H, Hn, L = cfg["hidden"], cfg["heads"], cfg["layers"]
    Dh = H // Hn
    NC = cfg["num_classes"]
    M = B * S
    out_rows = max(SUBLANE, ((B + SUBLANE - 1) // SUBLANE) * SUBLANE)

    # --- embedding lookup (data-dependent gather) stays in JAX glue ---
    emb = (params["word_emb"][input_ids]
           + params["pos_emb"][jnp.arange(S)][None, :, :]
           + params["type_emb"][0][None, None, :]).reshape(M, H).astype(jnp.float32)

    # additive attention mask, (B, S): 0 for keep, -1e9 for padded keys
    add_mask = (1.0 - attention_mask.astype(jnp.float32)) * -1e9

    kernel = functools.partial(
        _fused_forward_kernel,
        num_layers=L, batch=B, seq=S, heads=Hn, head_dim=Dh, eps=1e-12)

    operands = (
        emb, add_mask,
        params["emb_ln_g"], params["emb_ln_b"],
        params["wqkv"], params["bqkv"],
        params["wo"], params["bo"],
        params["ln1_g"], params["ln1_b"],
        params["wi"], params["bi"],
        params["wo2"], params["bo2"],
        params["ln2_g"], params["ln2_b"],
        params["wp"], params["bp"],
        params["wc_pad"], params["bc_pad"],
    )

    vmem_spec = pl.BlockSpec(memory_space=pltpu.MemorySpace.VMEM)
    out_pad = pl.pallas_call(
        kernel,
        out_shape=jax.ShapeDtypeStruct((out_rows, LANE), jnp.float32),
        in_specs=[vmem_spec] * len(operands),
        out_specs=vmem_spec,
    )(*operands)

    # Row b holds example b's logits; slice the real num_classes out of the
    # sublane/lane-padded output.
    return out_pad[:B, :NC]


# ----------------------------------- main -----------------------------------

if __name__ == "__main__":
    key = jax.random.PRNGKey(0)
    k_param, k_ids = jax.random.split(key)

    B, S = 2, CFG["max_pos"]
    params = init_params(k_param, CFG)

    input_ids = jax.random.randint(k_ids, (B, S), 0, CFG["vocab"], dtype=jnp.int32)
    attention_mask = jnp.ones((B, S), dtype=jnp.int32)
    attention_mask = attention_mask.at[1, 6:].set(0)        # ragged second example

    fwd = jax.jit(lambda p, ids, m: forward(p, ids, m, CFG))
    logits = fwd(params, input_ids, attention_mask)
    logits = jax.block_until_ready(logits)

    assert logits.shape == (B, CFG["num_classes"])
    assert bool(jnp.all(jnp.isfinite(logits)))
    print("KERNEL_OK")
</pallas_src>

<mosaic_0001>
module attributes {stable_mosaic.version = 11 : i64} {
  func.func @_fused_forward_kernel(%arg0: memref<16x128xf32, #tpu.memory_space<vmem>>, %arg1: memref<2x8xf32, #tpu.memory_space<vmem>>, %arg2: memref<1x128xf32, #tpu.memory_space<vmem>>, %arg3: memref<1x128xf32, #tpu.memory_space<vmem>>, %arg4: memref<2x128x384xf32, #tpu.memory_space<vmem>>, %arg5: memref<2x1x384xf32, #tpu.memory_space<vmem>>, %arg6: memref<2x128x128xf32, #tpu.memory_space<vmem>>, %arg7: memref<2x1x128xf32, #tpu.memory_space<vmem>>, %arg8: memref<2x1x128xf32, #tpu.memory_space<vmem>>, %arg9: memref<2x1x128xf32, #tpu.memory_space<vmem>>, %arg10: memref<2x128x256xf32, #tpu.memory_space<vmem>>, %arg11: memref<2x1x256xf32, #tpu.memory_space<vmem>>, %arg12: memref<2x256x128xf32, #tpu.memory_space<vmem>>, %arg13: memref<2x1x128xf32, #tpu.memory_space<vmem>>, %arg14: memref<2x1x128xf32, #tpu.memory_space<vmem>>, %arg15: memref<2x1x128xf32, #tpu.memory_space<vmem>>, %arg16: memref<128x128xf32, #tpu.memory_space<vmem>>, %arg17: memref<1x128xf32, #tpu.memory_space<vmem>>, %arg18: memref<128x128xf32, #tpu.memory_space<vmem>>, %arg19: memref<1x128xf32, #tpu.memory_space<vmem>>, %arg20: memref<8x128xf32, #tpu.memory_space<vmem>>) attributes {dimension_semantics = [], scalar_prefetch = 0 : i64, scratch_operands = 0 : i64, tpu.core_type = #tpu.core_type<tc>} {
    %c0 = arith.constant 0 : index
    %c0_0 = arith.constant 0 : index
    %0 = vector.load %arg0[%c0, %c0_0] : memref<16x128xf32, #tpu.memory_space<vmem>>, vector<16x128xf32>
    %c0_1 = arith.constant 0 : index
    %c0_2 = arith.constant 0 : index
    %1 = vector.load %arg2[%c0_1, %c0_2] : memref<1x128xf32, #tpu.memory_space<vmem>>, vector<1x128xf32>
    %c0_3 = arith.constant 0 : index
    %c0_4 = arith.constant 0 : index
    %2 = vector.load %arg3[%c0_3, %c0_4] : memref<1x128xf32, #tpu.memory_space<vmem>>, vector<1x128xf32>
    %cst = arith.constant dense<0.000000e+00> : vector<16xf32>
    %3 = vector.multi_reduction <add>, %0, %cst [1] : vector<16x128xf32> to vector<16xf32>
    %4 = vector.shape_cast %3 : vector<16xf32> to vector<16x1xf32>
    %cst_5 = arith.constant 1.280000e+02 : f32
    %5 = vector.broadcast %cst_5 : f32 to vector<16x1xf32>
    %6 = arith.divf %4, %5 : vector<16x1xf32>
    %7 = vector.broadcast %6 : vector<16x1xf32> to vector<16x128xf32>
    %8 = arith.subf %0, %7 : vector<16x128xf32>
    %9 = arith.mulf %8, %8 : vector<16x128xf32>
    %cst_6 = arith.constant dense<0.000000e+00> : vector<16xf32>
    %10 = vector.multi_reduction <add>, %9, %cst_6 [1] : vector<16x128xf32> to vector<16xf32>
    %11 = vector.shape_cast %10 : vector<16xf32> to vector<16x1xf32>
    %cst_7 = arith.constant 1.280000e+02 : f32
    %12 = vector.broadcast %cst_7 : f32 to vector<16x1xf32>
    %13 = arith.divf %11, %12 : vector<16x1xf32>
    %cst_8 = arith.constant 9.99999996E-13 : f32
    %14 = vector.broadcast %cst_8 : f32 to vector<16x1xf32>
    %15 = arith.addf %13, %14 : vector<16x1xf32>
    %16 = math.rsqrt %15 : vector<16x1xf32>
    %17 = vector.broadcast %16 : vector<16x1xf32> to vector<16x128xf32>
    %18 = arith.mulf %8, %17 : vector<16x128xf32>
    %19 = vector.broadcast %1 : vector<1x128xf32> to vector<16x128xf32>
    %20 = arith.mulf %18, %19 : vector<16x128xf32>
    %21 = vector.broadcast %2 : vector<1x128xf32> to vector<16x128xf32>
    %22 = arith.addf %20, %21 : vector<16x128xf32>
    %c0_9 = arith.constant 0 : index
    %c0_10 = arith.constant 0 : index
    %23 = vector.load %arg1[%c0_9, %c0_10] : memref<2x8xf32, #tpu.memory_space<vmem>>, vector<2x8xf32>
    %c0_11 = arith.constant 0 : index
    %c0_12 = arith.constant 0 : index
    %c0_13 = arith.constant 0 : index
    %24 = vector.load %arg4[%c0_11, %c0_12, %c0_13] : memref<2x128x384xf32, #tpu.memory_space<vmem>>, vector<1x128x384xf32>
    %25 = vector.shape_cast %24 : vector<1x128x384xf32> to vector<128x384xf32>
    %cst_14 = arith.constant dense<0.000000e+00> : vector<16x384xf32>
    %26 = tpu.matmul %22, %25, %cst_14 {dimension_numbers = #tpu.dot_dimension_numbers<[1], [0], [0], [1], [0, 0, 1, 1], [], []>} : vector<16x128xf32>, vector<128x384xf32>, vector<16x384xf32> -> vector<16x384xf32>
    %c0_15 = arith.constant 0 : index
    %c0_16 = arith.constant 0 : index
    %c0_17 = arith.constant 0 : index
    %27 = vector.load %arg5[%c0_15, %c0_16, %c0_17] : memref<2x1x384xf32, #tpu.memory_space<vmem>>, vector<1x1x384xf32>
    %28 = vector.shape_cast %27 : vector<1x1x384xf32> to vector<1x384xf32>
    %29 = vector.broadcast %28 : vector<1x384xf32> to vector<16x384xf32>
    %30 = arith.addf %26, %29 : vector<16x384xf32>
    %31 = vector.extract_strided_slice %30 {offsets = [0, 0], sizes = [16, 128], strides = [1, 1]} : vector<16x384xf32> to vector<16x128xf32>
    %32 = vector.extract_strided_slice %30 {offsets = [0, 128], sizes = [16, 128], strides = [1, 1]} : vector<16x384xf32> to vector<16x128xf32>
    %33 = vector.extract_strided_slice %30 {offsets = [0, 256], sizes = [16, 128], strides = [1, 1]} : vector<16x384xf32> to vector<16x128xf32>
    %34 = vector.extract_strided_slice %31 {offsets = [0, 0], sizes = [8, 128], strides = [1, 1]} : vector<16x128xf32> to vector<8x128xf32>
    %35 = vector.extract_strided_slice %32 {offsets = [0, 0], sizes = [8, 128], strides = [1, 1]} : vector<16x128xf32> to vector<8x128xf32>
    %36 = vector.extract_strided_slice %33 {offsets = [0, 0], sizes = [8, 128], strides = [1, 1]} : vector<16x128xf32> to vector<8x128xf32>
    %37 = vector.extract_strided_slice %23 {offsets = [0, 0], sizes = [1, 8], strides = [1, 1]} : vector<2x8xf32> to vector<1x8xf32>
    %38 = vector.extract_strided_slice %34 {offsets = [0, 0], sizes = [8, 64], strides = [1, 1]} : vector<8x128xf32> to vector<8x64xf32>
    %39 = vector.extract_strided_slice %35 {offsets = [0, 0], sizes = [8, 64], strides = [1, 1]} : vector<8x128xf32> to vector<8x64xf32>
    %40 = vector.extract_strided_slice %36 {offsets = [0, 0], sizes = [8, 64], strides = [1, 1]} : vector<8x128xf32> to vector<8x64xf32>
    %cst_18 = arith.constant dense<0.000000e+00> : vector<8x8xf32>
    %41 = tpu.matmul %38, %39, %cst_18 {dimension_numbers = #tpu.dot_dimension_numbers<[1], [1], [0], [0], [0, 0, 1, 0], [], []>} : vector<8x64xf32>, vector<8x64xf32>, vector<8x8xf32> -> vector<8x8xf32>
    %cst_19 = arith.constant 1.250000e-01 : f32
    %42 = vector.broadcast %cst_19 : f32 to vector<8x8xf32>
    %43 = arith.mulf %41, %42 : vector<8x8xf32>
    %44 = vector.broadcast %37 : vector<1x8xf32> to vector<8x8xf32>
    %45 = arith.addf %43, %44 : vector<8x8xf32>
    %cst_20 = arith.constant dense<0xFF800000> : vector<8xf32>
    %46 = vector.multi_reduction <maximumf>, %45, %cst_20 [1] : vector<8x8xf32> to vector<8xf32>
    %47 = vector.shape_cast %46 : vector<8xf32> to vector<8x1xf32>
    %48 = vector.broadcast %47 : vector<8x1xf32> to vector<8x8xf32>
    %49 = arith.subf %45, %48 : vector<8x8xf32>
    %50 = math.exp %49 : vector<8x8xf32>
    %cst_21 = arith.constant dense<0.000000e+00> : vector<8xf32>
    %51 = vector.multi_reduction <add>, %50, %cst_21 [1] : vector<8x8xf32> to vector<8xf32>
    %52 = vector.shape_cast %51 : vector<8xf32> to vector<8x1xf32>
    %53 = vector.broadcast %52 : vector<8x1xf32> to vector<8x8xf32>
    %54 = arith.divf %50, %53 : vector<8x8xf32>
    %cst_22 = arith.constant dense<0.000000e+00> : vector<8x64xf32>
    %55 = tpu.matmul %54, %40, %cst_22 {dimension_numbers = #tpu.dot_dimension_numbers<[1], [0], [0], [1], [0, 0, 1, 1], [], []>} : vector<8x8xf32>, vector<8x64xf32>, vector<8x64xf32> -> vector<8x64xf32>
    %56 = vector.extract_strided_slice %34 {offsets = [0, 64], sizes = [8, 64], strides = [1, 1]} : vector<8x128xf32> to vector<8x64xf32>
    %57 = vector.extract_strided_slice %35 {offsets = [0, 64], sizes = [8, 64], strides = [1, 1]} : vector<8x128xf32> to vector<8x64xf32>
    %58 = vector.extract_strided_slice %36 {offsets = [0, 64], sizes = [8, 64], strides = [1, 1]} : vector<8x128xf32> to vector<8x64xf32>
    %cst_23 = arith.constant dense<0.000000e+00> : vector<8x8xf32>
    %59 = tpu.matmul %56, %57, %cst_23 {dimension_numbers = #tpu.dot_dimension_numbers<[1], [1], [0], [0], [0, 0, 1, 0], [], []>} : vector<8x64xf32>, vector<8x64xf32>, vector<8x8xf32> -> vector<8x8xf32>
    %cst_24 = arith.constant 1.250000e-01 : f32
    %60 = vector.broadcast %cst_24 : f32 to vector<8x8xf32>
    %61 = arith.mulf %59, %60 : vector<8x8xf32>
    %62 = vector.broadcast %37 : vector<1x8xf32> to vector<8x8xf32>
    %63 = arith.addf %61, %62 : vector<8x8xf32>
    %cst_25 = arith.constant dense<0xFF800000> : vector<8xf32>
    %64 = vector.multi_reduction <maximumf>, %63, %cst_25 [1] : vector<8x8xf32> to vector<8xf32>
    %65 = vector.shape_cast %64 : vector<8xf32> to vector<8x1xf32>
    %66 = vector.broadcast %65 : vector<8x1xf32> to vector<8x8xf32>
    %67 = arith.subf %63, %66 : vector<8x8xf32>
    %68 = math.exp %67 : vector<8x8xf32>
    %cst_26 = arith.constant dense<0.000000e+00> : vector<8xf32>
    %69 = vector.multi_reduction <add>, %68, %cst_26 [1] : vector<8x8xf32> to vector<8xf32>
    %70 = vector.shape_cast %69 : vector<8xf32> to vector<8x1xf32>
    %71 = vector.broadcast %70 : vector<8x1xf32> to vector<8x8xf32>
    %72 = arith.divf %68, %71 : vector<8x8xf32>
    %cst_27 = arith.constant dense<0.000000e+00> : vector<8x64xf32>
    %73 = tpu.matmul %72, %58, %cst_27 {dimension_numbers = #tpu.dot_dimension_numbers<[1], [0], [0], [1], [0, 0, 1, 1], [], []>} : vector<8x8xf32>, vector<8x64xf32>, vector<8x64xf32> -> vector<8x64xf32>
    %74 = tpu.concatenate %55, %73 in 1 : vector<8x64xf32>, vector<8x64xf32> -> vector<8x128xf32>
    %75 = vector.extract_strided_slice %31 {offsets = [8, 0], sizes = [8, 128], strides = [1, 1]} : vector<16x128xf32> to vector<8x128xf32>
    %76 = vector.extract_strided_slice %32 {offsets = [8, 0], sizes = [8, 128], strides = [1, 1]} : vector<16x128xf32> to vector<8x128xf32>
    %77 = vector.extract_strided_slice %33 {offsets = [8, 0], sizes = [8, 128], strides = [1, 1]} : vector<16x128xf32> to vector<8x128xf32>
    %78 = vector.extract_strided_slice %23 {offsets = [1, 0], sizes = [1, 8], strides = [1, 1]} : vector<2x8xf32> to vector<1x8xf32>
    %79 = vector.extract_strided_slice %75 {offsets = [0, 0], sizes = [8, 64], strides = [1, 1]} : vector<8x128xf32> to vector<8x64xf32>
    %80 = vector.extract_strided_slice %76 {offsets = [0, 0], sizes = [8, 64], strides = [1, 1]} : vector<8x128xf32> to vector<8x64xf32>
    %81 = vector.extract_strided_slice %77 {offsets = [0, 0], sizes = [8, 64], strides = [1, 1]} : vector<8x128xf32> to vector<8x64xf32>
    %cst_28 = arith.constant dense<0.000000e+00> : vector<8x8xf32>
    %82 = tpu.matmul %79, %80, %cst_28 {dimension_numbers = #tpu.dot_dimension_numbers<[1], [1], [0], [0], [0, 0, 1, 0], [], []>} : vector<8x64xf32>, vector<8x64xf32>, vector<8x8xf32> -> vector<8x8xf32>
    %cst_29 = arith.constant 1.250000e-01 : f32
    %83 = vector.broadcast %cst_29 : f32 to vector<8x8xf32>
    %84 = arith.mulf %82, %83 : vector<8x8xf32>
    %85 = vector.broadcast %78 : vector<1x8xf32> to vector<8x8xf32>
    %86 = arith.addf %84, %85 : vector<8x8xf32>
    %cst_30 = arith.constant dense<0xFF800000> : vector<8xf32>
    %87 = vector.multi_reduction <maximumf>, %86, %cst_30 [1] : vector<8x8xf32> to vector<8xf32>
    %88 = vector.shape_cast %87 : vector<8xf32> to vector<8x1xf32>
    %89 = vector.broadcast %88 : vector<8x1xf32> to vector<8x8xf32>
    %90 = arith.subf %86, %89 : vector<8x8xf32>
    %91 = math.exp %90 : vector<8x8xf32>
    %cst_31 = arith.constant dense<0.000000e+00> : vector<8xf32>
    %92 = vector.multi_reduction <add>, %91, %cst_31 [1] : vector<8x8xf32> to vector<8xf32>
    %93 = vector.shape_cast %92 : vector<8xf32> to vector<8x1xf32>
    %94 = vector.broadcast %93 : vector<8x1xf32> to vector<8x8xf32>
    %95 = arith.divf %91, %94 : vector<8x8xf32>
    %cst_32 = arith.constant dense<0.000000e+00> : vector<8x64xf32>
    %96 = tpu.matmul %95, %81, %cst_32 {dimension_numbers = #tpu.dot_dimension_numbers<[1], [0], [0], [1], [0, 0, 1, 1], [], []>} : vector<8x8xf32>, vector<8x64xf32>, vector<8x64xf32> -> vector<8x64xf32>
    %97 = vector.extract_strided_slice %75 {offsets = [0, 64], sizes = [8, 64], strides = [1, 1]} : vector<8x128xf32> to vector<8x64xf32>
    %98 = vector.extract_strided_slice %76 {offsets = [0, 64], sizes = [8, 64], strides = [1, 1]} : vector<8x128xf32> to vector<8x64xf32>
    %99 = vector.extract_strided_slice %77 {offsets = [0, 64], sizes = [8, 64], strides = [1, 1]} : vector<8x128xf32> to vector<8x64xf32>
    %cst_33 = arith.constant dense<0.000000e+00> : vector<8x8xf32>
    %100 = tpu.matmul %97, %98, %cst_33 {dimension_numbers = #tpu.dot_dimension_numbers<[1], [1], [0], [0], [0, 0, 1, 0], [], []>} : vector<8x64xf32>, vector<8x64xf32>, vector<8x8xf32> -> vector<8x8xf32>
    %cst_34 = arith.constant 1.250000e-01 : f32
    %101 = vector.broadcast %cst_34 : f32 to vector<8x8xf32>
    %102 = arith.mulf %100, %101 : vector<8x8xf32>
    %103 = vector.broadcast %78 : vector<1x8xf32> to vector<8x8xf32>
    %104 = arith.addf %102, %103 : vector<8x8xf32>
    %cst_35 = arith.constant dense<0xFF800000> : vector<8xf32>
    %105 = vector.multi_reduction <maximumf>, %104, %cst_35 [1] : vector<8x8xf32> to vector<8xf32>
    %106 = vector.shape_cast %105 : vector<8xf32> to vector<8x1xf32>
    %107 = vector.broadcast %106 : vector<8x1xf32> to vector<8x8xf32>
    %108 = arith.subf %104, %107 : vector<8x8xf32>
    %109 = math.exp %108 : vector<8x8xf32>
    %cst_36 = arith.constant dense<0.000000e+00> : vector<8xf32>
    %110 = vector.multi_reduction <add>, %109, %cst_36 [1] : vector<8x8xf32> to vector<8xf32>
    %111 = vector.shape_cast %110 : vector<8xf32> to vector<8x1xf32>
    %112 = vector.broadcast %111 : vector<8x1xf32> to vector<8x8xf32>
    %113 = arith.divf %109, %112 : vector<8x8xf32>
    %cst_37 = arith.constant dense<0.000000e+00> : vector<8x64xf32>
    %114 = tpu.matmul %113, %99, %cst_37 {dimension_numbers = #tpu.dot_dimension_numbers<[1], [0], [0], [1], [0, 0, 1, 1], [], []>} : vector<8x8xf32>, vector<8x64xf32>, vector<8x64xf32> -> vector<8x64xf32>
    %115 = tpu.concatenate %96, %114 in 1 : vector<8x64xf32>, vector<8x64xf32> -> vector<8x128xf32>
    %116 = tpu.concatenate %74, %115 in 0 : vector<8x128xf32>, vector<8x128xf32> -> vector<16x128xf32>
    %c0_38 = arith.constant 0 : index
    %c0_39 = arith.constant 0 : index
    %c0_40 = arith.constant 0 : index
    %117 = vector.load %arg6[%c0_38, %c0_39, %c0_40] : memref<2x128x128xf32, #tpu.memory_space<vmem>>, vector<1x128x128xf32>
    %118 = vector.shape_cast %117 : vector<1x128x128xf32> to vector<128x128xf32>
    %cst_41 = arith.constant dense<0.000000e+00> : vector<16x128xf32>
    %119 = tpu.matmul %116, %118, %cst_41 {dimension_numbers = #tpu.dot_dimension_numbers<[1], [0], [0], [1], [0, 0, 1, 1], [], []>} : vector<16x128xf32>, vector<128x128xf32>, vector<16x128xf32> -> vector<16x128xf32>
    %c0_42 = arith.constant 0 : index
    %c0_43 = arith.constant 0 : index
    %c0_44 = arith.constant 0 : index
    %120 = vector.load %arg7[%c0_42, %c0_43, %c0_44] : memref<2x1x128xf32, #tpu.memory_space<vmem>>, vector<1x1x128xf32>
    %121 = vector.shape_cast %120 : vector<1x1x128xf32> to vector<1x128xf32>
    %122 = vector.broadcast %121 : vector<1x128xf32> to vector<16x128xf32>
    %123 = arith.addf %119, %122 : vector<16x128xf32>
    %124 = arith.addf %22, %123 : vector<16x128xf32>
    %c0_45 = arith.constant 0 : index
    %c0_46 = arith.constant 0 : index
    %c0_47 = arith.constant 0 : index
    %125 = vector.load %arg8[%c0_45, %c0_46, %c0_47] : memref<2x1x128xf32, #tpu.memory_space<vmem>>, vector<1x1x128xf32>
    %126 = vector.shape_cast %125 : vector<1x1x128xf32> to vector<1x128xf32>
    %c0_48 = arith.constant 0 : index
    %c0_49 = arith.constant 0 : index
    %c0_50 = arith.constant 0 : index
    %127 = vector.load %arg9[%c0_48, %c0_49, %c0_50] : memref<2x1x128xf32, #tpu.memory_space<vmem>>, vector<1x1x128xf32>
    %128 = vector.shape_cast %127 : vector<1x1x128xf32> to vector<1x128xf32>
    %cst_51 = arith.constant dense<0.000000e+00> : vector<16xf32>
    %129 = vector.multi_reduction <add>, %124, %cst_51 [1] : vector<16x128xf32> to vector<16xf32>
    %130 = vector.shape_cast %129 : vector<16xf32> to vector<16x1xf32>
    %cst_52 = arith.constant 1.280000e+02 : f32
    %131 = vector.broadcast %cst_52 : f32 to vector<16x1xf32>
    %132 = arith.divf %130, %131 : vector<16x1xf32>
    %133 = vector.broadcast %132 : vector<16x1xf32> to vector<16x128xf32>
    %134 = arith.subf %124, %133 : vector<16x128xf32>
    %135 = arith.mulf %134, %134 : vector<16x128xf32>
    %cst_53 = arith.constant dense<0.000000e+00> : vector<16xf32>
    %136 = vector.multi_reduction <add>, %135, %cst_53 [1] : vector<16x128xf32> to vector<16xf32>
    %137 = vector.shape_cast %136 : vector<16xf32> to vector<16x1xf32>
    %cst_54 = arith.constant 1.280000e+02 : f32
    %138 = vector.broadcast %cst_54 : f32 to vector<16x1xf32>
    %139 = arith.divf %137, %138 : vector<16x1xf32>
    %cst_55 = arith.constant 9.99999996E-13 : f32
    %140 = vector.broadcast %cst_55 : f32 to vector<16x1xf32>
    %141 = arith.addf %139, %140 : vector<16x1xf32>
    %142 = math.rsqrt %141 : vector<16x1xf32>
    %143 = vector.broadcast %142 : vector<16x1xf32> to vector<16x128xf32>
    %144 = arith.mulf %134, %143 : vector<16x128xf32>
    %145 = vector.broadcast %126 : vector<1x128xf32> to vector<16x128xf32>
    %146 = arith.mulf %144, %145 : vector<16x128xf32>
    %147 = vector.broadcast %128 : vector<1x128xf32> to vector<16x128xf32>
    %148 = arith.addf %146, %147 : vector<16x128xf32>
    %c0_56 = arith.constant 0 : index
    %c0_57 = arith.constant 0 : index
    %c0_58 = arith.constant 0 : index
    %149 = vector.load %arg10[%c0_56, %c0_57, %c0_58] : memref<2x128x256xf32, #tpu.memory_space<vmem>>, vector<1x128x256xf32>
    %150 = vector.shape_cast %149 : vector<1x128x256xf32> to vector<128x256xf32>
    %cst_59 = arith.constant dense<0.000000e+00> : vector<16x256xf32>
    %151 = tpu.matmul %148, %150, %cst_59 {dimension_numbers = #tpu.dot_dimension_numbers<[1], [0], [0], [1], [0, 0, 1, 1], [], []>} : vector<16x128xf32>, vector<128x256xf32>, vector<16x256xf32> -> vector<16x256xf32>
    %c0_60 = arith.constant 0 : index
    %c0_61 = arith.constant 0 : index
    %c0_62 = arith.constant 0 : index
    %152 = vector.load %arg11[%c0_60, %c0_61, %c0_62] : memref<2x1x256xf32, #tpu.memory_space<vmem>>, vector<1x1x256xf32>
    %153 = vector.shape_cast %152 : vector<1x1x256xf32> to vector<1x256xf32>
    %154 = vector.broadcast %153 : vector<1x256xf32> to vector<16x256xf32>
    %155 = arith.addf %151, %154 : vector<16x256xf32>
    %156 = arith.mulf %155, %155 : vector<16x256xf32>
    %157 = arith.mulf %155, %156 : vector<16x256xf32>
    %cst_63 = arith.constant 4.471500e-02 : f32
    %158 = vector.broadcast %cst_63 : f32 to vector<16x256xf32>
    %159 = arith.mulf %158, %157 : vector<16x256xf32>
    %160 = arith.addf %155, %159 : vector<16x256xf32>
    %cst_64 = arith.constant 0.797884583 : f32
    %161 = vector.broadcast %cst_64 : f32 to vector<16x256xf32>
    %162 = arith.mulf %161, %160 : vector<16x256xf32>
    %163 = math.tanh %162 : vector<16x256xf32>
    %cst_65 = arith.constant 1.000000e+00 : f32
    %164 = vector.broadcast %cst_65 : f32 to vector<16x256xf32>
    %165 = arith.addf %164, %163 : vector<16x256xf32>
    %cst_66 = arith.constant 5.000000e-01 : f32
    %166 = vector.broadcast %cst_66 : f32 to vector<16x256xf32>
    %167 = arith.mulf %166, %165 : vector<16x256xf32>
    %168 = arith.mulf %155, %167 : vector<16x256xf32>
    %c0_67 = arith.constant 0 : index
    %c0_68 = arith.constant 0 : index
    %c0_69 = arith.constant 0 : index
    %169 = vector.load %arg12[%c0_67, %c0_68, %c0_69] : memref<2x256x128xf32, #tpu.memory_space<vmem>>, vector<1x256x128xf32>
    %170 = vector.shape_cast %169 : vector<1x256x128xf32> to vector<256x128xf32>
    %cst_70 = arith.constant dense<0.000000e+00> : vector<16x128xf32>
    %171 = tpu.matmul %168, %170, %cst_70 {dimension_numbers = #tpu.dot_dimension_numbers<[1], [0], [0], [1], [0, 0, 1, 1], [], []>} : vector<16x256xf32>, vector<256x128xf32>, vector<16x128xf32> -> vector<16x128xf32>
    %c0_71 = arith.constant 0 : index
    %c0_72 = arith.constant 0 : index
    %c0_73 = arith.constant 0 : index
    %172 = vector.load %arg13[%c0_71, %c0_72, %c0_73] : memref<2x1x128xf32, #tpu.memory_space<vmem>>, vector<1x1x128xf32>
    %173 = vector.shape_cast %172 : vector<1x1x128xf32> to vector<1x128xf32>
    %174 = vector.broadcast %173 : vector<1x128xf32> to vector<16x128xf32>
    %175 = arith.addf %171, %174 : vector<16x128xf32>
    %176 = arith.addf %148, %175 : vector<16x128xf32>
    %c0_74 = arith.constant 0 : index
    %c0_75 = arith.constant 0 : index
    %c0_76 = arith.constant 0 : index
    %177 = vector.load %arg14[%c0_74, %c0_75, %c0_76] : memref<2x1x128xf32, #tpu.memory_space<vmem>>, vector<1x1x128xf32>
    %178 = vector.shape_cast %177 : vector<1x1x128xf32> to vector<1x128xf32>
    %c0_77 = arith.constant 0 : index
    %c0_78 = arith.constant 0 : index
    %c0_79 = arith.constant 0 : index
    %179 = vector.load %arg15[%c0_77, %c0_78, %c0_79] : memref<2x1x128xf32, #tpu.memory_space<vmem>>, vector<1x1x128xf32>
    %180 = vector.shape_cast %179 : vector<1x1x128xf32> to vector<1x128xf32>
    %cst_80 = arith.constant dense<0.000000e+00> : vector<16xf32>
    %181 = vector.multi_reduction <add>, %176, %cst_80 [1] : vector<16x128xf32> to vector<16xf32>
    %182 = vector.shape_cast %181 : vector<16xf32> to vector<16x1xf32>
    %cst_81 = arith.constant 1.280000e+02 : f32
    %183 = vector.broadcast %cst_81 : f32 to vector<16x1xf32>
    %184 = arith.divf %182, %183 : vector<16x1xf32>
    %185 = vector.broadcast %184 : vector<16x1xf32> to vector<16x128xf32>
    %186 = arith.subf %176, %185 : vector<16x128xf32>
    %187 = arith.mulf %186, %186 : vector<16x128xf32>
    %cst_82 = arith.constant dense<0.000000e+00> : vector<16xf32>
    %188 = vector.multi_reduction <add>, %187, %cst_82 [1] : vector<16x128xf32> to vector<16xf32>
    %189 = vector.shape_cast %188 : vector<16xf32> to vector<16x1xf32>
    %cst_83 = arith.constant 1.280000e+02 : f32
    %190 = vector.broadcast %cst_83 : f32 to vector<16x1xf32>
    %191 = arith.divf %189, %190 : vector<16x1xf32>
    %cst_84 = arith.constant 9.99999996E-13 : f32
    %192 = vector.broadcast %cst_84 : f32 to vector<16x1xf32>
    %193 = arith.addf %191, %192 : vector<16x1xf32>
    %194 = math.rsqrt %193 : vector<16x1xf32>
    %195 = vector.broadcast %194 : vector<16x1xf32> to vector<16x128xf32>
    %196 = arith.mulf %186, %195 : vector<16x128xf32>
    %197 = vector.broadcast %178 : vector<1x128xf32> to vector<16x128xf32>
    %198 = arith.mulf %196, %197 : vector<16x128xf32>
    %199 = vector.broadcast %180 : vector<1x128xf32> to vector<16x128xf32>
    %200 = arith.addf %198, %199 : vector<16x128xf32>
    %c1 = arith.constant 1 : index
    %c0_85 = arith.constant 0 : index
    %c0_86 = arith.constant 0 : index
    %201 = vector.load %arg4[%c1, %c0_85, %c0_86] : memref<2x128x384xf32, #tpu.memory_space<vmem>>, vector<1x128x384xf32>
    %202 = vector.shape_cast %201 : vector<1x128x384xf32> to vector<128x384xf32>
    %cst_87 = arith.constant dense<0.000000e+00> : vector<16x384xf32>
    %203 = tpu.matmul %200, %202, %cst_87 {dimension_numbers = #tpu.dot_dimension_numbers<[1], [0], [0], [1], [0, 0, 1, 1], [], []>} : vector<16x128xf32>, vector<128x384xf32>, vector<16x384xf32> -> vector<16x384xf32>
    %c1_88 = arith.constant 1 : index
    %c0_89 = arith.constant 0 : index
    %c0_90 = arith.constant 0 : index
    %204 = vector.load %arg5[%c1_88, %c0_89, %c0_90] : memref<2x1x384xf32, #tpu.memory_space<vmem>>, vector<1x1x384xf32>
    %205 = vector.shape_cast %204 : vector<1x1x384xf32> to vector<1x384xf32>
    %206 = vector.broadcast %205 : vector<1x384xf32> to vector<16x384xf32>
    %207 = arith.addf %203, %206 : vector<16x384xf32>
    %208 = vector.extract_strided_slice %207 {offsets = [0, 0], sizes = [16, 128], strides = [1, 1]} : vector<16x384xf32> to vector<16x128xf32>
    %209 = vector.extract_strided_slice %207 {offsets = [0, 128], sizes = [16, 128], strides = [1, 1]} : vector<16x384xf32> to vector<16x128xf32>
    %210 = vector.extract_strided_slice %207 {offsets = [0, 256], sizes = [16, 128], strides = [1, 1]} : vector<16x384xf32> to vector<16x128xf32>
    %211 = vector.extract_strided_slice %208 {offsets = [0, 0], sizes = [8, 128], strides = [1, 1]} : vector<16x128xf32> to vector<8x128xf32>
    %212 = vector.extract_strided_slice %209 {offsets = [0, 0], sizes = [8, 128], strides = [1, 1]} : vector<16x128xf32> to vector<8x128xf32>
    %213 = vector.extract_strided_slice %210 {offsets = [0, 0], sizes = [8, 128], strides = [1, 1]} : vector<16x128xf32> to vector<8x128xf32>
    %214 = vector.extract_strided_slice %23 {offsets = [0, 0], sizes = [1, 8], strides = [1, 1]} : vector<2x8xf32> to vector<1x8xf32>
    %215 = vector.extract_strided_slice %211 {offsets = [0, 0], sizes = [8, 64], strides = [1, 1]} : vector<8x128xf32> to vector<8x64xf32>
    %216 = vector.extract_strided_slice %212 {offsets = [0, 0], sizes = [8, 64], strides = [1, 1]} : vector<8x128xf32> to vector<8x64xf32>
    %217 = vector.extract_strided_slice %213 {offsets = [0, 0], sizes = [8, 64], strides = [1, 1]} : vector<8x128xf32> to vector<8x64xf32>
    %cst_91 = arith.constant dense<0.000000e+00> : vector<8x8xf32>
    %218 = tpu.matmul %215, %216, %cst_91 {dimension_numbers = #tpu.dot_dimension_numbers<[1], [1], [0], [0], [0, 0, 1, 0], [], []>} : vector<8x64xf32>, vector<8x64xf32>, vector<8x8xf32> -> vector<8x8xf32>
    %cst_92 = arith.constant 1.250000e-01 : f32
    %219 = vector.broadcast %cst_92 : f32 to vector<8x8xf32>
    %220 = arith.mulf %218, %219 : vector<8x8xf32>
    %221 = vector.broadcast %214 : vector<1x8xf32> to vector<8x8xf32>
    %222 = arith.addf %220, %221 : vector<8x8xf32>
    %cst_93 = arith.constant dense<0xFF800000> : vector<8xf32>
    %223 = vector.multi_reduction <maximumf>, %222, %cst_93 [1] : vector<8x8xf32> to vector<8xf32>
    %224 = vector.shape_cast %223 : vector<8xf32> to vector<8x1xf32>
    %225 = vector.broadcast %224 : vector<8x1xf32> to vector<8x8xf32>
    %226 = arith.subf %222, %225 : vector<8x8xf32>
    %227 = math.exp %226 : vector<8x8xf32>
    %cst_94 = arith.constant dense<0.000000e+00> : vector<8xf32>
    %228 = vector.multi_reduction <add>, %227, %cst_94 [1] : vector<8x8xf32> to vector<8xf32>
    %229 = vector.shape_cast %228 : vector<8xf32> to vector<8x1xf32>
    %230 = vector.broadcast %229 : vector<8x1xf32> to vector<8x8xf32>
    %231 = arith.divf %227, %230 : vector<8x8xf32>
    %cst_95 = arith.constant dense<0.000000e+00> : vector<8x64xf32>
    %232 = tpu.matmul %231, %217, %cst_95 {dimension_numbers = #tpu.dot_dimension_numbers<[1], [0], [0], [1], [0, 0, 1, 1], [], []>} : vector<8x8xf32>, vector<8x64xf32>, vector<8x64xf32> -> vector<8x64xf32>
    %233 = vector.extract_strided_slice %211 {offsets = [0, 64], sizes = [8, 64], strides = [1, 1]} : vector<8x128xf32> to vector<8x64xf32>
    %234 = vector.extract_strided_slice %212 {offsets = [0, 64], sizes = [8, 64], strides = [1, 1]} : vector<8x128xf32> to vector<8x64xf32>
    %235 = vector.extract_strided_slice %213 {offsets = [0, 64], sizes = [8, 64], strides = [1, 1]} : vector<8x128xf32> to vector<8x64xf32>
    %cst_96 = arith.constant dense<0.000000e+00> : vector<8x8xf32>
    %236 = tpu.matmul %233, %234, %cst_96 {dimension_numbers = #tpu.dot_dimension_numbers<[1], [1], [0], [0], [0, 0, 1, 0], [], []>} : vector<8x64xf32>, vector<8x64xf32>, vector<8x8xf32> -> vector<8x8xf32>
    %cst_97 = arith.constant 1.250000e-01 : f32
    %237 = vector.broadcast %cst_97 : f32 to vector<8x8xf32>
    %238 = arith.mulf %236, %237 : vector<8x8xf32>
    %239 = vector.broadcast %214 : vector<1x8xf32> to vector<8x8xf32>
    %240 = arith.addf %238, %239 : vector<8x8xf32>
    %cst_98 = arith.constant dense<0xFF800000> : vector<8xf32>
    %241 = vector.multi_reduction <maximumf>, %240, %cst_98 [1] : vector<8x8xf32> to vector<8xf32>
    %242 = vector.shape_cast %241 : vector<8xf32> to vector<8x1xf32>
    %243 = vector.broadcast %242 : vector<8x1xf32> to vector<8x8xf32>
    %244 = arith.subf %240, %243 : vector<8x8xf32>
    %245 = math.exp %244 : vector<8x8xf32>
    %cst_99 = arith.constant dense<0.000000e+00> : vector<8xf32>
    %246 = vector.multi_reduction <add>, %245, %cst_99 [1] : vector<8x8xf32> to vector<8xf32>
    %247 = vector.shape_cast %246 : vector<8xf32> to vector<8x1xf32>
    %248 = vector.broadcast %247 : vector<8x1xf32> to vector<8x8xf32>
    %249 = arith.divf %245, %248 : vector<8x8xf32>
    %cst_100 = arith.constant dense<0.000000e+00> : vector<8x64xf32>
    %250 = tpu.matmul %249, %235, %cst_100 {dimension_numbers = #tpu.dot_dimension_numbers<[1], [0], [0], [1], [0, 0, 1, 1], [], []>} : vector<8x8xf32>, vector<8x64xf32>, vector<8x64xf32> -> vector<8x64xf32>
    %251 = tpu.concatenate %232, %250 in 1 : vector<8x64xf32>, vector<8x64xf32> -> vector<8x128xf32>
    %252 = vector.extract_strided_slice %208 {offsets = [8, 0], sizes = [8, 128], strides = [1, 1]} : vector<16x128xf32> to vector<8x128xf32>
    %253 = vector.extract_strided_slice %209 {offsets = [8, 0], sizes = [8, 128], strides = [1, 1]} : vector<16x128xf32> to vector<8x128xf32>
    %254 = vector.extract_strided_slice %210 {offsets = [8, 0], sizes = [8, 128], strides = [1, 1]} : vector<16x128xf32> to vector<8x128xf32>
    %255 = vector.extract_strided_slice %23 {offsets = [1, 0], sizes = [1, 8], strides = [1, 1]} : vector<2x8xf32> to vector<1x8xf32>
    %256 = vector.extract_strided_slice %252 {offsets = [0, 0], sizes = [8, 64], strides = [1, 1]} : vector<8x128xf32> to vector<8x64xf32>
    %257 = vector.extract_strided_slice %253 {offsets = [0, 0], sizes = [8, 64], strides = [1, 1]} : vector<8x128xf32> to vector<8x64xf32>
    %258 = vector.extract_strided_slice %254 {offsets = [0, 0], sizes = [8, 64], strides = [1, 1]} : vector<8x128xf32> to vector<8x64xf32>
    %cst_101 = arith.constant dense<0.000000e+00> : vector<8x8xf32>
    %259 = tpu.matmul %256, %257, %cst_101 {dimension_numbers = #tpu.dot_dimension_numbers<[1], [1], [0], [0], [0, 0, 1, 0], [], []>} : vector<8x64xf32>, vector<8x64xf32>, vector<8x8xf32> -> vector<8x8xf32>
    %cst_102 = arith.constant 1.250000e-01 : f32
    %260 = vector.broadcast %cst_102 : f32 to vector<8x8xf32>
    %261 = arith.mulf %259, %260 : vector<8x8xf32>
    %262 = vector.broadcast %255 : vector<1x8xf32> to vector<8x8xf32>
    %263 = arith.addf %261, %262 : vector<8x8xf32>
    %cst_103 = arith.constant dense<0xFF800000> : vector<8xf32>
    %264 = vector.multi_reduction <maximumf>, %263, %cst_103 [1] : vector<8x8xf32> to vector<8xf32>
    %265 = vector.shape_cast %264 : vector<8xf32> to vector<8x1xf32>
    %266 = vector.broadcast %265 : vector<8x1xf32> to vector<8x8xf32>
    %267 = arith.subf %263, %266 : vector<8x8xf32>
    %268 = math.exp %267 : vector<8x8xf32>
    %cst_104 = arith.constant dense<0.000000e+00> : vector<8xf32>
    %269 = vector.multi_reduction <add>, %268, %cst_104 [1] : vector<8x8xf32> to vector<8xf32>
    %270 = vector.shape_cast %269 : vector<8xf32> to vector<8x1xf32>
    %271 = vector.broadcast %270 : vector<8x1xf32> to vector<8x8xf32>
    %272 = arith.divf %268, %271 : vector<8x8xf32>
    %cst_105 = arith.constant dense<0.000000e+00> : vector<8x64xf32>
    %273 = tpu.matmul %272, %258, %cst_105 {dimension_numbers = #tpu.dot_dimension_numbers<[1], [0], [0], [1], [0, 0, 1, 1], [], []>} : vector<8x8xf32>, vector<8x64xf32>, vector<8x64xf32> -> vector<8x64xf32>
    %274 = vector.extract_strided_slice %252 {offsets = [0, 64], sizes = [8, 64], strides = [1, 1]} : vector<8x128xf32> to vector<8x64xf32>
    %275 = vector.extract_strided_slice %253 {offsets = [0, 64], sizes = [8, 64], strides = [1, 1]} : vector<8x128xf32> to vector<8x64xf32>
    %276 = vector.extract_strided_slice %254 {offsets = [0, 64], sizes = [8, 64], strides = [1, 1]} : vector<8x128xf32> to vector<8x64xf32>
    %cst_106 = arith.constant dense<0.000000e+00> : vector<8x8xf32>
    %277 = tpu.matmul %274, %275, %cst_106 {dimension_numbers = #tpu.dot_dimension_numbers<[1], [1], [0], [0], [0, 0, 1, 0], [], []>} : vector<8x64xf32>, vector<8x64xf32>, vector<8x8xf32> -> vector<8x8xf32>
    %cst_107 = arith.constant 1.250000e-01 : f32
    %278 = vector.broadcast %cst_107 : f32 to vector<8x8xf32>
    %279 = arith.mulf %277, %278 : vector<8x8xf32>
    %280 = vector.broadcast %255 : vector<1x8xf32> to vector<8x8xf32>
    %281 = arith.addf %279, %280 : vector<8x8xf32>
    %cst_108 = arith.constant dense<0xFF800000> : vector<8xf32>
    %282 = vector.multi_reduction <maximumf>, %281, %cst_108 [1] : vector<8x8xf32> to vector<8xf32>
    %283 = vector.shape_cast %282 : vector<8xf32> to vector<8x1xf32>
    %284 = vector.broadcast %283 : vector<8x1xf32> to vector<8x8xf32>
    %285 = arith.subf %281, %284 : vector<8x8xf32>
    %286 = math.exp %285 : vector<8x8xf32>
    %cst_109 = arith.constant dense<0.000000e+00> : vector<8xf32>
    %287 = vector.multi_reduction <add>, %286, %cst_109 [1] : vector<8x8xf32> to vector<8xf32>
    %288 = vector.shape_cast %287 : vector<8xf32> to vector<8x1xf32>
    %289 = vector.broadcast %288 : vector<8x1xf32> to vector<8x8xf32>
    %290 = arith.divf %286, %289 : vector<8x8xf32>
    %cst_110 = arith.constant dense<0.000000e+00> : vector<8x64xf32>
    %291 = tpu.matmul %290, %276, %cst_110 {dimension_numbers = #tpu.dot_dimension_numbers<[1], [0], [0], [1], [0, 0, 1, 1], [], []>} : vector<8x8xf32>, vector<8x64xf32>, vector<8x64xf32> -> vector<8x64xf32>
    %292 = tpu.concatenate %273, %291 in 1 : vector<8x64xf32>, vector<8x64xf32> -> vector<8x128xf32>
    %293 = tpu.concatenate %251, %292 in 0 : vector<8x128xf32>, vector<8x128xf32> -> vector<16x128xf32>
    %c1_111 = arith.constant 1 : index
    %c0_112 = arith.constant 0 : index
    %c0_113 = arith.constant 0 : index
    %294 = vector.load %arg6[%c1_111, %c0_112, %c0_113] : memref<2x128x128xf32, #tpu.memory_space<vmem>>, vector<1x128x128xf32>
    %295 = vector.shape_cast %294 : vector<1x128x128xf32> to vector<128x128xf32>
    %cst_114 = arith.constant dense<0.000000e+00> : vector<16x128xf32>
    %296 = tpu.matmul %293, %295, %cst_114 {dimension_numbers = #tpu.dot_dimension_numbers<[1], [0], [0], [1], [0, 0, 1, 1], [], []>} : vector<16x128xf32>, vector<128x128xf32>, vector<16x128xf32> -> vector<16x128xf32>
    %c1_115 = arith.constant 1 : index
    %c0_116 = arith.constant 0 : index
    %c0_117 = arith.constant 0 : index
    %297 = vector.load %arg7[%c1_115, %c0_116, %c0_117] : memref<2x1x128xf32, #tpu.memory_space<vmem>>, vector<1x1x128xf32>
    %298 = vector.shape_cast %297 : vector<1x1x128xf32> to vector<1x128xf32>
    %299 = vector.broadcast %298 : vector<1x128xf32> to vector<16x128xf32>
    %300 = arith.addf %296, %299 : vector<16x128xf32>
    %301 = arith.addf %200, %300 : vector<16x128xf32>
    %c1_118 = arith.constant 1 : index
    %c0_119 = arith.constant 0 : index
    %c0_120 = arith.constant 0 : index
    %302 = vector.load %arg8[%c1_118, %c0_119, %c0_120] : memref<2x1x128xf32, #tpu.memory_space<vmem>>, vector<1x1x128xf32>
    %303 = vector.shape_cast %302 : vector<1x1x128xf32> to vector<1x128xf32>
    %c1_121 = arith.constant 1 : index
    %c0_122 = arith.constant 0 : index
    %c0_123 = arith.constant 0 : index
    %304 = vector.load %arg9[%c1_121, %c0_122, %c0_123] : memref<2x1x128xf32, #tpu.memory_space<vmem>>, vector<1x1x128xf32>
    %305 = vector.shape_cast %304 : vector<1x1x128xf32> to vector<1x128xf32>
    %cst_124 = arith.constant dense<0.000000e+00> : vector<16xf32>
    %306 = vector.multi_reduction <add>, %301, %cst_124 [1] : vector<16x128xf32> to vector<16xf32>
    %307 = vector.shape_cast %306 : vector<16xf32> to vector<16x1xf32>
    %cst_125 = arith.constant 1.280000e+02 : f32
    %308 = vector.broadcast %cst_125 : f32 to vector<16x1xf32>
    %309 = arith.divf %307, %308 : vector<16x1xf32>
    %310 = vector.broadcast %309 : vector<16x1xf32> to vector<16x128xf32>
    %311 = arith.subf %301, %310 : vector<16x128xf32>
    %312 = arith.mulf %311, %311 : vector<16x128xf32>
    %cst_126 = arith.constant dense<0.000000e+00> : vector<16xf32>
    %313 = vector.multi_reduction <add>, %312, %cst_126 [1] : vector<16x128xf32> to vector<16xf32>
    %314 = vector.shape_cast %313 : vector<16xf32> to vector<16x1xf32>
    %cst_127 = arith.constant 1.280000e+02 : f32
    %315 = vector.broadcast %cst_127 : f32 to vector<16x1xf32>
    %316 = arith.divf %314, %315 : vector<16x1xf32>
    %cst_128 = arith.constant 9.99999996E-13 : f32
    %317 = vector.broadcast %cst_128 : f32 to vector<16x1xf32>
    %318 = arith.addf %316, %317 : vector<16x1xf32>
    %319 = math.rsqrt %318 : vector<16x1xf32>
    %320 = vector.broadcast %319 : vector<16x1xf32> to vector<16x128xf32>
    %321 = arith.mulf %311, %320 : vector<16x128xf32>
    %322 = vector.broadcast %303 : vector<1x128xf32> to vector<16x128xf32>
    %323 = arith.mulf %321, %322 : vector<16x128xf32>
    %324 = vector.broadcast %305 : vector<1x128xf32> to vector<16x128xf32>
    %325 = arith.addf %323, %324 : vector<16x128xf32>
    %c1_129 = arith.constant 1 : index
    %c0_130 = arith.constant 0 : index
    %c0_131 = arith.constant 0 : index
    %326 = vector.load %arg10[%c1_129, %c0_130, %c0_131] : memref<2x128x256xf32, #tpu.memory_space<vmem>>, vector<1x128x256xf32>
    %327 = vector.shape_cast %326 : vector<1x128x256xf32> to vector<128x256xf32>
    %cst_132 = arith.constant dense<0.000000e+00> : vector<16x256xf32>
    %328 = tpu.matmul %325, %327, %cst_132 {dimension_numbers = #tpu.dot_dimension_numbers<[1], [0], [0], [1], [0, 0, 1, 1], [], []>} : vector<16x128xf32>, vector<128x256xf32>, vector<16x256xf32> -> vector<16x256xf32>
    %c1_133 = arith.constant 1 : index
    %c0_134 = arith.constant 0 : index
    %c0_135 = arith.constant 0 : index
    %329 = vector.load %arg11[%c1_133, %c0_134, %c0_135] : memref<2x1x256xf32, #tpu.memory_space<vmem>>, vector<1x1x256xf32>
    %330 = vector.shape_cast %329 : vector<1x1x256xf32> to vector<1x256xf32>
    %331 = vector.broadcast %330 : vector<1x256xf32> to vector<16x256xf32>
    %332 = arith.addf %328, %331 : vector<16x256xf32>
    %333 = arith.mulf %332, %332 : vector<16x256xf32>
    %334 = arith.mulf %332, %333 : vector<16x256xf32>
    %cst_136 = arith.constant 4.471500e-02 : f32
    %335 = vector.broadcast %cst_136 : f32 to vector<16x256xf32>
    %336 = arith.mulf %335, %334 : vector<16x256xf32>
    %337 = arith.addf %332, %336 : vector<16x256xf32>
    %cst_137 = arith.constant 0.797884583 : f32
    %338 = vector.broadcast %cst_137 : f32 to vector<16x256xf32>
    %339 = arith.mulf %338, %337 : vector<16x256xf32>
    %340 = math.tanh %339 : vector<16x256xf32>
    %cst_138 = arith.constant 1.000000e+00 : f32
    %341 = vector.broadcast %cst_138 : f32 to vector<16x256xf32>
    %342 = arith.addf %341, %340 : vector<16x256xf32>
    %cst_139 = arith.constant 5.000000e-01 : f32
    %343 = vector.broadcast %cst_139 : f32 to vector<16x256xf32>
    %344 = arith.mulf %343, %342 : vector<16x256xf32>
    %345 = arith.mulf %332, %344 : vector<16x256xf32>
    %c1_140 = arith.constant 1 : index
    %c0_141 = arith.constant 0 : index
    %c0_142 = arith.constant 0 : index
    %346 = vector.load %arg12[%c1_140, %c0_141, %c0_142] : memref<2x256x128xf32, #tpu.memory_space<vmem>>, vector<1x256x128xf32>
    %347 = vector.shape_cast %346 : vector<1x256x128xf32> to vector<256x128xf32>
    %cst_143 = arith.constant dense<0.000000e+00> : vector<16x128xf32>
    %348 = tpu.matmul %345, %347, %cst_143 {dimension_numbers = #tpu.dot_dimension_numbers<[1], [0], [0], [1], [0, 0, 1, 1], [], []>} : vector<16x256xf32>, vector<256x128xf32>, vector<16x128xf32> -> vector<16x128xf32>
    %c1_144 = arith.constant 1 : index
    %c0_145 = arith.constant 0 : index
    %c0_146 = arith.constant 0 : index
    %349 = vector.load %arg13[%c1_144, %c0_145, %c0_146] : memref<2x1x128xf32, #tpu.memory_space<vmem>>, vector<1x1x128xf32>
    %350 = vector.shape_cast %349 : vector<1x1x128xf32> to vector<1x128xf32>
    %351 = vector.broadcast %350 : vector<1x128xf32> to vector<16x128xf32>
    %352 = arith.addf %348, %351 : vector<16x128xf32>
    %353 = arith.addf %325, %352 : vector<16x128xf32>
    %c1_147 = arith.constant 1 : index
    %c0_148 = arith.constant 0 : index
    %c0_149 = arith.constant 0 : index
    %354 = vector.load %arg14[%c1_147, %c0_148, %c0_149] : memref<2x1x128xf32, #tpu.memory_space<vmem>>, vector<1x1x128xf32>
    %355 = vector.shape_cast %354 : vector<1x1x128xf32> to vector<1x128xf32>
    %c1_150 = arith.constant 1 : index
    %c0_151 = arith.constant 0 : index
    %c0_152 = arith.constant 0 : index
    %356 = vector.load %arg15[%c1_150, %c0_151, %c0_152] : memref<2x1x128xf32, #tpu.memory_space<vmem>>, vector<1x1x128xf32>
    %357 = vector.shape_cast %356 : vector<1x1x128xf32> to vector<1x128xf32>
    %cst_153 = arith.constant dense<0.000000e+00> : vector<16xf32>
    %358 = vector.multi_reduction <add>, %353, %cst_153 [1] : vector<16x128xf32> to vector<16xf32>
    %359 = vector.shape_cast %358 : vector<16xf32> to vector<16x1xf32>
    %cst_154 = arith.constant 1.280000e+02 : f32
    %360 = vector.broadcast %cst_154 : f32 to vector<16x1xf32>
    %361 = arith.divf %359, %360 : vector<16x1xf32>
    %362 = vector.broadcast %361 : vector<16x1xf32> to vector<16x128xf32>
    %363 = arith.subf %353, %362 : vector<16x128xf32>
    %364 = arith.mulf %363, %363 : vector<16x128xf32>
    %cst_155 = arith.constant dense<0.000000e+00> : vector<16xf32>
    %365 = vector.multi_reduction <add>, %364, %cst_155 [1] : vector<16x128xf32> to vector<16xf32>
    %366 = vector.shape_cast %365 : vector<16xf32> to vector<16x1xf32>
    %cst_156 = arith.constant 1.280000e+02 : f32
    %367 = vector.broadcast %cst_156 : f32 to vector<16x1xf32>
    %368 = arith.divf %366, %367 : vector<16x1xf32>
    %cst_157 = arith.constant 9.99999996E-13 : f32
    %369 = vector.broadcast %cst_157 : f32 to vector<16x1xf32>
    %370 = arith.addf %368, %369 : vector<16x1xf32>
    %371 = math.rsqrt %370 : vector<16x1xf32>
    %372 = vector.broadcast %371 : vector<16x1xf32> to vector<16x128xf32>
    %373 = arith.mulf %363, %372 : vector<16x128xf32>
    %374 = vector.broadcast %355 : vector<1x128xf32> to vector<16x128xf32>
    %375 = arith.mulf %373, %374 : vector<16x128xf32>
    %376 = vector.broadcast %357 : vector<1x128xf32> to vector<16x128xf32>
    %377 = arith.addf %375, %376 : vector<16x128xf32>
    %378 = vector.extract_strided_slice %377 {offsets = [0, 0], sizes = [1, 128], strides = [1, 1]} : vector<16x128xf32> to vector<1x128xf32>
    %379 = vector.extract_strided_slice %377 {offsets = [8, 0], sizes = [1, 128], strides = [1, 1]} : vector<16x128xf32> to vector<1x128xf32>
    %380 = tpu.concatenate %378, %379 in 0 : vector<1x128xf32>, vector<1x128xf32> -> vector<2x128xf32>
    %cst_158 = arith.constant 0.000000e+00 : f32
    %381 = vector.broadcast %cst_158 : f32 to vector<6x128xf32>
    %382 = tpu.concatenate %380, %381 in 0 : vector<2x128xf32>, vector<6x128xf32> -> vector<8x128xf32>
    %c0_159 = arith.constant 0 : index
    %c0_160 = arith.constant 0 : index
    %383 = vector.load %arg16[%c0_159, %c0_160] : memref<128x128xf32, #tpu.memory_space<vmem>>, vector<128x128xf32>
    %cst_161 = arith.constant dense<0.000000e+00> : vector<8x128xf32>
    %384 = tpu.matmul %382, %383, %cst_161 {dimension_numbers = #tpu.dot_dimension_numbers<[1], [0], [0], [1], [0, 0, 1, 1], [], []>} : vector<8x128xf32>, vector<128x128xf32>, vector<8x128xf32> -> vector<8x128xf32>
    %c0_162 = arith.constant 0 : index
    %c0_163 = arith.constant 0 : index
    %385 = vector.load %arg17[%c0_162, %c0_163] : memref<1x128xf32, #tpu.memory_space<vmem>>, vector<1x128xf32>
    %386 = vector.broadcast %385 : vector<1x128xf32> to vector<8x128xf32>
    %387 = arith.addf %384, %386 : vector<8x128xf32>
    %388 = math.tanh %387 : vector<8x128xf32>
    %c0_164 = arith.constant 0 : index
    %c0_165 = arith.constant 0 : index
    %389 = vector.load %arg18[%c0_164, %c0_165] : memref<128x128xf32, #tpu.memory_space<vmem>>, vector<128x128xf32>
    %cst_166 = arith.constant dense<0.000000e+00> : vector<8x128xf32>
    %390 = tpu.matmul %388, %389, %cst_166 {dimension_numbers = #tpu.dot_dimension_numbers<[1], [0], [0], [1], [0, 0, 1, 1], [], []>} : vector<8x128xf32>, vector<128x128xf32>, vector<8x128xf32> -> vector<8x128xf32>
    %c0_167 = arith.constant 0 : index
    %c0_168 = arith.constant 0 : index
    %391 = vector.load %arg19[%c0_167, %c0_168] : memref<1x128xf32, #tpu.memory_space<vmem>>, vector<1x128xf32>
    %392 = vector.broadcast %391 : vector<1x128xf32> to vector<8x128xf32>
    %393 = arith.addf %390, %392 : vector<8x128xf32>
    %c0_169 = arith.constant 0 : index
    %c0_170 = arith.constant 0 : index
    %394 = vector.load %arg20[%c0_169, %c0_170] : memref<8x128xf32, #tpu.memory_space<vmem>>, vector<8x128xf32>
    tpu.vector_store %arg20[%c0_169, %c0_170], %393 {strides = array<i32>} : memref<8x128xf32, #tpu.memory_space<vmem>>, vector<8x128xf32>,
    return
  }
}

</mosaic_0001>

<llo_original>
// kernel: _lambda_.1
$region0: #{_lambda_.1}
  #allocation0 [shape = 'u32[]', space=smem, size = 0x4, offset = 0x4, fixed_abs, tag = 'smem constant byte address 0x4 - core index']
  #allocation1 [shape = 'u32[144,128]{1,0:T(1,128)}', space=vmem, size = 0x12000, scoped, tag = 'internal scratch']
  %s0 = inlined_call_operand.vmem [shape: f32[16,128], index: 0, kind: input, shape index: {}]
  %s1 = inlined_call_operand.vmem [shape: f32[2,8], index: 1, kind: input, shape index: {}]
  %s2 = inlined_call_operand.vmem [shape: f32[1,128], index: 2, kind: input, shape index: {}]
  %s3 = inlined_call_operand.vmem [shape: f32[1,128], index: 3, kind: input, shape index: {}]
  %s4 = inlined_call_operand.hbm [shape: f32[2,128,384], index: 4, kind: input, shape index: {}]
  %s5 = inlined_call_operand.vmem [shape: f32[2,1,384], index: 5, kind: input, shape index: {}]
  %s6 = inlined_call_operand.hbm [shape: f32[2,128,128], index: 6, kind: input, shape index: {}]
  %s7 = inlined_call_operand.vmem [shape: f32[2,1,128], index: 7, kind: input, shape index: {}]
  %s8 = inlined_call_operand.vmem [shape: f32[2,1,128], index: 8, kind: input, shape index: {}]
  %s9 = inlined_call_operand.vmem [shape: f32[2,1,128], index: 9, kind: input, shape index: {}]
  %s10 = inlined_call_operand.hbm [shape: f32[2,128,256], index: 10, kind: input, shape index: {}]
  %s11 = inlined_call_operand.vmem [shape: f32[2,1,256], index: 11, kind: input, shape index: {}]
  %s12 = inlined_call_operand.hbm [shape: f32[2,256,128], index: 12, kind: input, shape index: {}]
  %s13 = inlined_call_operand.vmem [shape: f32[2,1,128], index: 13, kind: input, shape index: {}]
  %s14 = inlined_call_operand.vmem [shape: f32[2,1,128], index: 14, kind: input, shape index: {}]
  %s15 = inlined_call_operand.vmem [shape: f32[2,1,128], index: 15, kind: input, shape index: {}]
  %s16 = inlined_call_operand.vmem [shape: f32[128,128], index: 16, kind: input, shape index: {}]
  %s17 = inlined_call_operand.vmem [shape: f32[1,128], index: 17, kind: input, shape index: {}]
  %s18 = inlined_call_operand.hbm [shape: f32[128,128], index: 18, kind: input, shape index: {}]
  %s19 = inlined_call_operand.vmem [shape: f32[1,128], index: 19, kind: input, shape index: {}]
  %s20 = inlined_call_operand.vmem [shape: f32[8,128], index: 20, kind: output, shape index: {}]
  %s21 = sld [smem:[#allocation0]]
  $region110: #{_lambda_.1} parent=0
    _
  %s23 = ssub.s32 1, %s21
  %s24 = scalar_select 0, %s23, %s21
  $region1: #{_lambda_.1} parent=0
    #allocation2 [shape = 'u8[393216]{0}', space=vmem, size = 0x60000, scoped, tag = 'input window, operand 4, single buffered']
    #allocation3 [shape = 's32[1]{0}', space=sflag, size = 0x4, scoped, tag = 'scoped memory for _lambda_.1']
    #allocation4 [shape = 'u8[131072]{0}', space=vmem, size = 0x20000, scoped, tag = 'input window, operand 6, single buffered']
    #allocation5 [shape = 's32[1]{0}', space=sflag, size = 0x4, scoped, tag = 'scoped memory for _lambda_.1']
    #allocation6 [shape = 'u8[262144]{0}', space=vmem, size = 0x40000, scoped, tag = 'input window, operand 10, single buffered']
    #allocation7 [shape = 'u8[262144]{0}', space=vmem, size = 0x40000, scoped, tag = 'input window, operand 12, single buffered']
    #allocation8 [shape = 's32[1]{0}', space=sflag, size = 0x4, scoped, tag = 'scoped memory for _lambda_.1']
    #allocation9 [shape = 'u8[65536]{0}', space=vmem, size = 0x10000, scoped, tag = 'input window, operand 18, single buffered']
    %25 = vsyncpa [#allocation3], 0
    %26 = vsyncpa [#allocation5], 0
    %27 = vsyncpa [#allocation8], 0
    // Predicated region
    $region2: #{_lambda_.1} parent=1 // pred_check
      _
    $region3: #{_lambda_.1} parent=1 // pred_check_branch
      %29 = sbr.rel (0) target = $region5
    $region4: #{_lambda_.1} parent=1 // pred_region
      _
    $region5: #{_lambda_.1} parent=1 // pred_fallthru
      _
    // Predicated region
    $region6: #{_lambda_.1} parent=1 // pred_check
      _
    $region7: #{_lambda_.1} parent=1 // pred_check_branch
      %31 = sbr.rel (0) target = $region9
    $region8: #{_lambda_.1} parent=1 // pred_region
      _
    $region9: #{_lambda_.1} parent=1 // pred_fallthru
      _
    // Predicated region
    $region10: #{_lambda_.1} parent=1 // pred_check
      _
    $region11: #{_lambda_.1} parent=1 // pred_check_branch
      %33 = sbr.rel (0) target = $region13
    $region12: #{_lambda_.1} parent=1 // pred_region
      _
    $region13: #{_lambda_.1} parent=1 // pred_fallthru
      _
    // Predicated region
    $region14: #{_lambda_.1} parent=1 // pred_check
      _
    $region15: #{_lambda_.1} parent=1 // pred_check_branch
      %35 = sbr.rel (0) target = $region17
    $region16: #{_lambda_.1} parent=1 // pred_region
      _
    $region17: #{_lambda_.1} parent=1 // pred_fallthru
      _
    // Predicated region
    $region18: #{_lambda_.1} parent=1 // pred_check
      _
    $region19: #{_lambda_.1} parent=1 // pred_check_branch
      %37 = sbr.rel (0) target = $region21
    $region20: #{_lambda_.1} parent=1 // pred_region
      %s39 = ssub.s32 12288, 12288
      %40 = vsyncadd [#allocation3], %s39
      %s41 = sshll.u32 [#allocation2], 4
      %s42 = int_to_ptr.vmem [resolvable:$true] %s41
      %47 = dma.hbm_to_vmem [thread:$0]  %s4, 12288, %s42, [#allocation3], 384, 384, 24
    $region21: #{_lambda_.1} parent=1 // pred_fallthru
      _
    // Predicated region
    $region22: #{_lambda_.1} parent=1 // pred_check
      _
    $region23: #{_lambda_.1} parent=1 // pred_check_branch
      %49 = sbr.rel (0) target = $region25
    $region24: #{_lambda_.1} parent=1 // pred_region
      _
    $region25: #{_lambda_.1} parent=1 // pred_fallthru
      _
    // Predicated region
    $region26: #{_lambda_.1} parent=1 // pred_check
      _
    $region27: #{_lambda_.1} parent=1 // pred_check_branch
      %51 = sbr.rel (0) target = $region29
    $region28: #{_lambda_.1} parent=1 // pred_region
      %s53 = ssub.s32 4096, 4096
      %54 = vsyncadd [#allocation5], %s53
      %s55 = sshll.u32 [#allocation4], 4
      %s56 = int_to_ptr.vmem [resolvable:$true] %s55
      %61 = dma.hbm_to_vmem [thread:$0]  %s6, 4096, %s56, [#allocation5], 128, 128, 8
    $region29: #{_lambda_.1} parent=1 // pred_fallthru
      _
    // Predicated region
    $region30: #{_lambda_.1} parent=1 // pred_check
      _
    $region31: #{_lambda_.1} parent=1 // pred_check_branch
      %63 = sbr.rel (0) target = $region33
    $region32: #{_lambda_.1} parent=1 // pred_region
      _
    $region33: #{_lambda_.1} parent=1 // pred_fallthru
      _
    // Predicated region
    $region34: #{_lambda_.1} parent=1 // pred_check
      _
    $region35: #{_lambda_.1} parent=1 // pred_check_branch
      %65 = sbr.rel (0) target = $region37
    $region36: #{_lambda_.1} parent=1 // pred_region
      _
    $region37: #{_lambda_.1} parent=1 // pred_fallthru
      _
    // Predicated region
    $region38: #{_lambda_.1} parent=1 // pred_check
      _
    $region39: #{_lambda_.1} parent=1 // pred_check_branch
      %67 = sbr.rel (0) target = $region41
    $region40: #{_lambda_.1} parent=1 // pred_region
      _
    $region41: #{_lambda_.1} parent=1 // pred_fallthru
      _
    // Predicated region
    $region42: #{_lambda_.1} parent=1 // pred_check
      _
    $region43: #{_lambda_.1} parent=1 // pred_check_branch
      %69 = sbr.rel (0) target = $region45
    $region44: #{_lambda_.1} parent=1 // pred_region
      %s71 = ssub.s32 8192, 8192
      %72 = vsyncadd [#allocation5], %s71
      %s73 = sshll.u32 [#allocation6], 4
      %s74 = int_to_ptr.vmem [resolvable:$true] %s73
      %79 = dma.hbm_to_vmem [thread:$0]  %s10, 8192, %s74, [#allocation5], 256, 256, 16
    $region45: #{_lambda_.1} parent=1 // pred_fallthru
      _
    // Predicated region
    $region46: #{_lambda_.1} parent=1 // pred_check
      _
    $region47: #{_lambda_.1} parent=1 // pred_check_branch
      %81 = sbr.rel (0) target = $region49
    $region48: #{_lambda_.1} parent=1 // pred_region
      _
    $region49: #{_lambda_.1} parent=1 // pred_fallthru
      _
    // Predicated region
    $region50: #{_lambda_.1} parent=1 // pred_check
      _
    $region51: #{_lambda_.1} parent=1 // pred_check_branch
      %83 = sbr.rel (0) target = $region53
    $region52: #{_lambda_.1} parent=1 // pred_region
      %s85 = ssub.s32 8192, 8192
      %86 = vsyncadd [#allocation8], %s85
      %s87 = sshll.u32 [#allocation7], 4
      %s88 = int_to_ptr.vmem [resolvable:$true] %s87
      %93 = dma.hbm_to_vmem [thread:$0]  %s12, 8192, %s88, [#allocation8], 128, 128, 8
    $region53: #{_lambda_.1} parent=1 // pred_fallthru
      _
    // Predicated region
    $region54: #{_lambda_.1} parent=1 // pred_check
      _
    $region55: #{_lambda_.1} parent=1 // pred_check_branch
      %95 = sbr.rel (0) target = $region57
    $region56: #{_lambda_.1} parent=1 // pred_region
      _
    $region57: #{_lambda_.1} parent=1 // pred_fallthru
      _
    // Predicated region
    $region58: #{_lambda_.1} parent=1 // pred_check
      _
    $region59: #{_lambda_.1} parent=1 // pred_check_branch
      %97 = sbr.rel (0) target = $region61
    $region60: #{_lambda_.1} parent=1 // pred_region
      _
    $region61: #{_lambda_.1} parent=1 // pred_fallthru
      _
    // Predicated region
    $region62: #{_lambda_.1} parent=1 // pred_check
      _
    $region63: #{_lambda_.1} parent=1 // pred_check_branch
      %99 = sbr.rel (0) target = $region65
    $region64: #{_lambda_.1} parent=1 // pred_region
      _
    $region65: #{_lambda_.1} parent=1 // pred_fallthru
      _
    // Predicated region
    $region66: #{_lambda_.1} parent=1 // pred_check
      _
    $region67: #{_lambda_.1} parent=1 // pred_check_branch
      %101 = sbr.rel (0) target = $region69
    $region68: #{_lambda_.1} parent=1 // pred_region
      _
    $region69: #{_lambda_.1} parent=1 // pred_fallthru
      _
    // Predicated region
    $region70: #{_lambda_.1} parent=1 // pred_check
      _
    $region71: #{_lambda_.1} parent=1 // pred_check_branch
      %103 = sbr.rel (0) target = $region73
    $region72: #{_lambda_.1} parent=1 // pred_region
      _
    $region73: #{_lambda_.1} parent=1 // pred_fallthru
      _
    // Predicated region
    $region74: #{_lambda_.1} parent=1 // pred_check
      _
    $region75: #{_lambda_.1} parent=1 // pred_check_branch
      %105 = sbr.rel (0) target = $region77
    $region76: #{_lambda_.1} parent=1 // pred_region
      %s107 = ssub.s32 2048, 2048
      %108 = vsyncadd [#allocation8], %s107
      %s109 = sshll.u32 [#allocation9], 4
      %s110 = int_to_ptr.vmem [resolvable:$true] %s109
      %115 = dma.hbm_to_vmem [thread:$0]  %s18, 2048, %s110, [#allocation8], 128, 128, 8
    $region77: #{_lambda_.1} parent=1 // pred_fallthru
      _
    // Predicated region
    $region78: #{_lambda_.1} parent=1 // pred_check
      _
    $region79: #{_lambda_.1} parent=1 // pred_check_branch
      %117 = sbr.rel (0) target = $region81
    $region80: #{_lambda_.1} parent=1 // pred_region
      _
    $region81: #{_lambda_.1} parent=1 // pred_fallthru
      _
    // Predicated region
    $region82: #{_lambda_.1} parent=1 // pred_check
      _
    $region83: #{_lambda_.1} parent=1 // pred_check_branch
      %119 = sbr.rel (0) target = $region85
    $region84: #{_lambda_.1} parent=1 // pred_region
      %120 = dma.done [#allocation3], 12288
    $region85: #{_lambda_.1} parent=1 // pred_fallthru
      _
    // Predicated region
    $region86: #{_lambda_.1} parent=1 // pred_check
      _
    $region87: #{_lambda_.1} parent=1 // pred_check_branch
      %122 = sbr.rel (0) target = $region89
    $region88: #{_lambda_.1} parent=1 // pred_region
      %123 = dma.done [#allocation5], 4096
    $region89: #{_lambda_.1} parent=1 // pred_fallthru
      _
    // Predicated region
    $region90: #{_lambda_.1} parent=1 // pred_check
      _
    $region91: #{_lambda_.1} parent=1 // pred_check_branch
      %125 = sbr.rel (0) target = $region93
    $region92: #{_lambda_.1} parent=1 // pred_region
      %126 = dma.done [#allocation5], 8192
    $region93: #{_lambda_.1} parent=1 // pred_fallthru
      _
    // Predicated region
    $region94: #{_lambda_.1} parent=1 // pred_check
      _
    $region95: #{_lambda_.1} parent=1 // pred_check_branch
      %128 = sbr.rel (0) target = $region97
    $region96: #{_lambda_.1} parent=1 // pred_region
      %129 = dma.done [#allocation8], 8192
    $region97: #{_lambda_.1} parent=1 // pred_fallthru
      _
    // Predicated region
    $region98: #{_lambda_.1} parent=1 // pred_check
      _
    $region99: #{_lambda_.1} parent=1 // pred_check_branch
      %131 = sbr.rel (0) target = $region101
    $region100: #{_lambda_.1} parent=1 // pred_region
      %132 = dma.done [#allocation8], 2048
    $region101: #{_lambda_.1} parent=1 // pred_fallthru
      _
    %v133 = vld [vmem:[%s0] sm:$0xff]
    %v134 = vld [vmem:[%s0 + $0x8] sm:$0xff]
    %v135 = vld [vmem:[%s2] sm:$0x1]
    %v136 = vld [vmem:[%s3] sm:$0x1]
    %137 = vadd.xlane.f32.xlu0 %v133
    %v138 = vpop.xlane.xlu0 %137
    %139 = vadd.xlane.f32.xlu0 %v134
    %v140 = vpop.xlane.xlu0 %139
    %v141 = vrcp.pop 128.0
    %v142 = vmul.f32 %v138, %v141
    %v143 = vmul.f32 %v140, %v141
    %v144 = vsub.f32 %v133, %v142
    %v145 = vsub.f32 %v134, %v143
    %v146 = vmul.f32 %v144, %v144
    %v147 = vmul.f32 %v145, %v145
    %148 = vadd.xlane.f32.xlu0 %v146
    %v149 = vpop.xlane.xlu0 %148
    %150 = vadd.xlane.f32.xlu0 %v147
    %v151 = vpop.xlane.xlu0 %150
    %v152 = vmul.f32 %v149, %v141
    %v153 = vmul.f32 %v151, %v141
    %v154 = vadd.f32 %v152, 1e-12
    %v155 = vadd.f32 %v153, 1e-12
    %v156 = vrsqrt.pop %v154
    %v157 = vrsqrt.pop %v155
    %v158 = vmul.f32 %v144, %v156
    %v159 = vmul.f32 %v145, %v157
    %v161 = vlaneseq
    %v162 = vshrl.u32 %v161, 7
    %v163 = vsub.s32 0, %v162
    %v164 = vrot.slane %v135, %v163
    %v166 = vmul.f32 %v158, %v164
    %v167 = vmul.f32 %v159, %v164
    %v169 = vlaneseq
    %v170 = vshrl.u32 %v169, 7
    %v171 = vsub.s32 0, %v170
    %v172 = vrot.slane %v136, %v171
    %v174 = vadd.f32 %v166, %v172
    %v175 = vadd.f32 %v167, %v172
    %v176 = vld [vmem:[%s1] sm:$0x3]
    %v177 = vld [vmem:[#allocation2] sm:$0xff]
    %v178 = vld [vmem:[#allocation2 + $0x8] sm:$0xff]
    %v179 = vld [vmem:[#allocation2 + $0x10] sm:$0xff]
    %v180 = vld [vmem:[#allocation2 + $0x18] sm:$0xff]
    %v181 = vld [vmem:[#allocation2 + $0x20] sm:$0xff]
    %v182 = vld [vmem:[#allocation2 + $0x28] sm:$0xff]
    %v183 = vld [vmem:[#allocation2 + $0x30] sm:$0xff]
    %v184 = vld [vmem:[#allocation2 + $0x38] sm:$0xff]
    %v185 = vld [vmem:[#allocation2 + $0x40] sm:$0xff]
    %v186 = vld [vmem:[#allocation2 + $0x48] sm:$0xff]
    %v187 = vld [vmem:[#allocation2 + $0x50] sm:$0xff]
    %v188 = vld [vmem:[#allocation2 + $0x58] sm:$0xff]
    %v189 = vld [vmem:[#allocation2 + $0x60] sm:$0xff]
    %v190 = vld [vmem:[#allocation2 + $0x68] sm:$0xff]
    %v191 = vld [vmem:[#allocation2 + $0x70] sm:$0xff]
    %v192 = vld [vmem:[#allocation2 + $0x78] sm:$0xff]
    %v193 = vld [vmem:[#allocation2 + $0x80] sm:$0xff]
    %v194 = vld [vmem:[#allocation2 + $0x88] sm:$0xff]
    %v195 = vld [vmem:[#allocation2 + $0x90] sm:$0xff]
    %v196 = vld [vmem:[#allocation2 + $0x98] sm:$0xff]
    %v197 = vld [vmem:[#allocation2 + $0xa0] sm:$0xff]
    %v198 = vld [vmem:[#allocation2 + $0xa8] sm:$0xff]
    %v199 = vld [vmem:[#allocation2 + $0xb0] sm:$0xff]
    %v200 = vld [vmem:[#allocation2 + $0xb8] sm:$0xff]
    %v201 = vld [vmem:[#allocation2 + $0xc0] sm:$0xff]
    %v202 = vld [vmem:[#allocation2 + $0xc8] sm:$0xff]
    %v203 = vld [vmem:[#allocation2 + $0xd0] sm:$0xff]
    %v204 = vld [vmem:[#allocation2 + $0xd8] sm:$0xff]
    %v205 = vld [vmem:[#allocation2 + $0xe0] sm:$0xff]
    %v206 = vld [vmem:[#allocation2 + $0xe8] sm:$0xff]
    %v207 = vld [vmem:[#allocation2 + $0xf0] sm:$0xff]
    %v208 = vld [vmem:[#allocation2 + $0xf8] sm:$0xff]
    %v209 = vld [vmem:[#allocation2 + $0x100] sm:$0xff]
    %v210 = vld [vmem:[#allocation2 + $0x108] sm:$0xff]
    %v211 = vld [vmem:[#allocation2 + $0x110] sm:$0xff]
    %v212 = vld [vmem:[#allocation2 + $0x118] sm:$0xff]
    %v213 = vld [vmem:[#allocation2 + $0x120] sm:$0xff]
    %v214 = vld [vmem:[#allocation2 + $0x128] sm:$0xff]
    %v215 = vld [vmem:[#allocation2 + $0x130] sm:$0xff]
    %v216 = vld [vmem:[#allocation2 + $0x138] sm:$0xff]
    %v217 = vld [vmem:[#allocation2 + $0x140] sm:$0xff]
    %v218 = vld [vmem:[#allocation2 + $0x148] sm:$0xff]
    %v219 = vld [vmem:[#allocation2 + $0x150] sm:$0xff]
    %v220 = vld [vmem:[#allocation2 + $0x158] sm:$0xff]
    %v221 = vld [vmem:[#allocation2 + $0x160] sm:$0xff]
    %v222 = vld [vmem:[#allocation2 + $0x168] sm:$0xff]
    %v223 = vld [vmem:[#allocation2 + $0x170] sm:$0xff]
    %v224 = vld [vmem:[#allocation2 + $0x178] sm:$0xff]
    %v225 = vld [vmem:[%s5] sm:$0x7]
    %v227 = vlaneseq
    %v228 = vshrl.u32 %v227, 7
    %v229 = vsub.s32 0, %v228
    %v230 = vrot.slane %v225, %v229
    %v231 = vlaneseq
    %v232 = vshrl.u32 %v231, 7
    %v233 = vsub.s32 1, %v232
    %v234 = vrot.slane %v225, %v233
    %v235 = vlaneseq
    %v236 = vshrl.u32 %v235, 7
    %v237 = vsub.s32 2, %v236
    %v238 = vrot.slane %v225, %v237
    %242 = vmatprep.subr.mxu0 %v178
    %243 = vmatpush1.msra.mxu0 %v177
    %244 = vmatprep.subr.mxu0 %v181
    %245 = vmatpush1.msra.mxu0 %v180
    %246 = vmatprep.subr.mxu0 %v184
    %247 = vmatpush1.msra.mxu0 %v183
    %248 = vmatprep.subr.mxu0 %v187
    %249 = vmatpush1.msra.mxu0 %v186
    %250 = vmatprep.subr.mxu0 %v190
    %251 = vmatpush1.msra.mxu0 %v189
    %252 = vmatprep.subr.mxu0 %v193
    %253 = vmatpush1.msra.mxu0 %v192
    %254 = vmatprep.subr.mxu0 %v196
    %255 = vmatpush1.msra.mxu0 %v195
    %256 = vmatprep.subr.mxu0 %v199
    %257 = vmatpush1.msra.mxu0 %v198
    %258 = vmatprep.subr.mxu0 %v202
    %259 = vmatpush1.msra.mxu0 %v201
    %260 = vmatprep.subr.mxu0 %v205
    %261 = vmatpush1.msra.mxu0 %v204
    %262 = vmatprep.subr.mxu0 %v208
    %263 = vmatpush1.msra.mxu0 %v207
    %264 = vmatprep.subr.mxu0 %v211
    %265 = vmatpush1.msra.mxu0 %v210
    %266 = vmatprep.subr.mxu0 %v214
    %267 = vmatpush1.msra.mxu0 %v213
    %268 = vmatprep.subr.mxu0 %v217
    %269 = vmatpush1.msra.mxu0 %v216
    %270 = vmatprep.subr.mxu0 %v220
    %271 = vmatpush1.msra.mxu0 %v219
    %272 = vmatprep.subr.mxu0 %v223
    %273 = vmatpush1.msra.mxu0 %v222
    %274 = vmatprep.subr.mxu0 0.0
    %275 = vmatpush1.msra.mxu0 0.0
    %276 = vmatprep.subr.mxu0 0.0
    %277 = vmatpush1.msra.mxu0 0.0
    %278 = vmatprep.subr.mxu0 0.0
    %279 = vmatpush1.msra.mxu0 0.0
    %280 = vmatprep.subr.mxu0 0.0
    %281 = vmatpush1.msra.mxu0 0.0
    %282 = vmatprep.subr.mxu0 0.0
    %283 = vmatpush1.msra.mxu0 0.0
    %284 = vmatprep.subr.mxu0 0.0
    %285 = vmatpush1.msra.mxu0 0.0
    %286 = vmatprep.subr.mxu0 0.0
    %287 = vmatpush1.msra.mxu0 0.0
    %288 = vmatprep.subr.mxu0 0.0
    %289 = vmatpush1.msra.mxu0 0.0
    %290 = vmatprep.subr.mxu0 0.0
    %291 = vmatpush1.msra.mxu0 0.0
    %292 = vmatprep.subr.mxu0 0.0
    %293 = vmatpush1.msra.mxu0 0.0
    %294 = vmatprep.subr.mxu0 0.0
    %295 = vmatpush1.msra.mxu0 0.0
    %296 = vmatprep.subr.mxu0 0.0
    %297 = vmatpush1.msra.mxu0 0.0
    %298 = vmatprep.subr.mxu0 0.0
    %299 = vmatpush1.msra.mxu0 0.0
    %300 = vmatprep.subr.mxu0 0.0
    %301 = vmatpush1.msra.mxu0 0.0
    %302 = vmatprep.subr.mxu0 0.0
    %303 = vmatpush1.msra.mxu0 0.0
    %304 = vmatprep.subr.mxu0 0.0
    %305 = vmatpush1.msra.mxu0 0.0
    %306 = vmatprep.mubr.f32.mxu0 0.0
    %307 = vmatmul.mubr.f32.gmra.mrb[0].mxu0 %v174
    %v308 = vpop.f32.mrb[0].mxu0
    %v309 = vadd.f32 %v230, %v308
    %v310 = vpop.f32.mrb[0].mxu0
    %v311 = vadd.f32 %v234, %v310
    %312 = vmatprep.mubr.f32.mxu0 0.0
    %313 = vmatmul.mubr.f32.gmra.mrb[0].mxu0 %v175
    %v314 = vpop.f32.mrb[0].mxu0
    %v315 = vadd.f32 %v230, %v314
    %v316 = vpop.f32.mrb[0].mxu0
    %v317 = vadd.f32 %v234, %v316
    %318 = vdwg.mxu0
    %319 = vmatprep.subr.mxu0 0.0
    %320 = vmatpush1.msra.mxu0 %v179
    %321 = vmatprep.subr.mxu0 0.0
    %322 = vmatpush1.msra.mxu0 %v182
    %323 = vmatprep.subr.mxu0 0.0
    %324 = vmatpush1.msra.mxu0 %v185
    %325 = vmatprep.subr.mxu0 0.0
    %326 = vmatpush1.msra.mxu0 %v188
    %327 = vmatprep.subr.mxu0 0.0
    %328 = vmatpush1.msra.mxu0 %v191
    %329 = vmatprep.subr.mxu0 0.0
    %330 = vmatpush1.msra.mxu0 %v194
    %331 = vmatprep.subr.mxu0 0.0
    %332 = vmatpush1.msra.mxu0 %v197
    %333 = vmatprep.subr.mxu0 0.0
    %334 = vmatpush1.msra.mxu0 %v200
    %335 = vmatprep.subr.mxu0 0.0
    %336 = vmatpush1.msra.mxu0 %v203
    %337 = vmatprep.subr.mxu0 0.0
    %338 = vmatpush1.msra.mxu0 %v206
    %339 = vmatprep.subr.mxu0 0.0
    %340 = vmatpush1.msra.mxu0 %v209
    %341 = vmatprep.subr.mxu0 0.0
    %342 = vmatpush1.msra.mxu0 %v212
    %343 = vmatprep.subr.mxu0 0.0
    %344 = vmatpush1.msra.mxu0 %v215
    %345 = vmatprep.subr.mxu0 0.0
    %346 = vmatpush1.msra.mxu0 %v218
    %347 = vmatprep.subr.mxu0 0.0
    %348 = vmatpush1.msra.mxu0 %v221
    %349 = vmatprep.subr.mxu0 0.0
    %350 = vmatpush1.msra.mxu0 %v224
    %351 = vmatprep.subr.mxu0 0.0
    %352 = vmatpush1.msra.mxu0 0.0
    %353 = vmatprep.subr.mxu0 0.0
    %354 = vmatpush1.msra.mxu0 0.0
    %355 = vmatprep.subr.mxu0 0.0
    %356 = vmatpush1.msra.mxu0 0.0
    %357 = vmatprep.subr.mxu0 0.0
    %358 = vmatpush1.msra.mxu0 0.0
    %359 = vmatprep.subr.mxu0 0.0
    %360 = vmatpush1.msra.mxu0 0.0
    %361 = vmatprep.subr.mxu0 0.0
    %362 = vmatpush1.msra.mxu0 0.0
    %363 = vmatprep.subr.mxu0 0.0
    %364 = vmatpush1.msra.mxu0 0.0
    %365 = vmatprep.subr.mxu0 0.0
    %366 = vmatpush1.msra.mxu0 0.0
    %367 = vmatprep.subr.mxu0 0.0
    %368 = vmatpush1.msra.mxu0 0.0
    %369 = vmatprep.subr.mxu0 0.0
    %370 = vmatpush1.msra.mxu0 0.0
    %371 = vmatprep.subr.mxu0 0.0
    %372 = vmatpush1.msra.mxu0 0.0
    %373 = vmatprep.subr.mxu0 0.0
    %374 = vmatpush1.msra.mxu0 0.0
    %375 = vmatprep.subr.mxu0 0.0
    %376 = vmatpush1.msra.mxu0 0.0
    %377 = vmatprep.subr.mxu0 0.0
    %378 = vmatpush1.msra.mxu0 0.0
    %379 = vmatprep.subr.mxu0 0.0
    %380 = vmatpush1.msra.mxu0 0.0
    %381 = vmatprep.subr.mxu0 0.0
    %382 = vmatpush1.msra.mxu0 0.0
    %383 = vmatprep.mubr.f32.mxu0 0.0
    %384 = vmatmul.mubr.f32.gmra.mrb[0].mxu0 %v174
    %v385 = vpop.f32.mrb[0].mxu0
    %v386 = vadd.f32 %v238, %v385
    %v387 = vpop.f32.mrb[0].mxu0
    %388 = vmatprep.mubr.f32.mxu0 0.0
    %389 = vmatmul.mubr.f32.gmra.mrb[0].mxu0 %v175
    %v390 = vpop.f32.mrb[0].mxu0
    %v391 = vadd.f32 %v238, %v390
    %v392 = vpop.f32.mrb[0].mxu0
    %393 = vdwg.mxu0
    %vm394 = vcmask 523264
    %v396 = vsel %vm394, %v309, 0
    %v399 = vsel %vm394, %v311, 0
    %401 = vmatprep.subr.mxu0 0.0
    %402 = vmatpush1.xpose.msra.mxu0 %v399
    %403 = vmatprep.subr.mxu0 0.0
    %404 = vmatpush1.xpose.msra.mxu0 0.0
    %405 = vmatprep.subr.mxu0 0.0
    %406 = vmatpush1.xpose.msra.mxu0 0.0
    %407 = vmatprep.subr.mxu0 0.0
    %408 = vmatpush1.xpose.msra.mxu0 0.0
    %409 = vmatprep.subr.mxu0 0.0
    %410 = vmatpush1.xpose.msra.mxu0 0.0
    %411 = vmatprep.subr.mxu0 0.0
    %412 = vmatpush1.xpose.msra.mxu0 0.0
    %413 = vmatprep.subr.mxu0 0.0
    %414 = vmatpush1.xpose.msra.mxu0 0.0
    %415 = vmatprep.subr.mxu0 0.0
    %416 = vmatpush1.xpose.msra.mxu0 0.0
    %417 = vmatprep.subr.mxu0 0.0
    %418 = vmatpush1.xpose.msra.mxu0 0.0
    %419 = vmatprep.subr.mxu0 0.0
    %420 = vmatpush1.xpose.msra.mxu0 0.0
    %421 = vmatprep.subr.mxu0 0.0
    %422 = vmatpush1.xpose.msra.mxu0 0.0
    %423 = vmatprep.subr.mxu0 0.0
    %424 = vmatpush1.xpose.msra.mxu0 0.0
    %425 = vmatprep.subr.mxu0 0.0
    %426 = vmatpush1.xpose.msra.mxu0 0.0
    %427 = vmatprep.subr.mxu0 0.0
    %428 = vmatpush1.xpose.msra.mxu0 0.0
    %429 = vmatprep.subr.mxu0 0.0
    %430 = vmatpush1.xpose.msra.mxu0 0.0
    %431 = vmatprep.subr.mxu0 0.0
    %432 = vmatpush1.xpose.msra.mxu0 0.0
    %433 = vmatprep.subr.mxu0 0.0
    %434 = vmatpush1.xpose.msra.mxu0 0.0
    %435 = vmatprep.subr.mxu0 0.0
    %436 = vmatpush1.xpose.msra.mxu0 0.0
    %437 = vmatprep.subr.mxu0 0.0
    %438 = vmatpush1.xpose.msra.mxu0 0.0
    %439 = vmatprep.subr.mxu0 0.0
    %440 = vmatpush1.xpose.msra.mxu0 0.0
    %441 = vmatprep.subr.mxu0 0.0
    %442 = vmatpush1.xpose.msra.mxu0 0.0
    %443 = vmatprep.subr.mxu0 0.0
    %444 = vmatpush1.xpose.msra.mxu0 0.0
    %445 = vmatprep.subr.mxu0 0.0
    %446 = vmatpush1.xpose.msra.mxu0 0.0
    %447 = vmatprep.subr.mxu0 0.0
    %448 = vmatpush1.xpose.msra.mxu0 0.0
    %449 = vmatprep.subr.mxu0 0.0
    %450 = vmatpush1.xpose.msra.mxu0 0.0
    %451 = vmatprep.subr.mxu0 0.0
    %452 = vmatpush1.xpose.msra.mxu0 0.0
    %453 = vmatprep.subr.mxu0 0.0
    %454 = vmatpush1.xpose.msra.mxu0 0.0
    %455 = vmatprep.subr.mxu0 0.0
    %456 = vmatpush1.xpose.msra.mxu0 0.0
    %457 = vmatprep.subr.mxu0 0.0
    %458 = vmatpush1.xpose.msra.mxu0 0.0
    %459 = vmatprep.subr.mxu0 0.0
    %460 = vmatpush1.xpose.msra.mxu0 0.0
    %461 = vmatprep.subr.mxu0 0.0
    %462 = vmatpush1.xpose.msra.mxu0 0.0
    %463 = vmatprep.subr.mxu0 0.0
    %464 = vmatpush1.xpose.msra.mxu0 0.0
    %465 = vmatprep.mubr.f32.mxu0 0.0
    %466 = vmatmul.mubr.f32.gmra.mrb[0].mxu0 %v396
    %v467 = vpop.f32.mrb[0].mxu0
    %v468 = vadd.f32 0.0, %v467
    %v469 = vpop.f32.mrb[0].mxu0
    %470 = vdwg.mxu0
    %v471 = vmul.f32 %v468, 0.125
    %v472 = vlaneseq
    %v473 = vshrl.u32 %v472, 7
    %v474 = vsub.s32 0, %v473
    %v475 = vrot.slane %v176, %v474
    %v476 = vadd.f32 %v471, %v475
    %vm477 = vcmask 64512
    %v478 = vsel %vm477, %v476, -inf
    %479 = vmax.xlane.f32.xlu0 %v478
    %v480 = vpop.xlane.xlu0 %479
    %v481 = vsub.f32 %v476, %v480
    %v482 = vmul.f32 %v481, 1.442695
    %v483 = vpow.pop %v482
    %v484 = vsel %vm477, %v483, 0.0
    %485 = vadd.xlane.f32.xlu0 %v484
    %v486 = vpop.xlane.xlu0 %485
    %v487 = vrcp.pop %v486
    %v488 = vmul.f32 %v483, %v487
    %v490 = vsel %vm477, %v488, 0
    %492 = vmatprep.subr.mxu0 0.0
    %493 = vmatpush1.msra.mxu0 %v386
    %494 = vmatprep.subr.mxu0 0.0
    %495 = vmatpush1.msra.mxu0 0.0
    %496 = vmatprep.subr.mxu0 0.0
    %497 = vmatpush1.msra.mxu0 0.0
    %498 = vmatprep.subr.mxu0 0.0
    %499 = vmatpush1.msra.mxu0 0.0
    %500 = vmatprep.subr.mxu0 0.0
    %501 = vmatpush1.msra.mxu0 0.0
    %502 = vmatprep.subr.mxu0 0.0
    %503 = vmatpush1.msra.mxu0 0.0
    %504 = vmatprep.subr.mxu0 0.0
    %505 = vmatpush1.msra.mxu0 0.0
    %506 = vmatprep.subr.mxu0 0.0
    %507 = vmatpush1.msra.mxu0 0.0
    %508 = vmatprep.subr.mxu0 0.0
    %509 = vmatpush1.msra.mxu0 0.0
    %510 = vmatprep.subr.mxu0 0.0
    %511 = vmatpush1.msra.mxu0 0.0
    %512 = vmatprep.subr.mxu0 0.0
    %513 = vmatpush1.msra.mxu0 0.0
    %514 = vmatprep.subr.mxu0 0.0
    %515 = vmatpush1.msra.mxu0 0.0
    %516 = vmatprep.subr.mxu0 0.0
    %517 = vmatpush1.msra.mxu0 0.0
    %518 = vmatprep.subr.mxu0 0.0
    %519 = vmatpush1.msra.mxu0 0.0
    %520 = vmatprep.subr.mxu0 0.0
    %521 = vmatpush1.msra.mxu0 0.0
    %522 = vmatprep.subr.mxu0 0.0
    %523 = vmatpush1.msra.mxu0 0.0
    %524 = vmatprep.subr.mxu0 0.0
    %525 = vmatpush1.msra.mxu0 0.0
    %526 = vmatprep.subr.mxu0 0.0
    %527 = vmatpush1.msra.mxu0 0.0
    %528 = vmatprep.subr.mxu0 0.0
    %529 = vmatpush1.msra.mxu0 0.0
    %530 = vmatprep.subr.mxu0 0.0
    %531 = vmatpush1.msra.mxu0 0.0
    %532 = vmatprep.subr.mxu0 0.0
    %533 = vmatpush1.msra.mxu0 0.0
    %534 = vmatprep.subr.mxu0 0.0
    %535 = vmatpush1.msra.mxu0 0.0
    %536 = vmatprep.subr.mxu0 0.0
    %537 = vmatpush1.msra.mxu0 0.0
    %538 = vmatprep.subr.mxu0 0.0
    %539 = vmatpush1.msra.mxu0 0.0
    %540 = vmatprep.subr.mxu0 0.0
    %541 = vmatpush1.msra.mxu0 0.0
    %542 = vmatprep.subr.mxu0 0.0
    %543 = vmatpush1.msra.mxu0 0.0
    %544 = vmatprep.subr.mxu0 0.0
    %545 = vmatpush1.msra.mxu0 0.0
    %546 = vmatprep.subr.mxu0 0.0
    %547 = vmatpush1.msra.mxu0 0.0
    %548 = vmatprep.subr.mxu0 0.0
    %549 = vmatpush1.msra.mxu0 0.0
    %550 = vmatprep.subr.mxu0 0.0
    %551 = vmatpush1.msra.mxu0 0.0
    %552 = vmatprep.subr.mxu0 0.0
    %553 = vmatpush1.msra.mxu0 0.0
    %554 = vmatprep.subr.mxu0 0.0
    %555 = vmatpush1.msra.mxu0 0.0
    %556 = vmatprep.mubr.f32.mxu0 0.0
    %557 = vmatmul.mubr.f32.gmra.mrb[0].mxu0 %v490
    %v558 = vpop.f32.mrb[0].mxu0
    %v559 = vadd.f32 0.0, %v558
    %v560 = vpop.f32.mrb[0].mxu0
    %561 = vdwg.mxu0
    %562 = vrot.lane.b32.xlu0 %v309, 64
    %v563 = vpop.permute.xlu0 %562
    %564 = vrot.lane.b32.xlu0 %v311, 64
    %v565 = vpop.permute.xlu0 %564
    %v566 = vsel %vm394, %v563, 0
    %v568 = vsel %vm394, %v565, 0
    %570 = vmatprep.subr.mxu0 0.0
    %571 = vmatpush1.xpose.msra.mxu0 %v568
    %572 = vmatprep.subr.mxu0 0.0
    %573 = vmatpush1.xpose.msra.mxu0 0.0
    %574 = vmatprep.subr.mxu0 0.0
    %575 = vmatpush1.xpose.msra.mxu0 0.0
    %576 = vmatprep.subr.mxu0 0.0
    %577 = vmatpush1.xpose.msra.mxu0 0.0
    %578 = vmatprep.subr.mxu0 0.0
    %579 = vmatpush1.xpose.msra.mxu0 0.0
    %580 = vmatprep.subr.mxu0 0.0
    %581 = vmatpush1.xpose.msra.mxu0 0.0
    %582 = vmatprep.subr.mxu0 0.0
    %583 = vmatpush1.xpose.msra.mxu0 0.0
    %584 = vmatprep.subr.mxu0 0.0
    %585 = vmatpush1.xpose.msra.mxu0 0.0
    %586 = vmatprep.subr.mxu0 0.0
    %587 = vmatpush1.xpose.msra.mxu0 0.0
    %588 = vmatprep.subr.mxu0 0.0
    %589 = vmatpush1.xpose.msra.mxu0 0.0
    %590 = vmatprep.subr.mxu0 0.0
    %591 = vmatpush1.xpose.msra.mxu0 0.0
    %592 = vmatprep.subr.mxu0 0.0
    %593 = vmatpush1.xpose.msra.mxu0 0.0
    %594 = vmatprep.subr.mxu0 0.0
    %595 = vmatpush1.xpose.msra.mxu0 0.0
    %596 = vmatprep.subr.mxu0 0.0
    %597 = vmatpush1.xpose.msra.mxu0 0.0
    %598 = vmatprep.subr.mxu0 0.0
    %599 = vmatpush1.xpose.msra.mxu0 0.0
    %600 = vmatprep.subr.mxu0 0.0
    %601 = vmatpush1.xpose.msra.mxu0 0.0
    %602 = vmatprep.subr.mxu0 0.0
    %603 = vmatpush1.xpose.msra.mxu0 0.0
    %604 = vmatprep.subr.mxu0 0.0
    %605 = vmatpush1.xpose.msra.mxu0 0.0
    %606 = vmatprep.subr.mxu0 0.0
    %607 = vmatpush1.xpose.msra.mxu0 0.0
    %608 = vmatprep.subr.mxu0 0.0
    %609 = vmatpush1.xpose.msra.mxu0 0.0
    %610 = vmatprep.subr.mxu0 0.0
    %611 = vmatpush1.xpose.msra.mxu0 0.0
    %612 = vmatprep.subr.mxu0 0.0
    %613 = vmatpush1.xpose.msra.mxu0 0.0
    %614 = vmatprep.subr.mxu0 0.0
    %615 = vmatpush1.xpose.msra.mxu0 0.0
    %616 = vmatprep.subr.mxu0 0.0
    %617 = vmatpush1.xpose.msra.mxu0 0.0
    %618 = vmatprep.subr.mxu0 0.0
    %619 = vmatpush1.xpose.msra.mxu0 0.0
    %620 = vmatprep.subr.mxu0 0.0
    %621 = vmatpush1.xpose.msra.mxu0 0.0
    %622 = vmatprep.subr.mxu0 0.0
    %623 = vmatpush1.xpose.msra.mxu0 0.0
    %624 = vmatprep.subr.mxu0 0.0
    %625 = vmatpush1.xpose.msra.mxu0 0.0
    %626 = vmatprep.subr.mxu0 0.0
    %627 = vmatpush1.xpose.msra.mxu0 0.0
    %628 = vmatprep.subr.mxu0 0.0
    %629 = vmatpush1.xpose.msra.mxu0 0.0
    %630 = vmatprep.subr.mxu0 0.0
    %631 = vmatpush1.xpose.msra.mxu0 0.0
    %632 = vmatprep.subr.mxu0 0.0
    %633 = vmatpush1.xpose.msra.mxu0 0.0
    %634 = vmatprep.mubr.f32.mxu0 0.0
    %635 = vmatmul.mubr.f32.gmra.mrb[0].mxu0 %v566
    %v636 = vpop.f32.mrb[0].mxu0
    %v637 = vadd.f32 0.0, %v636
    %v638 = vpop.f32.mrb[0].mxu0
    %639 = vdwg.mxu0
    %v640 = vmul.f32 %v637, 0.125
    %v641 = vadd.f32 %v640, %v475
    %v642 = vsel %vm477, %v641, -inf
    %643 = vmax.xlane.f32.xlu0 %v642
    %v644 = vpop.xlane.xlu0 %643
    %v645 = vsub.f32 %v641, %v644
    %v646 = vmul.f32 %v645, 1.442695
    %v647 = vpow.pop %v646
    %v648 = vsel %vm477, %v647, 0.0
    %649 = vadd.xlane.f32.xlu0 %v648
    %v650 = vpop.xlane.xlu0 %649
    %v651 = vrcp.pop %v650
    %v652 = vmul.f32 %v647, %v651
    %654 = vrot.lane.b32.xlu0 %v386, 64
    %v655 = vpop.permute.xlu0 %654
    %v658 = vsel %vm477, %v652, 0
    %660 = vmatprep.subr.mxu0 0.0
    %661 = vmatpush1.msra.mxu0 %v655
    %662 = vmatprep.subr.mxu0 0.0
    %663 = vmatpush1.msra.mxu0 0.0
    %664 = vmatprep.subr.mxu0 0.0
    %665 = vmatpush1.msra.mxu0 0.0
    %666 = vmatprep.subr.mxu0 0.0
    %667 = vmatpush1.msra.mxu0 0.0
    %668 = vmatprep.subr.mxu0 0.0
    %669 = vmatpush1.msra.mxu0 0.0
    %670 = vmatprep.subr.mxu0 0.0
    %671 = vmatpush1.msra.mxu0 0.0
    %672 = vmatprep.subr.mxu0 0.0
    %673 = vmatpush1.msra.mxu0 0.0
    %674 = vmatprep.subr.mxu0 0.0
    %675 = vmatpush1.msra.mxu0 0.0
    %676 = vmatprep.subr.mxu0 0.0
    %677 = vmatpush1.msra.mxu0 0.0
    %678 = vmatprep.subr.mxu0 0.0
    %679 = vmatpush1.msra.mxu0 0.0
    %680 = vmatprep.subr.mxu0 0.0
    %681 = vmatpush1.msra.mxu0 0.0
    %682 = vmatprep.subr.mxu0 0.0
    %683 = vmatpush1.msra.mxu0 0.0
    %684 = vmatprep.subr.mxu0 0.0
    %685 = vmatpush1.msra.mxu0 0.0
    %686 = vmatprep.subr.mxu0 0.0
    %687 = vmatpush1.msra.mxu0 0.0
    %688 = vmatprep.subr.mxu0 0.0
    %689 = vmatpush1.msra.mxu0 0.0
    %690 = vmatprep.subr.mxu0 0.0
    %691 = vmatpush1.msra.mxu0 0.0
    %692 = vmatprep.subr.mxu0 0.0
    %693 = vmatpush1.msra.mxu0 0.0
    %694 = vmatprep.subr.mxu0 0.0
    %695 = vmatpush1.msra.mxu0 0.0
    %696 = vmatprep.subr.mxu0 0.0
    %697 = vmatpush1.msra.mxu0 0.0
    %698 = vmatprep.subr.mxu0 0.0
    %699 = vmatpush1.msra.mxu0 0.0
    %700 = vmatprep.subr.mxu0 0.0
    %701 = vmatpush1.msra.mxu0 0.0
    %702 = vmatprep.subr.mxu0 0.0
    %703 = vmatpush1.msra.mxu0 0.0
    %704 = vmatprep.subr.mxu0 0.0
    %705 = vmatpush1.msra.mxu0 0.0
    %706 = vmatprep.subr.mxu0 0.0
    %707 = vmatpush1.msra.mxu0 0.0
    %708 = vmatprep.subr.mxu0 0.0
    %709 = vmatpush1.msra.mxu0 0.0
    %710 = vmatprep.subr.mxu0 0.0
    %711 = vmatpush1.msra.mxu0 0.0
    %712 = vmatprep.subr.mxu0 0.0
    %713 = vmatpush1.msra.mxu0 0.0
    %714 = vmatprep.subr.mxu0 0.0
    %715 = vmatpush1.msra.mxu0 0.0
    %716 = vmatprep.subr.mxu0 0.0
    %717 = vmatpush1.msra.mxu0 0.0
    %718 = vmatprep.subr.mxu0 0.0
    %719 = vmatpush1.msra.mxu0 0.0
    %720 = vmatprep.subr.mxu0 0.0
    %721 = vmatpush1.msra.mxu0 0.0
    %722 = vmatprep.subr.mxu0 0.0
    %723 = vmatpush1.msra.mxu0 0.0
    %724 = vmatprep.mubr.f32.mxu0 0.0
    %725 = vmatmul.mubr.f32.gmra.mrb[0].mxu0 %v658
    %v726 = vpop.f32.mrb[0].mxu0
    %v727 = vadd.f32 0.0, %v726
    %v728 = vpop.f32.mrb[0].mxu0
    %729 = vdwg.mxu0
    %731 = vrot.lane.b32.xlu0 %v727, 64
    %v732 = vpop.permute.xlu0 %731
    %v734 = vsel %vm394, %v559, %v732
    %v736 = vsel %vm394, %v315, 0
    %v739 = vsel %vm394, %v317, 0
    %741 = vmatprep.subr.mxu0 0.0
    %742 = vmatpush1.xpose.msra.mxu0 %v739
    %743 = vmatprep.subr.mxu0 0.0
    %744 = vmatpush1.xpose.msra.mxu0 0.0
    %745 = vmatprep.subr.mxu0 0.0
    %746 = vmatpush1.xpose.msra.mxu0 0.0
    %747 = vmatprep.subr.mxu0 0.0
    %748 = vmatpush1.xpose.msra.mxu0 0.0
    %749 = vmatprep.subr.mxu0 0.0
    %750 = vmatpush1.xpose.msra.mxu0 0.0
    %751 = vmatprep.subr.mxu0 0.0
    %752 = vmatpush1.xpose.msra.mxu0 0.0
    %753 = vmatprep.subr.mxu0 0.0
    %754 = vmatpush1.xpose.msra.mxu0 0.0
    %755 = vmatprep.subr.mxu0 0.0
    %756 = vmatpush1.xpose.msra.mxu0 0.0
    %757 = vmatprep.subr.mxu0 0.0
    %758 = vmatpush1.xpose.msra.mxu0 0.0
    %759 = vmatprep.subr.mxu0 0.0
    %760 = vmatpush1.xpose.msra.mxu0 0.0
    %761 = vmatprep.subr.mxu0 0.0
    %762 = vmatpush1.xpose.msra.mxu0 0.0
    %763 = vmatprep.subr.mxu0 0.0
    %764 = vmatpush1.xpose.msra.mxu0 0.0
    %765 = vmatprep.subr.mxu0 0.0
    %766 = vmatpush1.xpose.msra.mxu0 0.0
    %767 = vmatprep.subr.mxu0 0.0
    %768 = vmatpush1.xpose.msra.mxu0 0.0
    %769 = vmatprep.subr.mxu0 0.0
    %770 = vmatpush1.xpose.msra.mxu0 0.0
    %771 = vmatprep.subr.mxu0 0.0
    %772 = vmatpush1.xpose.msra.mxu0 0.0
    %773 = vmatprep.subr.mxu0 0.0
    %774 = vmatpush1.xpose.msra.mxu0 0.0
    %775 = vmatprep.subr.mxu0 0.0
    %776 = vmatpush1.xpose.msra.mxu0 0.0
    %777 = vmatprep.subr.mxu0 0.0
    %778 = vmatpush1.xpose.msra.mxu0 0.0
    %779 = vmatprep.subr.mxu0 0.0
    %780 = vmatpush1.xpose.msra.mxu0 0.0
    %781 = vmatprep.subr.mxu0 0.0
    %782 = vmatpush1.xpose.msra.mxu0 0.0
    %783 = vmatprep.subr.mxu0 0.0
    %784 = vmatpush1.xpose.msra.mxu0 0.0
    %785 = vmatprep.subr.mxu0 0.0
    %786 = vmatpush1.xpose.msra.mxu0 0.0
    %787 = vmatprep.subr.mxu0 0.0
    %788 = vmatpush1.xpose.msra.mxu0 0.0
    %789 = vmatprep.subr.mxu0 0.0
    %790 = vmatpush1.xpose.msra.mxu0 0.0
    %791 = vmatprep.subr.mxu0 0.0
    %792 = vmatpush1.xpose.msra.mxu0 0.0
    %793 = vmatprep.subr.mxu0 0.0
    %794 = vmatpush1.xpose.msra.mxu0 0.0
    %795 = vmatprep.subr.mxu0 0.0
    %796 = vmatpush1.xpose.msra.mxu0 0.0
    %797 = vmatprep.subr.mxu0 0.0
    %798 = vmatpush1.xpose.msra.mxu0 0.0
    %799 = vmatprep.subr.mxu0 0.0
    %800 = vmatpush1.xpose.msra.mxu0 0.0
    %801 = vmatprep.subr.mxu0 0.0
    %802 = vmatpush1.xpose.msra.mxu0 0.0
    %803 = vmatprep.subr.mxu0 0.0
    %804 = vmatpush1.xpose.msra.mxu0 0.0
    %805 = vmatprep.mubr.f32.mxu0 0.0
    %806 = vmatmul.mubr.f32.gmra.mrb[0].mxu0 %v736
    %v807 = vpop.f32.mrb[0].mxu0
    %v808 = vadd.f32 0.0, %v807
    %v809 = vpop.f32.mrb[0].mxu0
    %810 = vdwg.mxu0
    %v811 = vmul.f32 %v808, 0.125
    %v812 = vlaneseq
    %v813 = vshrl.u32 %v812, 7
    %v814 = vsub.s32 1, %v813
    %v815 = vrot.slane %v176, %v814
    %v816 = vadd.f32 %v811, %v815
    %v817 = vsel %vm477, %v816, -inf
    %818 = vmax.xlane.f32.xlu0 %v817
    %v819 = vpop.xlane.xlu0 %818
    %v820 = vsub.f32 %v816, %v819
    %v821 = vmul.f32 %v820, 1.442695
    %v822 = vpow.pop %v821
    %v823 = vsel %vm477, %v822, 0.0
    %824 = vadd.xlane.f32.xlu0 %v823
    %v825 = vpop.xlane.xlu0 %824
    %v826 = vrcp.pop %v825
    %v827 = vmul.f32 %v822, %v826
    %v829 = vsel %vm477, %v827, 0
    %831 = vmatprep.subr.mxu0 0.0
    %832 = vmatpush1.msra.mxu0 %v391
    %833 = vmatprep.subr.mxu0 0.0
    %834 = vmatpush1.msra.mxu0 0.0
    %835 = vmatprep.subr.mxu0 0.0
    %836 = vmatpush1.msra.mxu0 0.0
    %837 = vmatprep.subr.mxu0 0.0
    %838 = vmatpush1.msra.mxu0 0.0
    %839 = vmatprep.subr.mxu0 0.0
    %840 = vmatpush1.msra.mxu0 0.0
    %841 = vmatprep.subr.mxu0 0.0
    %842 = vmatpush1.msra.mxu0 0.0
    %843 = vmatprep.subr.mxu0 0.0
    %844 = vmatpush1.msra.mxu0 0.0
    %845 = vmatprep.subr.mxu0 0.0
    %846 = vmatpush1.msra.mxu0 0.0
    %847 = vmatprep.subr.mxu0 0.0
    %848 = vmatpush1.msra.mxu0 0.0
    %849 = vmatprep.subr.mxu0 0.0
    %850 = vmatpush1.msra.mxu0 0.0
    %851 = vmatprep.subr.mxu0 0.0
    %852 = vmatpush1.msra.mxu0 0.0
    %853 = vmatprep.subr.mxu0 0.0
    %854 = vmatpush1.msra.mxu0 0.0
    %855 = vmatprep.subr.mxu0 0.0
    %856 = vmatpush1.msra.mxu0 0.0
    %857 = vmatprep.subr.mxu0 0.0
    %858 = vmatpush1.msra.mxu0 0.0
    %859 = vmatprep.subr.mxu0 0.0
    %860 = vmatpush1.msra.mxu0 0.0
    %861 = vmatprep.subr.mxu0 0.0
    %862 = vmatpush1.msra.mxu0 0.0
    %863 = vmatprep.subr.mxu0 0.0
    %864 = vmatpush1.msra.mxu0 0.0
    %865 = vmatprep.subr.mxu0 0.0
    %866 = vmatpush1.msra.mxu0 0.0
    %867 = vmatprep.subr.mxu0 0.0
    %868 = vmatpush1.msra.mxu0 0.0
    %869 = vmatprep.subr.mxu0 0.0
    %870 = vmatpush1.msra.mxu0 0.0
    %871 = vmatprep.subr.mxu0 0.0
    %872 = vmatpush1.msra.mxu0 0.0
    %873 = vmatprep.subr.mxu0 0.0
    %874 = vmatpush1.msra.mxu0 0.0
    %875 = vmatprep.subr.mxu0 0.0
    %876 = vmatpush1.msra.mxu0 0.0
    %877 = vmatprep.subr.mxu0 0.0
    %878 = vmatpush1.msra.mxu0 0.0
    %879 = vmatprep.subr.mxu0 0.0
    %880 = vmatpush1.msra.mxu0 0.0
    %881 = vmatprep.subr.mxu0 0.0
    %882 = vmatpush1.msra.mxu0 0.0
    %883 = vmatprep.subr.mxu0 0.0
    %884 = vmatpush1.msra.mxu0 0.0
    %885 = vmatprep.subr.mxu0 0.0
    %886 = vmatpush1.msra.mxu0 0.0
    %887 = vmatprep.subr.mxu0 0.0
    %888 = vmatpush1.msra.mxu0 0.0
    %889 = vmatprep.subr.mxu0 0.0
    %890 = vmatpush1.msra.mxu0 0.0
    %891 = vmatprep.subr.mxu0 0.0
    %892 = vmatpush1.msra.mxu0 0.0
    %893 = vmatprep.subr.mxu0 0.0
    %894 = vmatpush1.msra.mxu0 0.0
    %895 = vmatprep.mubr.f32.mxu0 0.0
    %896 = vmatmul.mubr.f32.gmra.mrb[0].mxu0 %v829
    %v897 = vpop.f32.mrb[0].mxu0
    %v898 = vadd.f32 0.0, %v897
    %v899 = vpop.f32.mrb[0].mxu0
    %900 = vdwg.mxu0
    %901 = vrot.lane.b32.xlu0 %v315, 64
    %v902 = vpop.permute.xlu0 %901
    %903 = vrot.lane.b32.xlu0 %v317, 64
    %v904 = vpop.permute.xlu0 %903
    %v905 = vsel %vm394, %v902, 0
    %v907 = vsel %vm394, %v904, 0
    %909 = vmatprep.subr.mxu0 0.0
    %910 = vmatpush1.xpose.msra.mxu0 %v907
    %911 = vmatprep.subr.mxu0 0.0
    %912 = vmatpush1.xpose.msra.mxu0 0.0
    %913 = vmatprep.subr.mxu0 0.0
    %914 = vmatpush1.xpose.msra.mxu0 0.0
    %915 = vmatprep.subr.mxu0 0.0
    %916 = vmatpush1.xpose.msra.mxu0 0.0
    %917 = vmatprep.subr.mxu0 0.0
    %918 = vmatpush1.xpose.msra.mxu0 0.0
    %919 = vmatprep.subr.mxu0 0.0
    %920 = vmatpush1.xpose.msra.mxu0 0.0
    %921 = vmatprep.subr.mxu0 0.0
    %922 = vmatpush1.xpose.msra.mxu0 0.0
    %923 = vmatprep.subr.mxu0 0.0
    %924 = vmatpush1.xpose.msra.mxu0 0.0
    %925 = vmatprep.subr.mxu0 0.0
    %926 = vmatpush1.xpose.msra.mxu0 0.0
    %927 = vmatprep.subr.mxu0 0.0
    %928 = vmatpush1.xpose.msra.mxu0 0.0
    %929 = vmatprep.subr.mxu0 0.0
    %930 = vmatpush1.xpose.msra.mxu0 0.0
    %931 = vmatprep.subr.mxu0 0.0
    %932 = vmatpush1.xpose.msra.mxu0 0.0
    %933 = vmatprep.subr.mxu0 0.0
    %934 = vmatpush1.xpose.msra.mxu0 0.0
    %935 = vmatprep.subr.mxu0 0.0
    %936 = vmatpush1.xpose.msra.mxu0 0.0
    %937 = vmatprep.subr.mxu0 0.0
    %938 = vmatpush1.xpose.msra.mxu0 0.0
    %939 = vmatprep.subr.mxu0 0.0
    %940 = vmatpush1.xpose.msra.mxu0 0.0
    %941 = vmatprep.subr.mxu0 0.0
    %942 = vmatpush1.xpose.msra.mxu0 0.0
    %943 = vmatprep.subr.mxu0 0.0
    %944 = vmatpush1.xpose.msra.mxu0 0.0
    %945 = vmatprep.subr.mxu0 0.0
    %946 = vmatpush1.xpose.msra.mxu0 0.0
    %947 = vmatprep.subr.mxu0 0.0
    %948 = vmatpush1.xpose.msra.mxu0 0.0
    %949 = vmatprep.subr.mxu0 0.0
    %950 = vmatpush1.xpose.msra.mxu0 0.0
    %951 = vmatprep.subr.mxu0 0.0
    %952 = vmatpush1.xpose.msra.mxu0 0.0
    %953 = vmatprep.subr.mxu0 0.0
    %954 = vmatpush1.xpose.msra.mxu0 0.0
    %955 = vmatprep.subr.mxu0 0.0
    %956 = vmatpush1.xpose.msra.mxu0 0.0
    %957 = vmatprep.subr.mxu0 0.0
    %958 = vmatpush1.xpose.msra.mxu0 0.0
    %959 = vmatprep.subr.mxu0 0.0
    %960 = vmatpush1.xpose.msra.mxu0 0.0
    %961 = vmatprep.subr.mxu0 0.0
    %962 = vmatpush1.xpose.msra.mxu0 0.0
    %963 = vmatprep.subr.mxu0 0.0
    %964 = vmatpush1.xpose.msra.mxu0 0.0
    %965 = vmatprep.subr.mxu0 0.0
    %966 = vmatpush1.xpose.msra.mxu0 0.0
    %967 = vmatprep.subr.mxu0 0.0
    %968 = vmatpush1.xpose.msra.mxu0 0.0
    %969 = vmatprep.subr.mxu0 0.0
    %970 = vmatpush1.xpose.msra.mxu0 0.0
    %971 = vmatprep.subr.mxu0 0.0
    %972 = vmatpush1.xpose.msra.mxu0 0.0
    %973 = vmatprep.mubr.f32.mxu0 0.0
    %974 = vmatmul.mubr.f32.gmra.mrb[0].mxu0 %v905
    %v975 = vpop.f32.mrb[0].mxu0
    %v976 = vadd.f32 0.0, %v975
    %v977 = vpop.f32.mrb[0].mxu0
    %978 = vdwg.mxu0
    %v979 = vmul.f32 %v976, 0.125
    %v980 = vadd.f32 %v979, %v815
    %v981 = vsel %vm477, %v980, -inf
    %982 = vmax.xlane.f32.xlu0 %v981
    %v983 = vpop.xlane.xlu0 %982
    %v984 = vsub.f32 %v980, %v983
    %v985 = vmul.f32 %v984, 1.442695
    %v986 = vpow.pop %v985
    %v987 = vsel %vm477, %v986, 0.0
    %988 = vadd.xlane.f32.xlu0 %v987
    %v989 = vpop.xlane.xlu0 %988
    %v990 = vrcp.pop %v989
    %v991 = vmul.f32 %v986, %v990
    %993 = vrot.lane.b32.xlu0 %v391, 64
    %v994 = vpop.permute.xlu0 %993
    %v997 = vsel %vm477, %v991, 0
    %999 = vmatprep.subr.mxu0 0.0
    %1000 = vmatpush1.msra.mxu0 %v994
    %1001 = vmatprep.subr.mxu0 0.0
    %1002 = vmatpush1.msra.mxu0 0.0
    %1003 = vmatprep.subr.mxu0 0.0
    %1004 = vmatpush1.msra.mxu0 0.0
    %1005 = vmatprep.subr.mxu0 0.0
    %1006 = vmatpush1.msra.mxu0 0.0
    %1007 = vmatprep.subr.mxu0 0.0
    %1008 = vmatpush1.msra.mxu0 0.0
    %1009 = vmatprep.subr.mxu0 0.0
    %1010 = vmatpush1.msra.mxu0 0.0
    %1011 = vmatprep.subr.mxu0 0.0
    %1012 = vmatpush1.msra.mxu0 0.0
    %1013 = vmatprep.subr.mxu0 0.0
    %1014 = vmatpush1.msra.mxu0 0.0
    %1015 = vmatprep.subr.mxu0 0.0
    %1016 = vmatpush1.msra.mxu0 0.0
    %1017 = vmatprep.subr.mxu0 0.0
    %1018 = vmatpush1.msra.mxu0 0.0
    %1019 = vmatprep.subr.mxu0 0.0
    %1020 = vmatpush1.msra.mxu0 0.0
    %1021 = vmatprep.subr.mxu0 0.0
    %1022 = vmatpush1.msra.mxu0 0.0
    %1023 = vmatprep.subr.mxu0 0.0
    %1024 = vmatpush1.msra.mxu0 0.0
    %1025 = vmatprep.subr.mxu0 0.0
    %1026 = vmatpush1.msra.mxu0 0.0
    %1027 = vmatprep.subr.mxu0 0.0
    %1028 = vmatpush1.msra.mxu0 0.0
    %1029 = vmatprep.subr.mxu0 0.0
    %1030 = vmatpush1.msra.mxu0 0.0
    %1031 = vmatprep.subr.mxu0 0.0
    %1032 = vmatpush1.msra.mxu0 0.0
    %1033 = vmatprep.subr.mxu0 0.0
    %1034 = vmatpush1.msra.mxu0 0.0
    %1035 = vmatprep.subr.mxu0 0.0
    %1036 = vmatpush1.msra.mxu0 0.0
    %1037 = vmatprep.subr.mxu0 0.0
    %1038 = vmatpush1.msra.mxu0 0.0
    %1039 = vmatprep.subr.mxu0 0.0
    %1040 = vmatpush1.msra.mxu0 0.0
    %1041 = vmatprep.subr.mxu0 0.0
    %1042 = vmatpush1.msra.mxu0 0.0
    %1043 = vmatprep.subr.mxu0 0.0
    %1044 = vmatpush1.msra.mxu0 0.0
    %1045 = vmatprep.subr.mxu0 0.0
    %1046 = vmatpush1.msra.mxu0 0.0
    %1047 = vmatprep.subr.mxu0 0.0
    %1048 = vmatpush1.msra.mxu0 0.0
    %1049 = vmatprep.subr.mxu0 0.0
    %1050 = vmatpush1.msra.mxu0 0.0
    %1051 = vmatprep.subr.mxu0 0.0
    %1052 = vmatpush1.msra.mxu0 0.0
    %1053 = vmatprep.subr.mxu0 0.0
    %1054 = vmatpush1.msra.mxu0 0.0
    %1055 = vmatprep.subr.mxu0 0.0
    %1056 = vmatpush1.msra.mxu0 0.0
    %1057 = vmatprep.subr.mxu0 0.0
    %1058 = vmatpush1.msra.mxu0 0.0
    %1059 = vmatprep.subr.mxu0 0.0
    %1060 = vmatpush1.msra.mxu0 0.0
    %1061 = vmatprep.subr.mxu0 0.0
    %1062 = vmatpush1.msra.mxu0 0.0
    %1063 = vmatprep.mubr.f32.mxu0 0.0
    %1064 = vmatmul.mubr.f32.gmra.mrb[0].mxu0 %v997
    %v1065 = vpop.f32.mrb[0].mxu0
    %v1066 = vadd.f32 0.0, %v1065
    %v1067 = vpop.f32.mrb[0].mxu0
    %1068 = vdwg.mxu0
    %1070 = vrot.lane.b32.xlu0 %v1066, 64
    %v1071 = vpop.permute.xlu0 %1070
    %v1073 = vsel %vm394, %v898, %v1071
    %v1074 = vld [vmem:[#allocation4] sm:$0xff]
    %v1075 = vld [vmem:[#allocation4 + $0x8] sm:$0xff]
    %v1076 = vld [vmem:[#allocation4 + $0x10] sm:$0xff]
    %v1077 = vld [vmem:[#allocation4 + $0x18] sm:$0xff]
    %v1078 = vld [vmem:[#allocation4 + $0x20] sm:$0xff]
    %v1079 = vld [vmem:[#allocation4 + $0x28] sm:$0xff]
    %v1080 = vld [vmem:[#allocation4 + $0x30] sm:$0xff]
    %v1081 = vld [vmem:[#allocation4 + $0x38] sm:$0xff]
    %v1082 = vld [vmem:[#allocation4 + $0x40] sm:$0xff]
    %v1083 = vld [vmem:[#allocation4 + $0x48] sm:$0xff]
    %v1084 = vld [vmem:[#allocation4 + $0x50] sm:$0xff]
    %v1085 = vld [vmem:[#allocation4 + $0x58] sm:$0xff]
    %v1086 = vld [vmem:[#allocation4 + $0x60] sm:$0xff]
    %v1087 = vld [vmem:[#allocation4 + $0x68] sm:$0xff]
    %v1088 = vld [vmem:[#allocation4 + $0x70] sm:$0xff]
    %v1089 = vld [vmem:[#allocation4 + $0x78] sm:$0xff]
    %v1090 = vld [vmem:[%s7] sm:$0x1]
    %v1092 = vlaneseq
    %v1093 = vshrl.u32 %v1092, 7
    %v1094 = vsub.s32 0, %v1093
    %v1095 = vrot.slane %v1090, %v1094
    %1097 = vmatprep.subr.mxu0 0.0
    %1098 = vmatpush1.msra.mxu0 %v1074
    %1099 = vmatprep.subr.mxu0 0.0
    %1100 = vmatpush1.msra.mxu0 %v1075
    %1101 = vmatprep.subr.mxu0 0.0
    %1102 = vmatpush1.msra.mxu0 %v1076
    %1103 = vmatprep.subr.mxu0 0.0
    %1104 = vmatpush1.msra.mxu0 %v1077
    %1105 = vmatprep.subr.mxu0 0.0
    %1106 = vmatpush1.msra.mxu0 %v1078
    %1107 = vmatprep.subr.mxu0 0.0
    %1108 = vmatpush1.msra.mxu0 %v1079
    %1109 = vmatprep.subr.mxu0 0.0
    %1110 = vmatpush1.msra.mxu0 %v1080
    %1111 = vmatprep.subr.mxu0 0.0
    %1112 = vmatpush1.msra.mxu0 %v1081
    %1113 = vmatprep.subr.mxu0 0.0
    %1114 = vmatpush1.msra.mxu0 %v1082
    %1115 = vmatprep.subr.mxu0 0.0
    %1116 = vmatpush1.msra.mxu0 %v1083
    %1117 = vmatprep.subr.mxu0 0.0
    %1118 = vmatpush1.msra.mxu0 %v1084
    %1119 = vmatprep.subr.mxu0 0.0
    %1120 = vmatpush1.msra.mxu0 %v1085
    %1121 = vmatprep.subr.mxu0 0.0
    %1122 = vmatpush1.msra.mxu0 %v1086
    %1123 = vmatprep.subr.mxu0 0.0
    %1124 = vmatpush1.msra.mxu0 %v1087
    %1125 = vmatprep.subr.mxu0 0.0
    %1126 = vmatpush1.msra.mxu0 %v1088
    %1127 = vmatprep.subr.mxu0 0.0
    %1128 = vmatpush1.msra.mxu0 %v1089
    %1129 = vmatprep.subr.mxu0 0.0
    %1130 = vmatpush1.msra.mxu0 0.0
    %1131 = vmatprep.subr.mxu0 0.0
    %1132 = vmatpush1.msra.mxu0 0.0
    %1133 = vmatprep.subr.mxu0 0.0
    %1134 = vmatpush1.msra.mxu0 0.0
    %1135 = vmatprep.subr.mxu0 0.0
    %1136 = vmatpush1.msra.mxu0 0.0
    %1137 = vmatprep.subr.mxu0 0.0
    %1138 = vmatpush1.msra.mxu0 0.0
    %1139 = vmatprep.subr.mxu0 0.0
    %1140 = vmatpush1.msra.mxu0 0.0
    %1141 = vmatprep.subr.mxu0 0.0
    %1142 = vmatpush1.msra.mxu0 0.0
    %1143 = vmatprep.subr.mxu0 0.0
    %1144 = vmatpush1.msra.mxu0 0.0
    %1145 = vmatprep.subr.mxu0 0.0
    %1146 = vmatpush1.msra.mxu0 0.0
    %1147 = vmatprep.subr.mxu0 0.0
    %1148 = vmatpush1.msra.mxu0 0.0
    %1149 = vmatprep.subr.mxu0 0.0
    %1150 = vmatpush1.msra.mxu0 0.0
    %1151 = vmatprep.subr.mxu0 0.0
    %1152 = vmatpush1.msra.mxu0 0.0
    %1153 = vmatprep.subr.mxu0 0.0
    %1154 = vmatpush1.msra.mxu0 0.0
    %1155 = vmatprep.subr.mxu0 0.0
    %1156 = vmatpush1.msra.mxu0 0.0
    %1157 = vmatprep.subr.mxu0 0.0
    %1158 = vmatpush1.msra.mxu0 0.0
    %1159 = vmatprep.subr.mxu0 0.0
    %1160 = vmatpush1.msra.mxu0 0.0
    %1161 = vmatprep.mubr.f32.mxu0 0.0
    %1162 = vmatmul.mubr.f32.gmra.mrb[0].mxu0 %v734
    %v1163 = vpop.f32.mrb[0].mxu0
    %v1164 = vadd.f32 %v1095, %v1163
    %v1165 = vpop.f32.mrb[0].mxu0
    %1166 = vmatprep.mubr.f32.mxu0 0.0
    %1167 = vmatmul.mubr.f32.gmra.mrb[0].mxu0 %v1073
    %v1168 = vpop.f32.mrb[0].mxu0
    %v1169 = vadd.f32 %v1095, %v1168
    %v1170 = vpop.f32.mrb[0].mxu0
    %1171 = vdwg.mxu0
    %v1172 = vadd.f32 %v174, %v1164
    %v1173 = vadd.f32 %v175, %v1169
    %v1174 = vld [vmem:[%s8] sm:$0x1]
    %v1175 = vld [vmem:[%s9] sm:$0x1]
    %1176 = vadd.xlane.f32.xlu0 %v1172
    %v1177 = vpop.xlane.xlu0 %1176
    %1178 = vadd.xlane.f32.xlu0 %v1173
    %v1179 = vpop.xlane.xlu0 %1178
    %v1180 = vmul.f32 %v1177, %v141
    %v1181 = vmul.f32 %v1179, %v141
    %v1182 = vsub.f32 %v1172, %v1180
    %v1183 = vsub.f32 %v1173, %v1181
    %v1184 = vmul.f32 %v1182, %v1182
    %v1185 = vmul.f32 %v1183, %v1183
    %1186 = vadd.xlane.f32.xlu0 %v1184
    %v1187 = vpop.xlane.xlu0 %1186
    %1188 = vadd.xlane.f32.xlu0 %v1185
    %v1189 = vpop.xlane.xlu0 %1188
    %v1190 = vmul.f32 %v1187, %v141
    %v1191 = vmul.f32 %v1189, %v141
    %v1192 = vadd.f32 %v1190, 1e-12
    %v1193 = vadd.f32 %v1191, 1e-12
    %v1194 = vrsqrt.pop %v1192
    %v1195 = vrsqrt.pop %v1193
    %v1196 = vmul.f32 %v1182, %v1194
    %v1197 = vmul.f32 %v1183, %v1195
    %v1199 = vlaneseq
    %v1200 = vshrl.u32 %v1199, 7
    %v1201 = vsub.s32 0, %v1200
    %v1202 = vrot.slane %v1174, %v1201
    %v1204 = vmul.f32 %v1196, %v1202
    %v1205 = vmul.f32 %v1197, %v1202
    %v1207 = vlaneseq
    %v1208 = vshrl.u32 %v1207, 7
    %v1209 = vsub.s32 0, %v1208
    %v1210 = vrot.slane %v1175, %v1209
    %v1212 = vadd.f32 %v1204, %v1210
    %v1213 = vadd.f32 %v1205, %v1210
    %v1214 = vld [vmem:[#allocation6] sm:$0xff]
    %v1215 = vld [vmem:[#allocation6 + $0x8] sm:$0xff]
    %v1216 = vld [vmem:[#allocation6 + $0x10] sm:$0xff]
    %v1217 = vld [vmem:[#allocation6 + $0x18] sm:$0xff]
    %v1218 = vld [vmem:[#allocation6 + $0x20] sm:$0xff]
    %v1219 = vld [vmem:[#allocation6 + $0x28] sm:$0xff]
    %v1220 = vld [vmem:[#allocation6 + $0x30] sm:$0xff]
    %v1221 = vld [vmem:[#allocation6 + $0x38] sm:$0xff]
    %v1222 = vld [vmem:[#allocation6 + $0x40] sm:$0xff]
    %v1223 = vld [vmem:[#allocation6 + $0x48] sm:$0xff]
    %v1224 = vld [vmem:[#allocation6 + $0x50] sm:$0xff]
    %v1225 = vld [vmem:[#allocation6 + $0x58] sm:$0xff]
    %v1226 = vld [vmem:[#allocation6 + $0x60] sm:$0xff]
    %v1227 = vld [vmem:[#allocation6 + $0x68] sm:$0xff]
    %v1228 = vld [vmem:[#allocation6 + $0x70] sm:$0xff]
    %v1229 = vld [vmem:[#allocation6 + $0x78] sm:$0xff]
    %v1230 = vld [vmem:[#allocation6 + $0x80] sm:$0xff]
    %v1231 = vld [vmem:[#allocation6 + $0x88] sm:$0xff]
    %v1232 = vld [vmem:[#allocation6 + $0x90] sm:$0xff]
    %v1233 = vld [vmem:[#allocation6 + $0x98] sm:$0xff]
    %v1234 = vld [vmem:[#allocation6 + $0xa0] sm:$0xff]
    %v1235 = vld [vmem:[#allocation6 + $0xa8] sm:$0xff]
    %v1236 = vld [vmem:[#allocation6 + $0xb0] sm:$0xff]
    %v1237 = vld [vmem:[#allocation6 + $0xb8] sm:$0xff]
    %v1238 = vld [vmem:[#allocation6 + $0xc0] sm:$0xff]
    %v1239 = vld [vmem:[#allocation6 + $0xc8] sm:$0xff]
    %v1240 = vld [vmem:[#allocation6 + $0xd0] sm:$0xff]
    %v1241 = vld [vmem:[#allocation6 + $0xd8] sm:$0xff]
    %v1242 = vld [vmem:[#allocation6 + $0xe0] sm:$0xff]
    %v1243 = vld [vmem:[#allocation6 + $0xe8] sm:$0xff]
    %v1244 = vld [vmem:[#allocation6 + $0xf0] sm:$0xff]
    %v1245 = vld [vmem:[#allocation6 + $0xf8] sm:$0xff]
    %v1246 = vld [vmem:[%s11] sm:$0x3]
    %v1248 = vlaneseq
    %v1249 = vshrl.u32 %v1248, 7
    %v1250 = vsub.s32 0, %v1249
    %v1251 = vrot.slane %v1246, %v1250
    %v1252 = vlaneseq
    %v1253 = vshrl.u32 %v1252, 7
    %v1254 = vsub.s32 1, %v1253
    %v1255 = vrot.slane %v1246, %v1254
    %1258 = vmatprep.subr.mxu0 %v1215
    %1259 = vmatpush1.msra.mxu0 %v1214
    %1260 = vmatprep.subr.mxu0 %v1217
    %1261 = vmatpush1.msra.mxu0 %v1216
    %1262 = vmatprep.subr.mxu0 %v1219
    %1263 = vmatpush1.msra.mxu0 %v1218
    %1264 = vmatprep.subr.mxu0 %v1221
    %1265 = vmatpush1.msra.mxu0 %v1220
    %1266 = vmatprep.subr.mxu0 %v1223
    %1267 = vmatpush1.msra.mxu0 %v1222
    %1268 = vmatprep.subr.mxu0 %v1225
    %1269 = vmatpush1.msra.mxu0 %v1224
    %1270 = vmatprep.subr.mxu0 %v1227
    %1271 = vmatpush1.msra.mxu0 %v1226
    %1272 = vmatprep.subr.mxu0 %v1229
    %1273 = vmatpush1.msra.mxu0 %v1228
    %1274 = vmatprep.subr.mxu0 %v1231
    %1275 = vmatpush1.msra.mxu0 %v1230
    %1276 = vmatprep.subr.mxu0 %v1233
    %1277 = vmatpush1.msra.mxu0 %v1232
    %1278 = vmatprep.subr.mxu0 %v1235
    %1279 = vmatpush1.msra.mxu0 %v1234
    %1280 = vmatprep.subr.mxu0 %v1237
    %1281 = vmatpush1.msra.mxu0 %v1236
    %1282 = vmatprep.subr.mxu0 %v1239
    %1283 = vmatpush1.msra.mxu0 %v1238
    %1284 = vmatprep.subr.mxu0 %v1241
    %1285 = vmatpush1.msra.mxu0 %v1240
    %1286 = vmatprep.subr.mxu0 %v1243
    %1287 = vmatpush1.msra.mxu0 %v1242
    %1288 = vmatprep.subr.mxu0 %v1245
    %1289 = vmatpush1.msra.mxu0 %v1244
    %1290 = vmatprep.subr.mxu0 0.0
    %1291 = vmatpush1.msra.mxu0 0.0
    %1292 = vmatprep.subr.mxu0 0.0
    %1293 = vmatpush1.msra.mxu0 0.0
    %1294 = vmatprep.subr.mxu0 0.0
    %1295 = vmatpush1.msra.mxu0 0.0
    %1296 = vmatprep.subr.mxu0 0.0
    %1297 = vmatpush1.msra.mxu0 0.0
    %1298 = vmatprep.subr.mxu0 0.0
    %1299 = vmatpush1.msra.mxu0 0.0
    %1300 = vmatprep.subr.mxu0 0.0
    %1301 = vmatpush1.msra.mxu0 0.0
    %1302 = vmatprep.subr.mxu0 0.0
    %1303 = vmatpush1.msra.mxu0 0.0
    %1304 = vmatprep.subr.mxu0 0.0
    %1305 = vmatpush1.msra.mxu0 0.0
    %1306 = vmatprep.subr.mxu0 0.0
    %1307 = vmatpush1.msra.mxu0 0.0
    %1308 = vmatprep.subr.mxu0 0.0
    %1309 = vmatpush1.msra.mxu0 0.0
    %1310 = vmatprep.subr.mxu0 0.0
    %1311 = vmatpush1.msra.mxu0 0.0
    %1312 = vmatprep.subr.mxu0 0.0
    %1313 = vmatpush1.msra.mxu0 0.0
    %1314 = vmatprep.subr.mxu0 0.0
    %1315 = vmatpush1.msra.mxu0 0.0
    %1316 = vmatprep.subr.mxu0 0.0
    %1317 = vmatpush1.msra.mxu0 0.0
    %1318 = vmatprep.subr.mxu0 0.0
    %1319 = vmatpush1.msra.mxu0 0.0
    %1320 = vmatprep.subr.mxu0 0.0
    %1321 = vmatpush1.msra.mxu0 0.0
    %1322 = vmatprep.mubr.f32.mxu0 0.0
    %1323 = vmatmul.mubr.f32.gmra.mrb[0].mxu0 %v1212
    %v1324 = vpop.f32.mrb[0].mxu0
    %v1325 = vadd.f32 %v1251, %v1324
    %v1326 = vpop.f32.mrb[0].mxu0
    %v1327 = vadd.f32 %v1255, %v1326
    %1328 = vmatprep.mubr.f32.mxu0 0.0
    %1329 = vmatmul.mubr.f32.gmra.mrb[0].mxu0 %v1213
    %v1330 = vpop.f32.mrb[0].mxu0
    %v1331 = vadd.f32 %v1251, %v1330
    %v1332 = vpop.f32.mrb[0].mxu0
    %v1333 = vadd.f32 %v1255, %v1332
    %1334 = vdwg.mxu0
    %v1335 = vmul.f32 %v1325, %v1325
    %v1336 = vmul.f32 %v1327, %v1327
    %v1337 = vmul.f32 %v1331, %v1331
    %v1338 = vmul.f32 %v1333, %v1333
    %v1339 = vmul.f32 %v1325, %v1335
    %v1340 = vmul.f32 %v1327, %v1336
    %v1341 = vmul.f32 %v1331, %v1337
    %v1342 = vmul.f32 %v1333, %v1338
    %v1343 = vmul.f32 %v1339, 0.044715
    %v1344 = vmul.f32 %v1340, 0.044715
    %v1345 = vmul.f32 %v1341, 0.044715
    %v1346 = vmul.f32 %v1342, 0.044715
    %v1347 = vadd.f32 %v1325, %v1343
    %v1348 = vadd.f32 %v1327, %v1344
    %v1349 = vadd.f32 %v1331, %v1345
    %v1350 = vadd.f32 %v1333, %v1346
    %v1351 = vmul.f32 %v1347, 0.7978846
    %v1352 = vmul.f32 %v1348, 0.7978846
    %v1353 = vmul.f32 %v1349, 0.7978846
    %v1354 = vmul.f32 %v1350, 0.7978846
    %v1355 = vtanh.pop %v1351
    %v1356 = vtanh.pop %v1352
    %v1357 = vtanh.pop %v1353
    %v1358 = vtanh.pop %v1354
    %v1359 = vadd.f32 %v1355, 1.0
    %v1360 = vadd.f32 %v1356, 1.0
    %v1361 = vadd.f32 %v1357, 1.0
    %v1362 = vadd.f32 %v1358, 1.0
    %v1363 = vmul.f32 %v1359, 0.5
    %v1364 = vmul.f32 %v1360, 0.5
    %v1365 = vmul.f32 %v1361, 0.5
    %v1366 = vmul.f32 %v1362, 0.5
    %v1367 = vmul.f32 %v1325, %v1363
    %v1368 = vmul.f32 %v1327, %v1364
    %v1369 = vmul.f32 %v1331, %v1365
    %v1370 = vmul.f32 %v1333, %v1366
    %v1371 = vld [vmem:[#allocation7] sm:$0xff]
    %v1372 = vld [vmem:[#allocation7 + $0x8] sm:$0xff]
    %v1373 = vld [vmem:[#allocation7 + $0x10] sm:$0xff]
    %v1374 = vld [vmem:[#allocation7 + $0x18] sm:$0xff]
    %v1375 = vld [vmem:[#allocation7 + $0x20] sm:$0xff]
    %v1376 = vld [vmem:[#allocation7 + $0x28] sm:$0xff]
    %v1377 = vld [vmem:[#allocation7 + $0x30] sm:$0xff]
    %v1378 = vld [vmem:[#allocation7 + $0x38] sm:$0xff]
    %v1379 = vld [vmem:[#allocation7 + $0x40] sm:$0xff]
    %v1380 = vld [vmem:[#allocation7 + $0x48] sm:$0xff]
    %v1381 = vld [vmem:[#allocation7 + $0x50] sm:$0xff]
    %v1382 = vld [vmem:[#allocation7 + $0x58] sm:$0xff]
    %v1383 = vld [vmem:[#allocation7 + $0x60] sm:$0xff]
    %v1384 = vld [vmem:[#allocation7 + $0x68] sm:$0xff]
    %v1385 = vld [vmem:[#allocation7 + $0x70] sm:$0xff]
    %v1386 = vld [vmem:[#allocation7 + $0x78] sm:$0xff]
    %v1387 = vld [vmem:[#allocation7 + $0x80] sm:$0xff]
    %v1388 = vld [vmem:[#allocation7 + $0x88] sm:$0xff]
    %v1389 = vld [vmem:[#allocation7 + $0x90] sm:$0xff]
    %v1390 = vld [vmem:[#allocation7 + $0x98] sm:$0xff]
    %v1391 = vld [vmem:[#allocation7 + $0xa0] sm:$0xff]
    %v1392 = vld [vmem:[#allocation7 + $0xa8] sm:$0xff]
    %v1393 = vld [vmem:[#allocation7 + $0xb0] sm:$0xff]
    %v1394 = vld [vmem:[#allocation7 + $0xb8] sm:$0xff]
    %v1395 = vld [vmem:[#allocation7 + $0xc0] sm:$0xff]
    %v1396 = vld [vmem:[#allocation7 + $0xc8] sm:$0xff]
    %v1397 = vld [vmem:[#allocation7 + $0xd0] sm:$0xff]
    %v1398 = vld [vmem:[#allocation7 + $0xd8] sm:$0xff]
    %v1399 = vld [vmem:[#allocation7 + $0xe0] sm:$0xff]
    %v1400 = vld [vmem:[#allocation7 + $0xe8] sm:$0xff]
    %v1401 = vld [vmem:[#allocation7 + $0xf0] sm:$0xff]
    %v1402 = vld [vmem:[#allocation7 + $0xf8] sm:$0xff]
    %v1403 = vld [vmem:[%s13] sm:$0x1]
    %v1405 = vlaneseq
    %v1406 = vshrl.u32 %v1405, 7
    %v1407 = vsub.s32 0, %v1406
    %v1408 = vrot.slane %v1403, %v1407
    %1410 = vmatprep.subr.mxu0 0.0
    %1411 = vmatpush1.msra.mxu0 %v1371
    %1412 = vmatprep.subr.mxu0 0.0
    %1413 = vmatpush1.msra.mxu0 %v1372
    %1414 = vmatprep.subr.mxu0 0.0
    %1415 = vmatpush1.msra.mxu0 %v1373
    %1416 = vmatprep.subr.mxu0 0.0
    %1417 = vmatpush1.msra.mxu0 %v1374
    %1418 = vmatprep.subr.mxu0 0.0
    %1419 = vmatpush1.msra.mxu0 %v1375
    %1420 = vmatprep.subr.mxu0 0.0
    %1421 = vmatpush1.msra.mxu0 %v1376
    %1422 = vmatprep.subr.mxu0 0.0
    %1423 = vmatpush1.msra.mxu0 %v1377
    %1424 = vmatprep.subr.mxu0 0.0
    %1425 = vmatpush1.msra.mxu0 %v1378
    %1426 = vmatprep.subr.mxu0 0.0
    %1427 = vmatpush1.msra.mxu0 %v1379
    %1428 = vmatprep.subr.mxu0 0.0
    %1429 = vmatpush1.msra.mxu0 %v1380
    %1430 = vmatprep.subr.mxu0 0.0
    %1431 = vmatpush1.msra.mxu0 %v1381
    %1432 = vmatprep.subr.mxu0 0.0
    %1433 = vmatpush1.msra.mxu0 %v1382
    %1434 = vmatprep.subr.mxu0 0.0
    %1435 = vmatpush1.msra.mxu0 %v1383
    %1436 = vmatprep.subr.mxu0 0.0
    %1437 = vmatpush1.msra.mxu0 %v1384
    %1438 = vmatprep.subr.mxu0 0.0
    %1439 = vmatpush1.msra.mxu0 %v1385
    %1440 = vmatprep.subr.mxu0 0.0
    %1441 = vmatpush1.msra.mxu0 %v1386
    %1442 = vmatprep.subr.mxu0 0.0
    %1443 = vmatpush1.msra.mxu0 %v1387
    %1444 = vmatprep.subr.mxu0 0.0
    %1445 = vmatpush1.msra.mxu0 %v1388
    %1446 = vmatprep.subr.mxu0 0.0
    %1447 = vmatpush1.msra.mxu0 %v1389
    %1448 = vmatprep.subr.mxu0 0.0
    %1449 = vmatpush1.msra.mxu0 %v1390
    %1450 = vmatprep.subr.mxu0 0.0
    %1451 = vmatpush1.msra.mxu0 %v1391
    %1452 = vmatprep.subr.mxu0 0.0
    %1453 = vmatpush1.msra.mxu0 %v1392
    %1454 = vmatprep.subr.mxu0 0.0
    %1455 = vmatpush1.msra.mxu0 %v1393
    %1456 = vmatprep.subr.mxu0 0.0
    %1457 = vmatpush1.msra.mxu0 %v1394
    %1458 = vmatprep.subr.mxu0 0.0
    %1459 = vmatpush1.msra.mxu0 %v1395
    %1460 = vmatprep.subr.mxu0 0.0
    %1461 = vmatpush1.msra.mxu0 %v1396
    %1462 = vmatprep.subr.mxu0 0.0
    %1463 = vmatpush1.msra.mxu0 %v1397
    %1464 = vmatprep.subr.mxu0 0.0
    %1465 = vmatpush1.msra.mxu0 %v1398
    %1466 = vmatprep.subr.mxu0 0.0
    %1467 = vmatpush1.msra.mxu0 %v1399
    %1468 = vmatprep.subr.mxu0 0.0
    %1469 = vmatpush1.msra.mxu0 %v1400
    %1470 = vmatprep.subr.mxu0 0.0
    %1471 = vmatpush1.msra.mxu0 %v1401
    %1472 = vmatprep.subr.mxu0 0.0
    %1473 = vmatpush1.msra.mxu0 %v1402
    %1474 = vmatprep.mubr.f32.mxu0 %v1368
    %1475 = vmatmul.mubr.f32.gmra.mrb[0].mxu0 %v1367
    %v1476 = vpop.f32.mrb[0].mxu0
    %v1477 = vadd.f32 %v1408, %v1476
    %v1478 = vpop.f32.mrb[0].mxu0
    %1479 = vmatprep.mubr.f32.mxu0 %v1370
    %1480 = vmatmul.mubr.f32.gmra.mrb[0].mxu0 %v1369
    %v1481 = vpop.f32.mrb[0].mxu0
    %v1482 = vadd.f32 %v1408, %v1481
    %v1483 = vpop.f32.mrb[0].mxu0
    %1484 = vdwg.mxu0
    %v1485 = vadd.f32 %v1212, %v1477
    %v1486 = vadd.f32 %v1213, %v1482
    %v1487 = vld [vmem:[%s14] sm:$0x1]
    %v1488 = vld [vmem:[%s15] sm:$0x1]
    %1489 = vadd.xlane.f32.xlu0 %v1485
    %v1490 = vpop.xlane.xlu0 %1489
    %1491 = vadd.xlane.f32.xlu0 %v1486
    %v1492 = vpop.xlane.xlu0 %1491
    %v1493 = vmul.f32 %v1490, %v141
    %v1494 = vmul.f32 %v1492, %v141
    %v1495 = vsub.f32 %v1485, %v1493
    %v1496 = vsub.f32 %v1486, %v1494
    %v1497 = vmul.f32 %v1495, %v1495
    %v1498 = vmul.f32 %v1496, %v1496
    %1499 = vadd.xlane.f32.xlu0 %v1497
    %v1500 = vpop.xlane.xlu0 %1499
    %1501 = vadd.xlane.f32.xlu0 %v1498
    %v1502 = vpop.xlane.xlu0 %1501
    %v1503 = vmul.f32 %v1500, %v141
    %v1504 = vmul.f32 %v1502, %v141
    %v1505 = vadd.f32 %v1503, 1e-12
    %v1506 = vadd.f32 %v1504, 1e-12
    %v1507 = vrsqrt.pop %v1505
    %v1508 = vrsqrt.pop %v1506
    %v1509 = vmul.f32 %v1495, %v1507
    %v1510 = vmul.f32 %v1496, %v1508
    %v1512 = vlaneseq
    %v1513 = vshrl.u32 %v1512, 7
    %v1514 = vsub.s32 0, %v1513
    %v1515 = vrot.slane %v1487, %v1514
    %v1517 = vmul.f32 %v1509, %v1515
    %v1518 = vmul.f32 %v1510, %v1515
    %v1520 = vlaneseq
    %v1521 = vshrl.u32 %v1520, 7
    %v1522 = vsub.s32 0, %v1521
    %v1523 = vrot.slane %v1488, %v1522
    %v1525 = vadd.f32 %v1517, %v1523
    %v1526 = vadd.f32 %v1518, %v1523
    %s1527 = scalar_lea.vmem [#allocation2], 384
    %v1528 = vld [vmem:[%s1527] sm:$0xff]
    %v1529 = vld [vmem:[%s1527 + $0x8] sm:$0xff]
    %v1530 = vld [vmem:[%s1527 + $0x10] sm:$0xff]
    %v1531 = vld [vmem:[%s1527 + $0x18] sm:$0xff]
    %v1532 = vld [vmem:[%s1527 + $0x20] sm:$0xff]
    %v1533 = vld [vmem:[%s1527 + $0x28] sm:$0xff]
    %v1534 = vld [vmem:[%s1527 + $0x30] sm:$0xff]
    %v1535 = vld [vmem:[%s1527 + $0x38] sm:$0xff]
    %v1536 = vld [vmem:[%s1527 + $0x40] sm:$0xff]
    %v1537 = vld [vmem:[%s1527 + $0x48] sm:$0xff]
    %v1538 = vld [vmem:[%s1527 + $0x50] sm:$0xff]
    %v1539 = vld [vmem:[%s1527 + $0x58] sm:$0xff]
    %v1540 = vld [vmem:[%s1527 + $0x60] sm:$0xff]
    %v1541 = vld [vmem:[%s1527 + $0x68] sm:$0xff]
    %v1542 = vld [vmem:[%s1527 + $0x70] sm:$0xff]
    %v1543 = vld [vmem:[%s1527 + $0x78] sm:$0xff]
    %v1544 = vld [vmem:[%s1527 + $0x80] sm:$0xff]
    %v1545 = vld [vmem:[%s1527 + $0x88] sm:$0xff]
    %v1546 = vld [vmem:[%s1527 + $0x90] sm:$0xff]
    %v1547 = vld [vmem:[%s1527 + $0x98] sm:$0xff]
    %v1548 = vld [vmem:[%s1527 + $0xa0] sm:$0xff]
    %v1549 = vld [vmem:[%s1527 + $0xa8] sm:$0xff]
    %v1550 = vld [vmem:[%s1527 + $0xb0] sm:$0xff]
    %v1551 = vld [vmem:[%s1527 + $0xb8] sm:$0xff]
    %v1552 = vld [vmem:[%s1527 + $0xc0] sm:$0xff]
    %v1553 = vld [vmem:[%s1527 + $0xc8] sm:$0xff]
    %v1554 = vld [vmem:[%s1527 + $0xd0] sm:$0xff]
    %v1555 = vld [vmem:[%s1527 + $0xd8] sm:$0xff]
    %v1556 = vld [vmem:[%s1527 + $0xe0] sm:$0xff]
    %v1557 = vld [vmem:[%s1527 + $0xe8] sm:$0xff]
    %v1558 = vld [vmem:[%s1527 + $0xf0] sm:$0xff]
    %v1559 = vld [vmem:[%s1527 + $0xf8] sm:$0xff]
    %v1560 = vld [vmem:[%s1527 + $0x100] sm:$0xff]
    %v1561 = vld [vmem:[%s1527 + $0x108] sm:$0xff]
    %v1562 = vld [vmem:[%s1527 + $0x110] sm:$0xff]
    %v1563 = vld [vmem:[%s1527 + $0x118] sm:$0xff]
    %v1564 = vld [vmem:[%s1527 + $0x120] sm:$0xff]
    %v1565 = vld [vmem:[%s1527 + $0x128] sm:$0xff]
    %v1566 = vld [vmem:[%s1527 + $0x130] sm:$0xff]
    %v1567 = vld [vmem:[%s1527 + $0x138] sm:$0xff]
    %v1568 = vld [vmem:[%s1527 + $0x140] sm:$0xff]
    %v1569 = vld [vmem:[%s1527 + $0x148] sm:$0xff]
    %v1570 = vld [vmem:[%s1527 + $0x150] sm:$0xff]
    %v1571 = vld [vmem:[%s1527 + $0x158] sm:$0xff]
    %v1572 = vld [vmem:[%s1527 + $0x160] sm:$0xff]
    %v1573 = vld [vmem:[%s1527 + $0x168] sm:$0xff]
    %v1574 = vld [vmem:[%s1527 + $0x170] sm:$0xff]
    %v1575 = vld [vmem:[%s1527 + $0x178] sm:$0xff]
    %s1576 = scalar_lea.vmem %s5, 3
    %v1577 = vld [vmem:[%s1576] sm:$0x7]
    %v1579 = vlaneseq
    %v1580 = vshrl.u32 %v1579, 7
    %v1581 = vsub.s32 0, %v1580
    %v1582 = vrot.slane %v1577, %v1581
    %v1583 = vlaneseq
    %v1584 = vshrl.u32 %v1583, 7
    %v1585 = vsub.s32 1, %v1584
    %v1586 = vrot.slane %v1577, %v1585
    %v1587 = vlaneseq
    %v1588 = vshrl.u32 %v1587, 7
    %v1589 = vsub.s32 2, %v1588
    %v1590 = vrot.slane %v1577, %v1589
    %1594 = vmatprep.subr.mxu0 %v1529
    %1595 = vmatpush1.msra.mxu0 %v1528
    %1596 = vmatprep.subr.mxu0 %v1532
    %1597 = vmatpush1.msra.mxu0 %v1531
    %1598 = vmatprep.subr.mxu0 %v1535
    %1599 = vmatpush1.msra.mxu0 %v1534
    %1600 = vmatprep.subr.mxu0 %v1538
    %1601 = vmatpush1.msra.mxu0 %v1537
    %1602 = vmatprep.subr.mxu0 %v1541
    %1603 = vmatpush1.msra.mxu0 %v1540
    %1604 = vmatprep.subr.mxu0 %v1544
    %1605 = vmatpush1.msra.mxu0 %v1543
    %1606 = vmatprep.subr.mxu0 %v1547
    %1607 = vmatpush1.msra.mxu0 %v1546
    %1608 = vmatprep.subr.mxu0 %v1550
    %1609 = vmatpush1.msra.mxu0 %v1549
    %1610 = vmatprep.subr.mxu0 %v1553
    %1611 = vmatpush1.msra.mxu0 %v1552
    %1612 = vmatprep.subr.mxu0 %v1556
    %1613 = vmatpush1.msra.mxu0 %v1555
    %1614 = vmatprep.subr.mxu0 %v1559
    %1615 = vmatpush1.msra.mxu0 %v1558
    %1616 = vmatprep.subr.mxu0 %v1562
    %1617 = vmatpush1.msra.mxu0 %v1561
    %1618 = vmatprep.subr.mxu0 %v1565
    %1619 = vmatpush1.msra.mxu0 %v1564
    %1620 = vmatprep.subr.mxu0 %v1568
    %1621 = vmatpush1.msra.mxu0 %v1567
    %1622 = vmatprep.subr.mxu0 %v1571
    %1623 = vmatpush1.msra.mxu0 %v1570
    %1624 = vmatprep.subr.mxu0 %v1574
    %1625 = vmatpush1.msra.mxu0 %v1573
    %1626 = vmatprep.subr.mxu0 0.0
    %1627 = vmatpush1.msra.mxu0 0.0
    %1628 = vmatprep.subr.mxu0 0.0
    %1629 = vmatpush1.msra.mxu0 0.0
    %1630 = vmatprep.subr.mxu0 0.0
    %1631 = vmatpush1.msra.mxu0 0.0
    %1632 = vmatprep.subr.mxu0 0.0
    %1633 = vmatpush1.msra.mxu0 0.0
    %1634 = vmatprep.subr.mxu0 0.0
    %1635 = vmatpush1.msra.mxu0 0.0
    %1636 = vmatprep.subr.mxu0 0.0
    %1637 = vmatpush1.msra.mxu0 0.0
    %1638 = vmatprep.subr.mxu0 0.0
    %1639 = vmatpush1.msra.mxu0 0.0
    %1640 = vmatprep.subr.mxu0 0.0
    %1641 = vmatpush1.msra.mxu0 0.0
    %1642 = vmatprep.subr.mxu0 0.0
    %1643 = vmatpush1.msra.mxu0 0.0
    %1644 = vmatprep.subr.mxu0 0.0
    %1645 = vmatpush1.msra.mxu0 0.0
    %1646 = vmatprep.subr.mxu0 0.0
    %1647 = vmatpush1.msra.mxu0 0.0
    %1648 = vmatprep.subr.mxu0 0.0
    %1649 = vmatpush1.msra.mxu0 0.0
    %1650 = vmatprep.subr.mxu0 0.0
    %1651 = vmatpush1.msra.mxu0 0.0
    %1652 = vmatprep.subr.mxu0 0.0
    %1653 = vmatpush1.msra.mxu0 0.0
    %1654 = vmatprep.subr.mxu0 0.0
    %1655 = vmatpush1.msra.mxu0 0.0
    %1656 = vmatprep.subr.mxu0 0.0
    %1657 = vmatpush1.msra.mxu0 0.0
    %1658 = vmatprep.mubr.f32.mxu0 0.0
    %1659 = vmatmul.mubr.f32.gmra.mrb[0].mxu0 %v1525
    %v1660 = vpop.f32.mrb[0].mxu0
    %v1661 = vadd.f32 %v1582, %v1660
    %v1662 = vpop.f32.mrb[0].mxu0
    %v1663 = vadd.f32 %v1586, %v1662
    %1664 = vmatprep.mubr.f32.mxu0 0.0
    %1665 = vmatmul.mubr.f32.gmra.mrb[0].mxu0 %v1526
    %v1666 = vpop.f32.mrb[0].mxu0
    %v1667 = vadd.f32 %v1582, %v1666
    %v1668 = vpop.f32.mrb[0].mxu0
    %v1669 = vadd.f32 %v1586, %v1668
    %1670 = vdwg.mxu0
    %1671 = vmatprep.subr.mxu0 0.0
    %1672 = vmatpush1.msra.mxu0 %v1530
    %1673 = vmatprep.subr.mxu0 0.0
    %1674 = vmatpush1.msra.mxu0 %v1533
    %1675 = vmatprep.subr.mxu0 0.0
    %1676 = vmatpush1.msra.mxu0 %v1536
    %1677 = vmatprep.subr.mxu0 0.0
    %1678 = vmatpush1.msra.mxu0 %v1539
    %1679 = vmatprep.subr.mxu0 0.0
    %1680 = vmatpush1.msra.mxu0 %v1542
    %1681 = vmatprep.subr.mxu0 0.0
    %1682 = vmatpush1.msra.mxu0 %v1545
    %1683 = vmatprep.subr.mxu0 0.0
    %1684 = vmatpush1.msra.mxu0 %v1548
    %1685 = vmatprep.subr.mxu0 0.0
    %1686 = vmatpush1.msra.mxu0 %v1551
    %1687 = vmatprep.subr.mxu0 0.0
    %1688 = vmatpush1.msra.mxu0 %v1554
    %1689 = vmatprep.subr.mxu0 0.0
    %1690 = vmatpush1.msra.mxu0 %v1557
    %1691 = vmatprep.subr.mxu0 0.0
    %1692 = vmatpush1.msra.mxu0 %v1560
    %1693 = vmatprep.subr.mxu0 0.0
    %1694 = vmatpush1.msra.mxu0 %v1563
    %1695 = vmatprep.subr.mxu0 0.0
    %1696 = vmatpush1.msra.mxu0 %v1566
    %1697 = vmatprep.subr.mxu0 0.0
    %1698 = vmatpush1.msra.mxu0 %v1569
    %1699 = vmatprep.subr.mxu0 0.0
    %1700 = vmatpush1.msra.mxu0 %v1572
    %1701 = vmatprep.subr.mxu0 0.0
    %1702 = vmatpush1.msra.mxu0 %v1575
    %1703 = vmatprep.subr.mxu0 0.0
    %1704 = vmatpush1.msra.mxu0 0.0
    %1705 = vmatprep.subr.mxu0 0.0
    %1706 = vmatpush1.msra.mxu0 0.0
    %1707 = vmatprep.subr.mxu0 0.0
    %1708 = vmatpush1.msra.mxu0 0.0
    %1709 = vmatprep.subr.mxu0 0.0
    %1710 = vmatpush1.msra.mxu0 0.0
    %1711 = vmatprep.subr.mxu0 0.0
    %1712 = vmatpush1.msra.mxu0 0.0
    %1713 = vmatprep.subr.mxu0 0.0
    %1714 = vmatpush1.msra.mxu0 0.0
    %1715 = vmatprep.subr.mxu0 0.0
    %1716 = vmatpush1.msra.mxu0 0.0
    %1717 = vmatprep.subr.mxu0 0.0
    %1718 = vmatpush1.msra.mxu0 0.0
    %1719 = vmatprep.subr.mxu0 0.0
    %1720 = vmatpush1.msra.mxu0 0.0
    %1721 = vmatprep.subr.mxu0 0.0
    %1722 = vmatpush1.msra.mxu0 0.0
    %1723 = vmatprep.subr.mxu0 0.0
    %1724 = vmatpush1.msra.mxu0 0.0
    %1725 = vmatprep.subr.mxu0 0.0
    %1726 = vmatpush1.msra.mxu0 0.0
    %1727 = vmatprep.subr.mxu0 0.0
    %1728 = vmatpush1.msra.mxu0 0.0
    %1729 = vmatprep.subr.mxu0 0.0
    %1730 = vmatpush1.msra.mxu0 0.0
    %1731 = vmatprep.subr.mxu0 0.0
    %1732 = vmatpush1.msra.mxu0 0.0
    %1733 = vmatprep.subr.mxu0 0.0
    %1734 = vmatpush1.msra.mxu0 0.0
    %1735 = vmatprep.mubr.f32.mxu0 0.0
    %1736 = vmatmul.mubr.f32.gmra.mrb[0].mxu0 %v1525
    %v1737 = vpop.f32.mrb[0].mxu0
    %v1738 = vadd.f32 %v1590, %v1737
    %v1739 = vpop.f32.mrb[0].mxu0
    %1740 = vmatprep.mubr.f32.mxu0 0.0
    %1741 = vmatmul.mubr.f32.gmra.mrb[0].mxu0 %v1526
    %v1742 = vpop.f32.mrb[0].mxu0
    %v1743 = vadd.f32 %v1590, %v1742
    %v1744 = vpop.f32.mrb[0].mxu0
    %1745 = vdwg.mxu0
    %v1747 = vsel %vm394, %v1661, 0
    %v1750 = vsel %vm394, %v1663, 0
    %1752 = vmatprep.subr.mxu0 0.0
    %1753 = vmatpush1.xpose.msra.mxu0 %v1750
    %1754 = vmatprep.subr.mxu0 0.0
    %1755 = vmatpush1.xpose.msra.mxu0 0.0
    %1756 = vmatprep.subr.mxu0 0.0
    %1757 = vmatpush1.xpose.msra.mxu0 0.0
    %1758 = vmatprep.subr.mxu0 0.0
    %1759 = vmatpush1.xpose.msra.mxu0 0.0
    %1760 = vmatprep.subr.mxu0 0.0
    %1761 = vmatpush1.xpose.msra.mxu0 0.0
    %1762 = vmatprep.subr.mxu0 0.0
    %1763 = vmatpush1.xpose.msra.mxu0 0.0
    %1764 = vmatprep.subr.mxu0 0.0
    %1765 = vmatpush1.xpose.msra.mxu0 0.0
    %1766 = vmatprep.subr.mxu0 0.0
    %1767 = vmatpush1.xpose.msra.mxu0 0.0
    %1768 = vmatprep.subr.mxu0 0.0
    %1769 = vmatpush1.xpose.msra.mxu0 0.0
    %1770 = vmatprep.subr.mxu0 0.0
    %1771 = vmatpush1.xpose.msra.mxu0 0.0
    %1772 = vmatprep.subr.mxu0 0.0
    %1773 = vmatpush1.xpose.msra.mxu0 0.0
    %1774 = vmatprep.subr.mxu0 0.0
    %1775 = vmatpush1.xpose.msra.mxu0 0.0
    %1776 = vmatprep.subr.mxu0 0.0
    %1777 = vmatpush1.xpose.msra.mxu0 0.0
    %1778 = vmatprep.subr.mxu0 0.0
    %1779 = vmatpush1.xpose.msra.mxu0 0.0
    %1780 = vmatprep.subr.mxu0 0.0
    %1781 = vmatpush1.xpose.msra.mxu0 0.0
    %1782 = vmatprep.subr.mxu0 0.0
    %1783 = vmatpush1.xpose.msra.mxu0 0.0
    %1784 = vmatprep.subr.mxu0 0.0
    %1785 = vmatpush1.xpose.msra.mxu0 0.0
    %1786 = vmatprep.subr.mxu0 0.0
    %1787 = vmatpush1.xpose.msra.mxu0 0.0
    %1788 = vmatprep.subr.mxu0 0.0
    %1789 = vmatpush1.xpose.msra.mxu0 0.0
    %1790 = vmatprep.subr.mxu0 0.0
    %1791 = vmatpush1.xpose.msra.mxu0 0.0
    %1792 = vmatprep.subr.mxu0 0.0
    %1793 = vmatpush1.xpose.msra.mxu0 0.0
    %1794 = vmatprep.subr.mxu0 0.0
    %1795 = vmatpush1.xpose.msra.mxu0 0.0
    %1796 = vmatprep.subr.mxu0 0.0
    %1797 = vmatpush1.xpose.msra.mxu0 0.0
    %1798 = vmatprep.subr.mxu0 0.0
    %1799 = vmatpush1.xpose.msra.mxu0 0.0
    %1800 = vmatprep.subr.mxu0 0.0
    %1801 = vmatpush1.xpose.msra.mxu0 0.0
    %1802 = vmatprep.subr.mxu0 0.0
    %1803 = vmatpush1.xpose.msra.mxu0 0.0
    %1804 = vmatprep.subr.mxu0 0.0
    %1805 = vmatpush1.xpose.msra.mxu0 0.0
    %1806 = vmatprep.subr.mxu0 0.0
    %1807 = vmatpush1.xpose.msra.mxu0 0.0
    %1808 = vmatprep.subr.mxu0 0.0
    %1809 = vmatpush1.xpose.msra.mxu0 0.0
    %1810 = vmatprep.subr.mxu0 0.0
    %1811 = vmatpush1.xpose.msra.mxu0 0.0
    %1812 = vmatprep.subr.mxu0 0.0
    %1813 = vmatpush1.xpose.msra.mxu0 0.0
    %1814 = vmatprep.subr.mxu0 0.0
    %1815 = vmatpush1.xpose.msra.mxu0 0.0
    %1816 = vmatprep.mubr.f32.mxu0 0.0
    %1817 = vmatmul.mubr.f32.gmra.mrb[0].mxu0 %v1747
    %v1818 = vpop.f32.mrb[0].mxu0
    %v1819 = vadd.f32 0.0, %v1818
    %v1820 = vpop.f32.mrb[0].mxu0
    %1821 = vdwg.mxu0
    %v1822 = vmul.f32 %v1819, 0.125
    %v1823 = vadd.f32 %v1822, %v475
    %v1824 = vsel %vm477, %v1823, -inf
    %1825 = vmax.xlane.f32.xlu0 %v1824
    %v1826 = vpop.xlane.xlu0 %1825
    %v1827 = vsub.f32 %v1823, %v1826
    %v1828 = vmul.f32 %v1827, 1.442695
    %v1829 = vpow.pop %v1828
    %v1830 = vsel %vm477, %v1829, 0.0
    %1831 = vadd.xlane.f32.xlu0 %v1830
    %v1832 = vpop.xlane.xlu0 %1831
    %v1833 = vrcp.pop %v1832
    %v1834 = vmul.f32 %v1829, %v1833
    %v1836 = vsel %vm477, %v1834, 0
    %1838 = vmatprep.subr.mxu0 0.0
    %1839 = vmatpush1.msra.mxu0 %v1738
    %1840 = vmatprep.subr.mxu0 0.0
    %1841 = vmatpush1.msra.mxu0 0.0
    %1842 = vmatprep.subr.mxu0 0.0
    %1843 = vmatpush1.msra.mxu0 0.0
    %1844 = vmatprep.subr.mxu0 0.0
    %1845 = vmatpush1.msra.mxu0 0.0
    %1846 = vmatprep.subr.mxu0 0.0
    %1847 = vmatpush1.msra.mxu0 0.0
    %1848 = vmatprep.subr.mxu0 0.0
    %1849 = vmatpush1.msra.mxu0 0.0
    %1850 = vmatprep.subr.mxu0 0.0
    %1851 = vmatpush1.msra.mxu0 0.0
    %1852 = vmatprep.subr.mxu0 0.0
    %1853 = vmatpush1.msra.mxu0 0.0
    %1854 = vmatprep.subr.mxu0 0.0
    %1855 = vmatpush1.msra.mxu0 0.0
    %1856 = vmatprep.subr.mxu0 0.0
    %1857 = vmatpush1.msra.mxu0 0.0
    %1858 = vmatprep.subr.mxu0 0.0
    %1859 = vmatpush1.msra.mxu0 0.0
    %1860 = vmatprep.subr.mxu0 0.0
    %1861 = vmatpush1.msra.mxu0 0.0
    %1862 = vmatprep.subr.mxu0 0.0
    %1863 = vmatpush1.msra.mxu0 0.0
    %1864 = vmatprep.subr.mxu0 0.0
    %1865 = vmatpush1.msra.mxu0 0.0
    %1866 = vmatprep.subr.mxu0 0.0
    %1867 = vmatpush1.msra.mxu0 0.0
    %1868 = vmatprep.subr.mxu0 0.0
    %1869 = vmatpush1.msra.mxu0 0.0
    %1870 = vmatprep.subr.mxu0 0.0
    %1871 = vmatpush1.msra.mxu0 0.0
    %1872 = vmatprep.subr.mxu0 0.0
    %1873 = vmatpush1.msra.mxu0 0.0
    %1874 = vmatprep.subr.mxu0 0.0
    %1875 = vmatpush1.msra.mxu0 0.0
    %1876 = vmatprep.subr.mxu0 0.0
    %1877 = vmatpush1.msra.mxu0 0.0
    %1878 = vmatprep.subr.mxu0 0.0
    %1879 = vmatpush1.msra.mxu0 0.0
    %1880 = vmatprep.subr.mxu0 0.0
    %1881 = vmatpush1.msra.mxu0 0.0
    %1882 = vmatprep.subr.mxu0 0.0
    %1883 = vmatpush1.msra.mxu0 0.0
    %1884 = vmatprep.subr.mxu0 0.0
    %1885 = vmatpush1.msra.mxu0 0.0
    %1886 = vmatprep.subr.mxu0 0.0
    %1887 = vmatpush1.msra.mxu0 0.0
    %1888 = vmatprep.subr.mxu0 0.0
    %1889 = vmatpush1.msra.mxu0 0.0
    %1890 = vmatprep.subr.mxu0 0.0
    %1891 = vmatpush1.msra.mxu0 0.0
    %1892 = vmatprep.subr.mxu0 0.0
    %1893 = vmatpush1.msra.mxu0 0.0
    %1894 = vmatprep.subr.mxu0 0.0
    %1895 = vmatpush1.msra.mxu0 0.0
    %1896 = vmatprep.subr.mxu0 0.0
    %1897 = vmatpush1.msra.mxu0 0.0
    %1898 = vmatprep.subr.mxu0 0.0
    %1899 = vmatpush1.msra.mxu0 0.0
    %1900 = vmatprep.subr.mxu0 0.0
    %1901 = vmatpush1.msra.mxu0 0.0
    %1902 = vmatprep.mubr.f32.mxu0 0.0
    %1903 = vmatmul.mubr.f32.gmra.mrb[0].mxu0 %v1836
    %v1904 = vpop.f32.mrb[0].mxu0
    %v1905 = vadd.f32 0.0, %v1904
    %v1906 = vpop.f32.mrb[0].mxu0
    %1907 = vdwg.mxu0
    %1908 = vrot.lane.b32.xlu0 %v1661, 64
    %v1909 = vpop.permute.xlu0 %1908
    %1910 = vrot.lane.b32.xlu0 %v1663, 64
    %v1911 = vpop.permute.xlu0 %1910
    %v1912 = vsel %vm394, %v1909, 0
    %v1914 = vsel %vm394, %v1911, 0
    %1916 = vmatprep.subr.mxu0 0.0
    %1917 = vmatpush1.xpose.msra.mxu0 %v1914
    %1918 = vmatprep.subr.mxu0 0.0
    %1919 = vmatpush1.xpose.msra.mxu0 0.0
    %1920 = vmatprep.subr.mxu0 0.0
    %1921 = vmatpush1.xpose.msra.mxu0 0.0
    %1922 = vmatprep.subr.mxu0 0.0
    %1923 = vmatpush1.xpose.msra.mxu0 0.0
    %1924 = vmatprep.subr.mxu0 0.0
    %1925 = vmatpush1.xpose.msra.mxu0 0.0
    %1926 = vmatprep.subr.mxu0 0.0
    %1927 = vmatpush1.xpose.msra.mxu0 0.0
    %1928 = vmatprep.subr.mxu0 0.0
    %1929 = vmatpush1.xpose.msra.mxu0 0.0
    %1930 = vmatprep.subr.mxu0 0.0
    %1931 = vmatpush1.xpose.msra.mxu0 0.0
    %1932 = vmatprep.subr.mxu0 0.0
    %1933 = vmatpush1.xpose.msra.mxu0 0.0
    %1934 = vmatprep.subr.mxu0 0.0
    %1935 = vmatpush1.xpose.msra.mxu0 0.0
    %1936 = vmatprep.subr.mxu0 0.0
    %1937 = vmatpush1.xpose.msra.mxu0 0.0
    %1938 = vmatprep.subr.mxu0 0.0
    %1939 = vmatpush1.xpose.msra.mxu0 0.0
    %1940 = vmatprep.subr.mxu0 0.0
    %1941 = vmatpush1.xpose.msra.mxu0 0.0
    %1942 = vmatprep.subr.mxu0 0.0
    %1943 = vmatpush1.xpose.msra.mxu0 0.0
    %1944 = vmatprep.subr.mxu0 0.0
    %1945 = vmatpush1.xpose.msra.mxu0 0.0
    %1946 = vmatprep.subr.mxu0 0.0
    %1947 = vmatpush1.xpose.msra.mxu0 0.0
    %1948 = vmatprep.subr.mxu0 0.0
    %1949 = vmatpush1.xpose.msra.mxu0 0.0
    %1950 = vmatprep.subr.mxu0 0.0
    %1951 = vmatpush1.xpose.msra.mxu0 0.0
    %1952 = vmatprep.subr.mxu0 0.0
    %1953 = vmatpush1.xpose.msra.mxu0 0.0
    %1954 = vmatprep.subr.mxu0 0.0
    %1955 = vmatpush1.xpose.msra.mxu0 0.0
    %1956 = vmatprep.subr.mxu0 0.0
    %1957 = vmatpush1.xpose.msra.mxu0 0.0
    %1958 = vmatprep.subr.mxu0 0.0
    %1959 = vmatpush1.xpose.msra.mxu0 0.0
    %1960 = vmatprep.subr.mxu0 0.0
    %1961 = vmatpush1.xpose.msra.mxu0 0.0
    %1962 = vmatprep.subr.mxu0 0.0
    %1963 = vmatpush1.xpose.msra.mxu0 0.0
    %1964 = vmatprep.subr.mxu0 0.0
    %1965 = vmatpush1.xpose.msra.mxu0 0.0
    %1966 = vmatprep.subr.mxu0 0.0
    %1967 = vmatpush1.xpose.msra.mxu0 0.0
    %1968 = vmatprep.subr.mxu0 0.0
    %1969 = vmatpush1.xpose.msra.mxu0 0.0
    %1970 = vmatprep.subr.mxu0 0.0
    %1971 = vmatpush1.xpose.msra.mxu0 0.0
    %1972 = vmatprep.subr.mxu0 0.0
    %1973 = vmatpush1.xpose.msra.mxu0 0.0
    %1974 = vmatprep.subr.mxu0 0.0
    %1975 = vmatpush1.xpose.msra.mxu0 0.0
    %1976 = vmatprep.subr.mxu0 0.0
    %1977 = vmatpush1.xpose.msra.mxu0 0.0
    %1978 = vmatprep.subr.mxu0 0.0
    %1979 = vmatpush1.xpose.msra.mxu0 0.0
    %1980 = vmatprep.mubr.f32.mxu0 0.0
    %1981 = vmatmul.mubr.f32.gmra.mrb[0].mxu0 %v1912
    %v1982 = vpop.f32.mrb[0].mxu0
    %v1983 = vadd.f32 0.0, %v1982
    %v1984 = vpop.f32.mrb[0].mxu0
    %1985 = vdwg.mxu0
    %v1986 = vmul.f32 %v1983, 0.125
    %v1987 = vadd.f32 %v1986, %v475
    %v1988 = vsel %vm477, %v1987, -inf
    %1989 = vmax.xlane.f32.xlu0 %v1988
    %v1990 = vpop.xlane.xlu0 %1989
    %v1991 = vsub.f32 %v1987, %v1990
    %v1992 = vmul.f32 %v1991, 1.442695
    %v1993 = vpow.pop %v1992
    %v1994 = vsel %vm477, %v1993, 0.0
    %1995 = vadd.xlane.f32.xlu0 %v1994
    %v1996 = vpop.xlane.xlu0 %1995
    %v1997 = vrcp.pop %v1996
    %v1998 = vmul.f32 %v1993, %v1997
    %2000 = vrot.lane.b32.xlu0 %v1738, 64
    %v2001 = vpop.permute.xlu0 %2000
    %v2004 = vsel %vm477, %v1998, 0
    %2006 = vmatprep.subr.mxu0 0.0
    %2007 = vmatpush1.msra.mxu0 %v2001
    %2008 = vmatprep.subr.mxu0 0.0
    %2009 = vmatpush1.msra.mxu0 0.0
    %2010 = vmatprep.subr.mxu0 0.0
    %2011 = vmatpush1.msra.mxu0 0.0
    %2012 = vmatprep.subr.mxu0 0.0
    %2013 = vmatpush1.msra.mxu0 0.0
    %2014 = vmatprep.subr.mxu0 0.0
    %2015 = vmatpush1.msra.mxu0 0.0
    %2016 = vmatprep.subr.mxu0 0.0
    %2017 = vmatpush1.msra.mxu0 0.0
    %2018 = vmatprep.subr.mxu0 0.0
    %2019 = vmatpush1.msra.mxu0 0.0
    %2020 = vmatprep.subr.mxu0 0.0
    %2021 = vmatpush1.msra.mxu0 0.0
    %2022 = vmatprep.subr.mxu0 0.0
    %2023 = vmatpush1.msra.mxu0 0.0
    %2024 = vmatprep.subr.mxu0 0.0
    %2025 = vmatpush1.msra.mxu0 0.0
    %2026 = vmatprep.subr.mxu0 0.0
    %2027 = vmatpush1.msra.mxu0 0.0
    %2028 = vmatprep.subr.mxu0 0.0
    %2029 = vmatpush1.msra.mxu0 0.0
    %2030 = vmatprep.subr.mxu0 0.0
    %2031 = vmatpush1.msra.mxu0 0.0
    %2032 = vmatprep.subr.mxu0 0.0
    %2033 = vmatpush1.msra.mxu0 0.0
    %2034 = vmatprep.subr.mxu0 0.0
    %2035 = vmatpush1.msra.mxu0 0.0
    %2036 = vmatprep.subr.mxu0 0.0
    %2037 = vmatpush1.msra.mxu0 0.0
    %2038 = vmatprep.subr.mxu0 0.0
    %2039 = vmatpush1.msra.mxu0 0.0
    %2040 = vmatprep.subr.mxu0 0.0
    %2041 = vmatpush1.msra.mxu0 0.0
    %2042 = vmatprep.subr.mxu0 0.0
    %2043 = vmatpush1.msra.mxu0 0.0
    %2044 = vmatprep.subr.mxu0 0.0
    %2045 = vmatpush1.msra.mxu0 0.0
    %2046 = vmatprep.subr.mxu0 0.0
    %2047 = vmatpush1.msra.mxu0 0.0
    %2048 = vmatprep.subr.mxu0 0.0
    %2049 = vmatpush1.msra.mxu0 0.0
    %2050 = vmatprep.subr.mxu0 0.0
    %2051 = vmatpush1.msra.mxu0 0.0
    %2052 = vmatprep.subr.mxu0 0.0
    %2053 = vmatpush1.msra.mxu0 0.0
    %2054 = vmatprep.subr.mxu0 0.0
    %2055 = vmatpush1.msra.mxu0 0.0
    %2056 = vmatprep.subr.mxu0 0.0
    %2057 = vmatpush1.msra.mxu0 0.0
    %2058 = vmatprep.subr.mxu0 0.0
    %2059 = vmatpush1.msra.mxu0 0.0
    %2060 = vmatprep.subr.mxu0 0.0
    %2061 = vmatpush1.msra.mxu0 0.0
    %2062 = vmatprep.subr.mxu0 0.0
    %2063 = vmatpush1.msra.mxu0 0.0
    %2064 = vmatprep.subr.mxu0 0.0
    %2065 = vmatpush1.msra.mxu0 0.0
    %2066 = vmatprep.subr.mxu0 0.0
    %2067 = vmatpush1.msra.mxu0 0.0
    %2068 = vmatprep.subr.mxu0 0.0
    %2069 = vmatpush1.msra.mxu0 0.0
    %2070 = vmatprep.mubr.f32.mxu0 0.0
    %2071 = vmatmul.mubr.f32.gmra.mrb[0].mxu0 %v2004
    %v2072 = vpop.f32.mrb[0].mxu0
    %v2073 = vadd.f32 0.0, %v2072
    %v2074 = vpop.f32.mrb[0].mxu0
    %2075 = vdwg.mxu0
    %2077 = vrot.lane.b32.xlu0 %v2073, 64
    %v2078 = vpop.permute.xlu0 %2077
    %v2080 = vsel %vm394, %v1905, %v2078
    %v2082 = vsel %vm394, %v1667, 0
    %v2085 = vsel %vm394, %v1669, 0
    %2087 = vmatprep.subr.mxu0 0.0
    %2088 = vmatpush1.xpose.msra.mxu0 %v2085
    %2089 = vmatprep.subr.mxu0 0.0
    %2090 = vmatpush1.xpose.msra.mxu0 0.0
    %2091 = vmatprep.subr.mxu0 0.0
    %2092 = vmatpush1.xpose.msra.mxu0 0.0
    %2093 = vmatprep.subr.mxu0 0.0
    %2094 = vmatpush1.xpose.msra.mxu0 0.0
    %2095 = vmatprep.subr.mxu0 0.0
    %2096 = vmatpush1.xpose.msra.mxu0 0.0
    %2097 = vmatprep.subr.mxu0 0.0
    %2098 = vmatpush1.xpose.msra.mxu0 0.0
    %2099 = vmatprep.subr.mxu0 0.0
    %2100 = vmatpush1.xpose.msra.mxu0 0.0
    %2101 = vmatprep.subr.mxu0 0.0
    %2102 = vmatpush1.xpose.msra.mxu0 0.0
    %2103 = vmatprep.subr.mxu0 0.0
    %2104 = vmatpush1.xpose.msra.mxu0 0.0
    %2105 = vmatprep.subr.mxu0 0.0
    %2106 = vmatpush1.xpose.msra.mxu0 0.0
    %2107 = vmatprep.subr.mxu0 0.0
    %2108 = vmatpush1.xpose.msra.mxu0 0.0
    %2109 = vmatprep.subr.mxu0 0.0
    %2110 = vmatpush1.xpose.msra.mxu0 0.0
    %2111 = vmatprep.subr.mxu0 0.0
    %2112 = vmatpush1.xpose.msra.mxu0 0.0
    %2113 = vmatprep.subr.mxu0 0.0
    %2114 = vmatpush1.xpose.msra.mxu0 0.0
    %2115 = vmatprep.subr.mxu0 0.0
    %2116 = vmatpush1.xpose.msra.mxu0 0.0
    %2117 = vmatprep.subr.mxu0 0.0
    %2118 = vmatpush1.xpose.msra.mxu0 0.0
    %2119 = vmatprep.subr.mxu0 0.0
    %2120 = vmatpush1.xpose.msra.mxu0 0.0
    %2121 = vmatprep.subr.mxu0 0.0
    %2122 = vmatpush1.xpose.msra.mxu0 0.0
    %2123 = vmatprep.subr.mxu0 0.0
    %2124 = vmatpush1.xpose.msra.mxu0 0.0
    %2125 = vmatprep.subr.mxu0 0.0
    %2126 = vmatpush1.xpose.msra.mxu0 0.0
    %2127 = vmatprep.subr.mxu0 0.0
    %2128 = vmatpush1.xpose.msra.mxu0 0.0
    %2129 = vmatprep.subr.mxu0 0.0
    %2130 = vmatpush1.xpose.msra.mxu0 0.0
    %2131 = vmatprep.subr.mxu0 0.0
    %2132 = vmatpush1.xpose.msra.mxu0 0.0
    %2133 = vmatprep.subr.mxu0 0.0
    %2134 = vmatpush1.xpose.msra.mxu0 0.0
    %2135 = vmatprep.subr.mxu0 0.0
    %2136 = vmatpush1.xpose.msra.mxu0 0.0
    %2137 = vmatprep.subr.mxu0 0.0
    %2138 = vmatpush1.xpose.msra.mxu0 0.0
    %2139 = vmatprep.subr.mxu0 0.0
    %2140 = vmatpush1.xpose.msra.mxu0 0.0
    %2141 = vmatprep.subr.mxu0 0.0
    %2142 = vmatpush1.xpose.msra.mxu0 0.0
    %2143 = vmatprep.subr.mxu0 0.0
    %2144 = vmatpush1.xpose.msra.mxu0 0.0
    %2145 = vmatprep.subr.mxu0 0.0
    %2146 = vmatpush1.xpose.msra.mxu0 0.0
    %2147 = vmatprep.subr.mxu0 0.0
    %2148 = vmatpush1.xpose.msra.mxu0 0.0
    %2149 = vmatprep.subr.mxu0 0.0
    %2150 = vmatpush1.xpose.msra.mxu0 0.0
    %2151 = vmatprep.mubr.f32.mxu0 0.0
    %2152 = vmatmul.mubr.f32.gmra.mrb[0].mxu0 %v2082
    %v2153 = vpop.f32.mrb[0].mxu0
    %v2154 = vadd.f32 0.0, %v2153
    %v2155 = vpop.f32.mrb[0].mxu0
    %2156 = vdwg.mxu0
    %v2157 = vmul.f32 %v2154, 0.125
    %v2158 = vadd.f32 %v2157, %v815
    %v2159 = vsel %vm477, %v2158, -inf
    %2160 = vmax.xlane.f32.xlu0 %v2159
    %v2161 = vpop.xlane.xlu0 %2160
    %v2162 = vsub.f32 %v2158, %v2161
    %v2163 = vmul.f32 %v2162, 1.442695
    %v2164 = vpow.pop %v2163
    %v2165 = vsel %vm477, %v2164, 0.0
    %2166 = vadd.xlane.f32.xlu0 %v2165
    %v2167 = vpop.xlane.xlu0 %2166
    %v2168 = vrcp.pop %v2167
    %v2169 = vmul.f32 %v2164, %v2168
    %v2171 = vsel %vm477, %v2169, 0
    %2173 = vmatprep.subr.mxu0 0.0
    %2174 = vmatpush1.msra.mxu0 %v1743
    %2175 = vmatprep.subr.mxu0 0.0
    %2176 = vmatpush1.msra.mxu0 0.0
    %2177 = vmatprep.subr.mxu0 0.0
    %2178 = vmatpush1.msra.mxu0 0.0
    %2179 = vmatprep.subr.mxu0 0.0
    %2180 = vmatpush1.msra.mxu0 0.0
    %2181 = vmatprep.subr.mxu0 0.0
    %2182 = vmatpush1.msra.mxu0 0.0
    %2183 = vmatprep.subr.mxu0 0.0
    %2184 = vmatpush1.msra.mxu0 0.0
    %2185 = vmatprep.subr.mxu0 0.0
    %2186 = vmatpush1.msra.mxu0 0.0
    %2187 = vmatprep.subr.mxu0 0.0
    %2188 = vmatpush1.msra.mxu0 0.0
    %2189 = vmatprep.subr.mxu0 0.0
    %2190 = vmatpush1.msra.mxu0 0.0
    %2191 = vmatprep.subr.mxu0 0.0
    %2192 = vmatpush1.msra.mxu0 0.0
    %2193 = vmatprep.subr.mxu0 0.0
    %2194 = vmatpush1.msra.mxu0 0.0
    %2195 = vmatprep.subr.mxu0 0.0
    %2196 = vmatpush1.msra.mxu0 0.0
    %2197 = vmatprep.subr.mxu0 0.0
    %2198 = vmatpush1.msra.mxu0 0.0
    %2199 = vmatprep.subr.mxu0 0.0
    %2200 = vmatpush1.msra.mxu0 0.0
    %2201 = vmatprep.subr.mxu0 0.0
    %2202 = vmatpush1.msra.mxu0 0.0
    %2203 = vmatprep.subr.mxu0 0.0
    %2204 = vmatpush1.msra.mxu0 0.0
    %2205 = vmatprep.subr.mxu0 0.0
    %2206 = vmatpush1.msra.mxu0 0.0
    %2207 = vmatprep.subr.mxu0 0.0
    %2208 = vmatpush1.msra.mxu0 0.0
    %2209 = vmatprep.subr.mxu0 0.0
    %2210 = vmatpush1.msra.mxu0 0.0
    %2211 = vmatprep.subr.mxu0 0.0
    %2212 = vmatpush1.msra.mxu0 0.0
    %2213 = vmatprep.subr.mxu0 0.0
    %2214 = vmatpush1.msra.mxu0 0.0
    %2215 = vmatprep.subr.mxu0 0.0
    %2216 = vmatpush1.msra.mxu0 0.0
    %2217 = vmatprep.subr.mxu0 0.0
    %2218 = vmatpush1.msra.mxu0 0.0
    %2219 = vmatprep.subr.mxu0 0.0
    %2220 = vmatpush1.msra.mxu0 0.0
    %2221 = vmatprep.subr.mxu0 0.0
    %2222 = vmatpush1.msra.mxu0 0.0
    %2223 = vmatprep.subr.mxu0 0.0
    %2224 = vmatpush1.msra.mxu0 0.0
    %2225 = vmatprep.subr.mxu0 0.0
    %2226 = vmatpush1.msra.mxu0 0.0
    %2227 = vmatprep.subr.mxu0 0.0
    %2228 = vmatpush1.msra.mxu0 0.0
    %2229 = vmatprep.subr.mxu0 0.0
    %2230 = vmatpush1.msra.mxu0 0.0
    %2231 = vmatprep.subr.mxu0 0.0
    %2232 = vmatpush1.msra.mxu0 0.0
    %2233 = vmatprep.subr.mxu0 0.0
    %2234 = vmatpush1.msra.mxu0 0.0
    %2235 = vmatprep.subr.mxu0 0.0
    %2236 = vmatpush1.msra.mxu0 0.0
    %2237 = vmatprep.mubr.f32.mxu0 0.0
    %2238 = vmatmul.mubr.f32.gmra.mrb[0].mxu0 %v2171
    %v2239 = vpop.f32.mrb[0].mxu0
    %v2240 = vadd.f32 0.0, %v2239
    %v2241 = vpop.f32.mrb[0].mxu0
    %2242 = vdwg.mxu0
    %2243 = vrot.lane.b32.xlu0 %v1667, 64
    %v2244 = vpop.permute.xlu0 %2243
    %2245 = vrot.lane.b32.xlu0 %v1669, 64
    %v2246 = vpop.permute.xlu0 %2245
    %v2247 = vsel %vm394, %v2244, 0
    %v2249 = vsel %vm394, %v2246, 0
    %2251 = vmatprep.subr.mxu0 0.0
    %2252 = vmatpush1.xpose.msra.mxu0 %v2249
    %2253 = vmatprep.subr.mxu0 0.0
    %2254 = vmatpush1.xpose.msra.mxu0 0.0
    %2255 = vmatprep.subr.mxu0 0.0
    %2256 = vmatpush1.xpose.msra.mxu0 0.0
    %2257 = vmatprep.subr.mxu0 0.0
    %2258 = vmatpush1.xpose.msra.mxu0 0.0
    %2259 = vmatprep.subr.mxu0 0.0
    %2260 = vmatpush1.xpose.msra.mxu0 0.0
    %2261 = vmatprep.subr.mxu0 0.0
    %2262 = vmatpush1.xpose.msra.mxu0 0.0
    %2263 = vmatprep.subr.mxu0 0.0
    %2264 = vmatpush1.xpose.msra.mxu0 0.0
    %2265 = vmatprep.subr.mxu0 0.0
    %2266 = vmatpush1.xpose.msra.mxu0 0.0
    %2267 = vmatprep.subr.mxu0 0.0
    %2268 = vmatpush1.xpose.msra.mxu0 0.0
    %2269 = vmatprep.subr.mxu0 0.0
    %2270 = vmatpush1.xpose.msra.mxu0 0.0
    %2271 = vmatprep.subr.mxu0 0.0
    %2272 = vmatpush1.xpose.msra.mxu0 0.0
    %2273 = vmatprep.subr.mxu0 0.0
    %2274 = vmatpush1.xpose.msra.mxu0 0.0
    %2275 = vmatprep.subr.mxu0 0.0
    %2276 = vmatpush1.xpose.msra.mxu0 0.0
    %2277 = vmatprep.subr.mxu0 0.0
    %2278 = vmatpush1.xpose.msra.mxu0 0.0
    %2279 = vmatprep.subr.mxu0 0.0
    %2280 = vmatpush1.xpose.msra.mxu0 0.0
    %2281 = vmatprep.subr.mxu0 0.0
    %2282 = vmatpush1.xpose.msra.mxu0 0.0
    %2283 = vmatprep.subr.mxu0 0.0
    %2284 = vmatpush1.xpose.msra.mxu0 0.0
    %2285 = vmatprep.subr.mxu0 0.0
    %2286 = vmatpush1.xpose.msra.mxu0 0.0
    %2287 = vmatprep.subr.mxu0 0.0
    %2288 = vmatpush1.xpose.msra.mxu0 0.0
    %2289 = vmatprep.subr.mxu0 0.0
    %2290 = vmatpush1.xpose.msra.mxu0 0.0
    %2291 = vmatprep.subr.mxu0 0.0
    %2292 = vmatpush1.xpose.msra.mxu0 0.0
    %2293 = vmatprep.subr.mxu0 0.0
    %2294 = vmatpush1.xpose.msra.mxu0 0.0
    %2295 = vmatprep.subr.mxu0 0.0
    %2296 = vmatpush1.xpose.msra.mxu0 0.0
    %2297 = vmatprep.subr.mxu0 0.0
    %2298 = vmatpush1.xpose.msra.mxu0 0.0
    %2299 = vmatprep.subr.mxu0 0.0
    %2300 = vmatpush1.xpose.msra.mxu0 0.0
    %2301 = vmatprep.subr.mxu0 0.0
    %2302 = vmatpush1.xpose.msra.mxu0 0.0
    %2303 = vmatprep.subr.mxu0 0.0
    %2304 = vmatpush1.xpose.msra.mxu0 0.0
    %2305 = vmatprep.subr.mxu0 0.0
    %2306 = vmatpush1.xpose.msra.mxu0 0.0
    %2307 = vmatprep.subr.mxu0 0.0
    %2308 = vmatpush1.xpose.msra.mxu0 0.0
    %2309 = vmatprep.subr.mxu0 0.0
    %2310 = vmatpush1.xpose.msra.mxu0 0.0
    %2311 = vmatprep.subr.mxu0 0.0
    %2312 = vmatpush1.xpose.msra.mxu0 0.0
    %2313 = vmatprep.subr.mxu0 0.0
    %2314 = vmatpush1.xpose.msra.mxu0 0.0
    %2315 = vmatprep.mubr.f32.mxu0 0.0
    %2316 = vmatmul.mubr.f32.gmra.mrb[0].mxu0 %v2247
    %v2317 = vpop.f32.mrb[0].mxu0
    %v2318 = vadd.f32 0.0, %v2317
    %v2319 = vpop.f32.mrb[0].mxu0
    %2320 = vdwg.mxu0
    %v2321 = vmul.f32 %v2318, 0.125
    %v2322 = vadd.f32 %v2321, %v815
    %v2323 = vsel %vm477, %v2322, -inf
    %2324 = vmax.xlane.f32.xlu0 %v2323
    %v2325 = vpop.xlane.xlu0 %2324
    %v2326 = vsub.f32 %v2322, %v2325
    %v2327 = vmul.f32 %v2326, 1.442695
    %v2328 = vpow.pop %v2327
    %v2329 = vsel %vm477, %v2328, 0.0
    %2330 = vadd.xlane.f32.xlu0 %v2329
    %v2331 = vpop.xlane.xlu0 %2330
    %v2332 = vrcp.pop %v2331
    %v2333 = vmul.f32 %v2328, %v2332
    %2335 = vrot.lane.b32.xlu0 %v1743, 64
    %v2336 = vpop.permute.xlu0 %2335
    %v2339 = vsel %vm477, %v2333, 0
    %2341 = vmatprep.subr.mxu0 0.0
    %2342 = vmatpush1.msra.mxu0 %v2336
    %2343 = vmatprep.subr.mxu0 0.0
    %2344 = vmatpush1.msra.mxu0 0.0
    %2345 = vmatprep.subr.mxu0 0.0
    %2346 = vmatpush1.msra.mxu0 0.0
    %2347 = vmatprep.subr.mxu0 0.0
    %2348 = vmatpush1.msra.mxu0 0.0
    %2349 = vmatprep.subr.mxu0 0.0
    %2350 = vmatpush1.msra.mxu0 0.0
    %2351 = vmatprep.subr.mxu0 0.0
    %2352 = vmatpush1.msra.mxu0 0.0
    %2353 = vmatprep.subr.mxu0 0.0
    %2354 = vmatpush1.msra.mxu0 0.0
    %2355 = vmatprep.subr.mxu0 0.0
    %2356 = vmatpush1.msra.mxu0 0.0
    %2357 = vmatprep.subr.mxu0 0.0
    %2358 = vmatpush1.msra.mxu0 0.0
    %2359 = vmatprep.subr.mxu0 0.0
    %2360 = vmatpush1.msra.mxu0 0.0
    %2361 = vmatprep.subr.mxu0 0.0
    %2362 = vmatpush1.msra.mxu0 0.0
    %2363 = vmatprep.subr.mxu0 0.0
    %2364 = vmatpush1.msra.mxu0 0.0
    %2365 = vmatprep.subr.mxu0 0.0
    %2366 = vmatpush1.msra.mxu0 0.0
    %2367 = vmatprep.subr.mxu0 0.0
    %2368 = vmatpush1.msra.mxu0 0.0
    %2369 = vmatprep.subr.mxu0 0.0
    %2370 = vmatpush1.msra.mxu0 0.0
    %2371 = vmatprep.subr.mxu0 0.0
    %2372 = vmatpush1.msra.mxu0 0.0
    %2373 = vmatprep.subr.mxu0 0.0
    %2374 = vmatpush1.msra.mxu0 0.0
    %2375 = vmatprep.subr.mxu0 0.0
    %2376 = vmatpush1.msra.mxu0 0.0
    %2377 = vmatprep.subr.mxu0 0.0
    %2378 = vmatpush1.msra.mxu0 0.0
    %2379 = vmatprep.subr.mxu0 0.0
    %2380 = vmatpush1.msra.mxu0 0.0
    %2381 = vmatprep.subr.mxu0 0.0
    %2382 = vmatpush1.msra.mxu0 0.0
    %2383 = vmatprep.subr.mxu0 0.0
    %2384 = vmatpush1.msra.mxu0 0.0
    %2385 = vmatprep.subr.mxu0 0.0
    %2386 = vmatpush1.msra.mxu0 0.0
    %2387 = vmatprep.subr.mxu0 0.0
    %2388 = vmatpush1.msra.mxu0 0.0
    %2389 = vmatprep.subr.mxu0 0.0
    %2390 = vmatpush1.msra.mxu0 0.0
    %2391 = vmatprep.subr.mxu0 0.0
    %2392 = vmatpush1.msra.mxu0 0.0
    %2393 = vmatprep.subr.mxu0 0.0
    %2394 = vmatpush1.msra.mxu0 0.0
    %2395 = vmatprep.subr.mxu0 0.0
    %2396 = vmatpush1.msra.mxu0 0.0
    %2397 = vmatprep.subr.mxu0 0.0
    %2398 = vmatpush1.msra.mxu0 0.0
    %2399 = vmatprep.subr.mxu0 0.0
    %2400 = vmatpush1.msra.mxu0 0.0
    %2401 = vmatprep.subr.mxu0 0.0
    %2402 = vmatpush1.msra.mxu0 0.0
    %2403 = vmatprep.subr.mxu0 0.0
    %2404 = vmatpush1.msra.mxu0 0.0
    %2405 = vmatprep.mubr.f32.mxu0 0.0
    %2406 = vmatmul.mubr.f32.gmra.mrb[0].mxu0 %v2339
    %v2407 = vpop.f32.mrb[0].mxu0
    %v2408 = vadd.f32 0.0, %v2407
    %v2409 = vpop.f32.mrb[0].mxu0
    %2410 = vdwg.mxu0
    %2412 = vrot.lane.b32.xlu0 %v2408, 64
    %v2413 = vpop.permute.xlu0 %2412
    %v2415 = vsel %vm394, %v2240, %v2413
    %s2416 = scalar_lea.vmem [#allocation4], 128
    %v2417 = vld [vmem:[%s2416] sm:$0xff]
    %v2418 = vld [vmem:[%s2416 + $0x8] sm:$0xff]
    %v2419 = vld [vmem:[%s2416 + $0x10] sm:$0xff]
    %v2420 = vld [vmem:[%s2416 + $0x18] sm:$0xff]
    %v2421 = vld [vmem:[%s2416 + $0x20] sm:$0xff]
    %v2422 = vld [vmem:[%s2416 + $0x28] sm:$0xff]
    %v2423 = vld [vmem:[%s2416 + $0x30] sm:$0xff]
    %v2424 = vld [vmem:[%s2416 + $0x38] sm:$0xff]
    %v2425 = vld [vmem:[%s2416 + $0x40] sm:$0xff]
    %v2426 = vld [vmem:[%s2416 + $0x48] sm:$0xff]
    %v2427 = vld [vmem:[%s2416 + $0x50] sm:$0xff]
    %v2428 = vld [vmem:[%s2416 + $0x58] sm:$0xff]
    %v2429 = vld [vmem:[%s2416 + $0x60] sm:$0xff]
    %v2430 = vld [vmem:[%s2416 + $0x68] sm:$0xff]
    %v2431 = vld [vmem:[%s2416 + $0x70] sm:$0xff]
    %v2432 = vld [vmem:[%s2416 + $0x78] sm:$0xff]
    %s2433 = scalar_lea.vmem %s7, 1
    %v2434 = vld [vmem:[%s2433] sm:$0x1]
    %v2436 = vlaneseq
    %v2437 = vshrl.u32 %v2436, 7
    %v2438 = vsub.s32 0, %v2437
    %v2439 = vrot.slane %v2434, %v2438
    %2441 = vmatprep.subr.mxu0 0.0
    %2442 = vmatpush1.msra.mxu0 %v2417
    %2443 = vmatprep.subr.mxu0 0.0
    %2444 = vmatpush1.msra.mxu0 %v2418
    %2445 = vmatprep.subr.mxu0 0.0
    %2446 = vmatpush1.msra.mxu0 %v2419
    %2447 = vmatprep.subr.mxu0 0.0
    %2448 = vmatpush1.msra.mxu0 %v2420
    %2449 = vmatprep.subr.mxu0 0.0
    %2450 = vmatpush1.msra.mxu0 %v2421
    %2451 = vmatprep.subr.mxu0 0.0
    %2452 = vmatpush1.msra.mxu0 %v2422
    %2453 = vmatprep.subr.mxu0 0.0
    %2454 = vmatpush1.msra.mxu0 %v2423
    %2455 = vmatprep.subr.mxu0 0.0
    %2456 = vmatpush1.msra.mxu0 %v2424
    %2457 = vmatprep.subr.mxu0 0.0
    %2458 = vmatpush1.msra.mxu0 %v2425
    %2459 = vmatprep.subr.mxu0 0.0
    %2460 = vmatpush1.msra.mxu0 %v2426
    %2461 = vmatprep.subr.mxu0 0.0
    %2462 = vmatpush1.msra.mxu0 %v2427
    %2463 = vmatprep.subr.mxu0 0.0
    %2464 = vmatpush1.msra.mxu0 %v2428
    %2465 = vmatprep.subr.mxu0 0.0
    %2466 = vmatpush1.msra.mxu0 %v2429
    %2467 = vmatprep.subr.mxu0 0.0
    %2468 = vmatpush1.msra.mxu0 %v2430
    %2469 = vmatprep.subr.mxu0 0.0
    %2470 = vmatpush1.msra.mxu0 %v2431
    %2471 = vmatprep.subr.mxu0 0.0
    %2472 = vmatpush1.msra.mxu0 %v2432
    %2473 = vmatprep.subr.mxu0 0.0
    %2474 = vmatpush1.msra.mxu0 0.0
    %2475 = vmatprep.subr.mxu0 0.0
    %2476 = vmatpush1.msra.mxu0 0.0
    %2477 = vmatprep.subr.mxu0 0.0
    %2478 = vmatpush1.msra.mxu0 0.0
    %2479 = vmatprep.subr.mxu0 0.0
    %2480 = vmatpush1.msra.mxu0 0.0
    %2481 = vmatprep.subr.mxu0 0.0
    %2482 = vmatpush1.msra.mxu0 0.0
    %2483 = vmatprep.subr.mxu0 0.0
    %2484 = vmatpush1.msra.mxu0 0.0
    %2485 = vmatprep.subr.mxu0 0.0
    %2486 = vmatpush1.msra.mxu0 0.0
    %2487 = vmatprep.subr.mxu0 0.0
    %2488 = vmatpush1.msra.mxu0 0.0
    %2489 = vmatprep.subr.mxu0 0.0
    %2490 = vmatpush1.msra.mxu0 0.0
    %2491 = vmatprep.subr.mxu0 0.0
    %2492 = vmatpush1.msra.mxu0 0.0
    %2493 = vmatprep.subr.mxu0 0.0
    %2494 = vmatpush1.msra.mxu0 0.0
    %2495 = vmatprep.subr.mxu0 0.0
    %2496 = vmatpush1.msra.mxu0 0.0
    %2497 = vmatprep.subr.mxu0 0.0
    %2498 = vmatpush1.msra.mxu0 0.0
    %2499 = vmatprep.subr.mxu0 0.0
    %2500 = vmatpush1.msra.mxu0 0.0
    %2501 = vmatprep.subr.mxu0 0.0
    %2502 = vmatpush1.msra.mxu0 0.0
    %2503 = vmatprep.subr.mxu0 0.0
    %2504 = vmatpush1.msra.mxu0 0.0
    %2505 = vmatprep.mubr.f32.mxu0 0.0
    %2506 = vmatmul.mubr.f32.gmra.mrb[0].mxu0 %v2080
    %v2507 = vpop.f32.mrb[0].mxu0
    %v2508 = vadd.f32 %v2439, %v2507
    %v2509 = vpop.f32.mrb[0].mxu0
    %2510 = vmatprep.mubr.f32.mxu0 0.0
    %2511 = vmatmul.mubr.f32.gmra.mrb[0].mxu0 %v2415
    %v2512 = vpop.f32.mrb[0].mxu0
    %v2513 = vadd.f32 %v2439, %v2512
    %v2514 = vpop.f32.mrb[0].mxu0
    %2515 = vdwg.mxu0
    %v2516 = vadd.f32 %v1525, %v2508
    %v2517 = vadd.f32 %v1526, %v2513
    %s2518 = scalar_lea.vmem %s8, 1
    %v2519 = vld [vmem:[%s2518] sm:$0x1]
    %s2520 = scalar_lea.vmem %s9, 1
    %v2521 = vld [vmem:[%s2520] sm:$0x1]
    %2522 = vadd.xlane.f32.xlu0 %v2516
    %v2523 = vpop.xlane.xlu0 %2522
    %2524 = vadd.xlane.f32.xlu0 %v2517
    %v2525 = vpop.xlane.xlu0 %2524
    %v2526 = vmul.f32 %v2523, %v141
    %v2527 = vmul.f32 %v2525, %v141
    %v2528 = vsub.f32 %v2516, %v2526
    %v2529 = vsub.f32 %v2517, %v2527
    %v2530 = vmul.f32 %v2528, %v2528
    %v2531 = vmul.f32 %v2529, %v2529
    %2532 = vadd.xlane.f32.xlu0 %v2530
    %v2533 = vpop.xlane.xlu0 %2532
    %2534 = vadd.xlane.f32.xlu0 %v2531
    %v2535 = vpop.xlane.xlu0 %2534
    %v2536 = vmul.f32 %v2533, %v141
    %v2537 = vmul.f32 %v2535, %v141
    %v2538 = vadd.f32 %v2536, 1e-12
    %v2539 = vadd.f32 %v2537, 1e-12
    %v2540 = vrsqrt.pop %v2538
    %v2541 = vrsqrt.pop %v2539
    %v2542 = vmul.f32 %v2528, %v2540
    %v2543 = vmul.f32 %v2529, %v2541
    %v2545 = vlaneseq
    %v2546 = vshrl.u32 %v2545, 7
    %v2547 = vsub.s32 0, %v2546
    %v2548 = vrot.slane %v2519, %v2547
    %v2550 = vmul.f32 %v2542, %v2548
    %v2551 = vmul.f32 %v2543, %v2548
    %v2553 = vlaneseq
    %v2554 = vshrl.u32 %v2553, 7
    %v2555 = vsub.s32 0, %v2554
    %v2556 = vrot.slane %v2521, %v2555
    %v2558 = vadd.f32 %v2550, %v2556
    %v2559 = vadd.f32 %v2551, %v2556
    %s2560 = scalar_lea.vmem [#allocation6], 256
    %v2561 = vld [vmem:[%s2560] sm:$0xff]
    %v2562 = vld [vmem:[%s2560 + $0x8] sm:$0xff]
    %v2563 = vld [vmem:[%s2560 + $0x10] sm:$0xff]
    %v2564 = vld [vmem:[%s2560 + $0x18] sm:$0xff]
    %v2565 = vld [vmem:[%s2560 + $0x20] sm:$0xff]
    %v2566 = vld [vmem:[%s2560 + $0x28] sm:$0xff]
    %v2567 = vld [vmem:[%s2560 + $0x30] sm:$0xff]
    %v2568 = vld [vmem:[%s2560 + $0x38] sm:$0xff]
    %v2569 = vld [vmem:[%s2560 + $0x40] sm:$0xff]
    %v2570 = vld [vmem:[%s2560 + $0x48] sm:$0xff]
    %v2571 = vld [vmem:[%s2560 + $0x50] sm:$0xff]
    %v2572 = vld [vmem:[%s2560 + $0x58] sm:$0xff]
    %v2573 = vld [vmem:[%s2560 + $0x60] sm:$0xff]
    %v2574 = vld [vmem:[%s2560 + $0x68] sm:$0xff]
    %v2575 = vld [vmem:[%s2560 + $0x70] sm:$0xff]
    %v2576 = vld [vmem:[%s2560 + $0x78] sm:$0xff]
    %v2577 = vld [vmem:[%s2560 + $0x80] sm:$0xff]
    %v2578 = vld [vmem:[%s2560 + $0x88] sm:$0xff]
    %v2579 = vld [vmem:[%s2560 + $0x90] sm:$0xff]
    %v2580 = vld [vmem:[%s2560 + $0x98] sm:$0xff]
    %v2581 = vld [vmem:[%s2560 + $0xa0] sm:$0xff]
    %v2582 = vld [vmem:[%s2560 + $0xa8] sm:$0xff]
    %v2583 = vld [vmem:[%s2560 + $0xb0] sm:$0xff]
    %v2584 = vld [vmem:[%s2560 + $0xb8] sm:$0xff]
    %v2585 = vld [vmem:[%s2560 + $0xc0] sm:$0xff]
    %v2586 = vld [vmem:[%s2560 + $0xc8] sm:$0xff]
    %v2587 = vld [vmem:[%s2560 + $0xd0] sm:$0xff]
    %v2588 = vld [vmem:[%s2560 + $0xd8] sm:$0xff]
    %v2589 = vld [vmem:[%s2560 + $0xe0] sm:$0xff]
    %v2590 = vld [vmem:[%s2560 + $0xe8] sm:$0xff]
    %v2591 = vld [vmem:[%s2560 + $0xf0] sm:$0xff]
    %v2592 = vld [vmem:[%s2560 + $0xf8] sm:$0xff]
    %s2593 = scalar_lea.vmem %s11, 2
    %v2594 = vld [vmem:[%s2593] sm:$0x3]
    %v2596 = vlaneseq
    %v2597 = vshrl.u32 %v2596, 7
    %v2598 = vsub.s32 0, %v2597
    %v2599 = vrot.slane %v2594, %v2598
    %v2600 = vlaneseq
    %v2601 = vshrl.u32 %v2600, 7
    %v2602 = vsub.s32 1, %v2601
    %v2603 = vrot.slane %v2594, %v2602
    %2606 = vmatprep.subr.mxu0 %v2562
    %2607 = vmatpush1.msra.mxu0 %v2561
    %2608 = vmatprep.subr.mxu0 %v2564
    %2609 = vmatpush1.msra.mxu0 %v2563
    %2610 = vmatprep.subr.mxu0 %v2566
    %2611 = vmatpush1.msra.mxu0 %v2565
    %2612 = vmatprep.subr.mxu0 %v2568
    %2613 = vmatpush1.msra.mxu0 %v2567
    %2614 = vmatprep.subr.mxu0 %v2570
    %2615 = vmatpush1.msra.mxu0 %v2569
    %2616 = vmatprep.subr.mxu0 %v2572
    %2617 = vmatpush1.msra.mxu0 %v2571
    %2618 = vmatprep.subr.mxu0 %v2574
    %2619 = vmatpush1.msra.mxu0 %v2573
    %2620 = vmatprep.subr.mxu0 %v2576
    %2621 = vmatpush1.msra.mxu0 %v2575
    %2622 = vmatprep.subr.mxu0 %v2578
    %2623 = vmatpush1.msra.mxu0 %v2577
    %2624 = vmatprep.subr.mxu0 %v2580
    %2625 = vmatpush1.msra.mxu0 %v2579
    %2626 = vmatprep.subr.mxu0 %v2582
    %2627 = vmatpush1.msra.mxu0 %v2581
    %2628 = vmatprep.subr.mxu0 %v2584
    %2629 = vmatpush1.msra.mxu0 %v2583
    %2630 = vmatprep.subr.mxu0 %v2586
    %2631 = vmatpush1.msra.mxu0 %v2585
    %2632 = vmatprep.subr.mxu0 %v2588
    %2633 = vmatpush1.msra.mxu0 %v2587
    %2634 = vmatprep.subr.mxu0 %v2590
    %2635 = vmatpush1.msra.mxu0 %v2589
    %2636 = vmatprep.subr.mxu0 %v2592
    %2637 = vmatpush1.msra.mxu0 %v2591
    %2638 = vmatprep.subr.mxu0 0.0
    %2639 = vmatpush1.msra.mxu0 0.0
    %2640 = vmatprep.subr.mxu0 0.0
    %2641 = vmatpush1.msra.mxu0 0.0
    %2642 = vmatprep.subr.mxu0 0.0
    %2643 = vmatpush1.msra.mxu0 0.0
    %2644 = vmatprep.subr.mxu0 0.0
    %2645 = vmatpush1.msra.mxu0 0.0
    %2646 = vmatprep.subr.mxu0 0.0
    %2647 = vmatpush1.msra.mxu0 0.0
    %2648 = vmatprep.subr.mxu0 0.0
    %2649 = vmatpush1.msra.mxu0 0.0
    %2650 = vmatprep.subr.mxu0 0.0
    %2651 = vmatpush1.msra.mxu0 0.0
    %2652 = vmatprep.subr.mxu0 0.0
    %2653 = vmatpush1.msra.mxu0 0.0
    %2654 = vmatprep.subr.mxu0 0.0
    %2655 = vmatpush1.msra.mxu0 0.0
    %2656 = vmatprep.subr.mxu0 0.0
    %2657 = vmatpush1.msra.mxu0 0.0
    %2658 = vmatprep.subr.mxu0 0.0
    %2659 = vmatpush1.msra.mxu0 0.0
    %2660 = vmatprep.subr.mxu0 0.0
    %2661 = vmatpush1.msra.mxu0 0.0
    %2662 = vmatprep.subr.mxu0 0.0
    %2663 = vmatpush1.msra.mxu0 0.0
    %2664 = vmatprep.subr.mxu0 0.0
    %2665 = vmatpush1.msra.mxu0 0.0
    %2666 = vmatprep.subr.mxu0 0.0
    %2667 = vmatpush1.msra.mxu0 0.0
    %2668 = vmatprep.subr.mxu0 0.0
    %2669 = vmatpush1.msra.mxu0 0.0
    %2670 = vmatprep.mubr.f32.mxu0 0.0
    %2671 = vmatmul.mubr.f32.gmra.mrb[0].mxu0 %v2558
    %v2672 = vpop.f32.mrb[0].mxu0
    %v2673 = vadd.f32 %v2599, %v2672
    %v2674 = vpop.f32.mrb[0].mxu0
    %v2675 = vadd.f32 %v2603, %v2674
    %2676 = vmatprep.mubr.f32.mxu0 0.0
    %2677 = vmatmul.mubr.f32.gmra.mrb[0].mxu0 %v2559
    %v2678 = vpop.f32.mrb[0].mxu0
    %v2679 = vadd.f32 %v2599, %v2678
    %v2680 = vpop.f32.mrb[0].mxu0
    %v2681 = vadd.f32 %v2603, %v2680
    %2682 = vdwg.mxu0
    %v2683 = vmul.f32 %v2673, %v2673
    %v2684 = vmul.f32 %v2675, %v2675
    %v2685 = vmul.f32 %v2679, %v2679
    %v2686 = vmul.f32 %v2681, %v2681
    %v2687 = vmul.f32 %v2673, %v2683
    %v2688 = vmul.f32 %v2675, %v2684
    %v2689 = vmul.f32 %v2679, %v2685
    %v2690 = vmul.f32 %v2681, %v2686
    %v2691 = vmul.f32 %v2687, 0.044715
    %v2692 = vmul.f32 %v2688, 0.044715
    %v2693 = vmul.f32 %v2689, 0.044715
    %v2694 = vmul.f32 %v2690, 0.044715
    %v2695 = vadd.f32 %v2673, %v2691
    %v2696 = vadd.f32 %v2675, %v2692
    %v2697 = vadd.f32 %v2679, %v2693
    %v2698 = vadd.f32 %v2681, %v2694
    %v2699 = vmul.f32 %v2695, 0.7978846
    %v2700 = vmul.f32 %v2696, 0.7978846
    %v2701 = vmul.f32 %v2697, 0.7978846
    %v2702 = vmul.f32 %v2698, 0.7978846
    %v2703 = vtanh.pop %v2699
    %v2704 = vtanh.pop %v2700
    %v2705 = vtanh.pop %v2701
    %v2706 = vtanh.pop %v2702
    %v2707 = vadd.f32 %v2703, 1.0
    %v2708 = vadd.f32 %v2704, 1.0
    %v2709 = vadd.f32 %v2705, 1.0
    %v2710 = vadd.f32 %v2706, 1.0
    %v2711 = vmul.f32 %v2707, 0.5
    %v2712 = vmul.f32 %v2708, 0.5
    %v2713 = vmul.f32 %v2709, 0.5
    %v2714 = vmul.f32 %v2710, 0.5
    %v2715 = vmul.f32 %v2673, %v2711
    %v2716 = vmul.f32 %v2675, %v2712
    %v2717 = vmul.f32 %v2679, %v2713
    %v2718 = vmul.f32 %v2681, %v2714
    %s2719 = scalar_lea.vmem [#allocation7], 256
    %v2720 = vld [vmem:[%s2719] sm:$0xff]
    %v2721 = vld [vmem:[%s2719 + $0x8] sm:$0xff]
    %v2722 = vld [vmem:[%s2719 + $0x10] sm:$0xff]
    %v2723 = vld [vmem:[%s2719 + $0x18] sm:$0xff]
    %v2724 = vld [vmem:[%s2719 + $0x20] sm:$0xff]
    %v2725 = vld [vmem:[%s2719 + $0x28] sm:$0xff]
    %v2726 = vld [vmem:[%s2719 + $0x30] sm:$0xff]
    %v2727 = vld [vmem:[%s2719 + $0x38] sm:$0xff]
    %v2728 = vld [vmem:[%s2719 + $0x40] sm:$0xff]
    %v2729 = vld [vmem:[%s2719 + $0x48] sm:$0xff]
    %v2730 = vld [vmem:[%s2719 + $0x50] sm:$0xff]
    %v2731 = vld [vmem:[%s2719 + $0x58] sm:$0xff]
    %v2732 = vld [vmem:[%s2719 + $0x60] sm:$0xff]
    %v2733 = vld [vmem:[%s2719 + $0x68] sm:$0xff]
    %v2734 = vld [vmem:[%s2719 + $0x70] sm:$0xff]
    %v2735 = vld [vmem:[%s2719 + $0x78] sm:$0xff]
    %v2736 = vld [vmem:[%s2719 + $0x80] sm:$0xff]
    %v2737 = vld [vmem:[%s2719 + $0x88] sm:$0xff]
    %v2738 = vld [vmem:[%s2719 + $0x90] sm:$0xff]
    %v2739 = vld [vmem:[%s2719 + $0x98] sm:$0xff]
    %v2740 = vld [vmem:[%s2719 + $0xa0] sm:$0xff]
    %v2741 = vld [vmem:[%s2719 + $0xa8] sm:$0xff]
    %v2742 = vld [vmem:[%s2719 + $0xb0] sm:$0xff]
    %v2743 = vld [vmem:[%s2719 + $0xb8] sm:$0xff]
    %v2744 = vld [vmem:[%s2719 + $0xc0] sm:$0xff]
    %v2745 = vld [vmem:[%s2719 + $0xc8] sm:$0xff]
    %v2746 = vld [vmem:[%s2719 + $0xd0] sm:$0xff]
    %v2747 = vld [vmem:[%s2719 + $0xd8] sm:$0xff]
    %v2748 = vld [vmem:[%s2719 + $0xe0] sm:$0xff]
    %v2749 = vld [vmem:[%s2719 + $0xe8] sm:$0xff]
    %v2750 = vld [vmem:[%s2719 + $0xf0] sm:$0xff]
    %v2751 = vld [vmem:[%s2719 + $0xf8] sm:$0xff]
    %s2752 = scalar_lea.vmem %s13, 1
    %v2753 = vld [vmem:[%s2752] sm:$0x1]
    %v2755 = vlaneseq
    %v2756 = vshrl.u32 %v2755, 7
    %v2757 = vsub.s32 0, %v2756
    %v2758 = vrot.slane %v2753, %v2757
    %2760 = vmatprep.subr.mxu0 0.0
    %2761 = vmatpush1.msra.mxu0 %v2720
    %2762 = vmatprep.subr.mxu0 0.0
    %2763 = vmatpush1.msra.mxu0 %v2721
    %2764 = vmatprep.subr.mxu0 0.0
    %2765 = vmatpush1.msra.mxu0 %v2722
    %2766 = vmatprep.subr.mxu0 0.0
    %2767 = vmatpush1.msra.mxu0 %v2723
    %2768 = vmatprep.subr.mxu0 0.0
    %2769 = vmatpush1.msra.mxu0 %v2724
    %2770 = vmatprep.subr.mxu0 0.0
    %2771 = vmatpush1.msra.mxu0 %v2725
    %2772 = vmatprep.subr.mxu0 0.0
    %2773 = vmatpush1.msra.mxu0 %v2726
    %2774 = vmatprep.subr.mxu0 0.0
    %2775 = vmatpush1.msra.mxu0 %v2727
    %2776 = vmatprep.subr.mxu0 0.0
    %2777 = vmatpush1.msra.mxu0 %v2728
    %2778 = vmatprep.subr.mxu0 0.0
    %2779 = vmatpush1.msra.mxu0 %v2729
    %2780 = vmatprep.subr.mxu0 0.0
    %2781 = vmatpush1.msra.mxu0 %v2730
    %2782 = vmatprep.subr.mxu0 0.0
    %2783 = vmatpush1.msra.mxu0 %v2731
    %2784 = vmatprep.subr.mxu0 0.0
    %2785 = vmatpush1.msra.mxu0 %v2732
    %2786 = vmatprep.subr.mxu0 0.0
    %2787 = vmatpush1.msra.mxu0 %v2733
    %2788 = vmatprep.subr.mxu0 0.0
    %2789 = vmatpush1.msra.mxu0 %v2734
    %2790 = vmatprep.subr.mxu0 0.0
    %2791 = vmatpush1.msra.mxu0 %v2735
    %2792 = vmatprep.subr.mxu0 0.0
    %2793 = vmatpush1.msra.mxu0 %v2736
    %2794 = vmatprep.subr.mxu0 0.0
    %2795 = vmatpush1.msra.mxu0 %v2737
    %2796 = vmatprep.subr.mxu0 0.0
    %2797 = vmatpush1.msra.mxu0 %v2738
    %2798 = vmatprep.subr.mxu0 0.0
    %2799 = vmatpush1.msra.mxu0 %v2739
    %2800 = vmatprep.subr.mxu0 0.0
    %2801 = vmatpush1.msra.mxu0 %v2740
    %2802 = vmatprep.subr.mxu0 0.0
    %2803 = vmatpush1.msra.mxu0 %v2741
    %2804 = vmatprep.subr.mxu0 0.0
    %2805 = vmatpush1.msra.mxu0 %v2742
    %2806 = vmatprep.subr.mxu0 0.0
    %2807 = vmatpush1.msra.mxu0 %v2743
    %2808 = vmatprep.subr.mxu0 0.0
    %2809 = vmatpush1.msra.mxu0 %v2744
    %2810 = vmatprep.subr.mxu0 0.0
    %2811 = vmatpush1.msra.mxu0 %v2745
    %2812 = vmatprep.subr.mxu0 0.0
    %2813 = vmatpush1.msra.mxu0 %v2746
    %2814 = vmatprep.subr.mxu0 0.0
    %2815 = vmatpush1.msra.mxu0 %v2747
    %2816 = vmatprep.subr.mxu0 0.0
    %2817 = vmatpush1.msra.mxu0 %v2748
    %2818 = vmatprep.subr.mxu0 0.0
    %2819 = vmatpush1.msra.mxu0 %v2749
    %2820 = vmatprep.subr.mxu0 0.0
    %2821 = vmatpush1.msra.mxu0 %v2750
    %2822 = vmatprep.subr.mxu0 0.0
    %2823 = vmatpush1.msra.mxu0 %v2751
    %2824 = vmatprep.mubr.f32.mxu0 %v2716
    %2825 = vmatmul.mubr.f32.gmra.mrb[0].mxu0 %v2715
    %v2826 = vpop.f32.mrb[0].mxu0
    %v2827 = vadd.f32 %v2758, %v2826
    %v2828 = vpop.f32.mrb[0].mxu0
    %2829 = vmatprep.mubr.f32.mxu0 %v2718
    %2830 = vmatmul.mubr.f32.gmra.mrb[0].mxu0 %v2717
    %v2831 = vpop.f32.mrb[0].mxu0
    %v2832 = vadd.f32 %v2758, %v2831
    %v2833 = vpop.f32.mrb[0].mxu0
    %2834 = vdwg.mxu0
    %v2835 = vadd.f32 %v2558, %v2827
    %v2836 = vadd.f32 %v2559, %v2832
    %s2837 = scalar_lea.vmem %s14, 1
    %v2838 = vld [vmem:[%s2837] sm:$0x1]
    %s2839 = scalar_lea.vmem %s15, 1
    %v2840 = vld [vmem:[%s2839] sm:$0x1]
    %2841 = vadd.xlane.f32.xlu0 %v2835
    %v2842 = vpop.xlane.xlu0 %2841
    %2843 = vadd.xlane.f32.xlu0 %v2836
    %v2844 = vpop.xlane.xlu0 %2843
    %v2845 = vmul.f32 %v2842, %v141
    %v2846 = vmul.f32 %v2844, %v141
    %v2847 = vsub.f32 %v2835, %v2845
    %v2848 = vsub.f32 %v2836, %v2846
    %v2849 = vmul.f32 %v2847, %v2847
    %v2850 = vmul.f32 %v2848, %v2848
    %2851 = vadd.xlane.f32.xlu0 %v2849
    %v2852 = vpop.xlane.xlu0 %2851
    %2853 = vadd.xlane.f32.xlu0 %v2850
    %v2854 = vpop.xlane.xlu0 %2853
    %v2855 = vmul.f32 %v2852, %v141
    %v2856 = vmul.f32 %v2854, %v141
    %v2857 = vadd.f32 %v2855, 1e-12
    %v2858 = vadd.f32 %v2856, 1e-12
    %v2859 = vrsqrt.pop %v2857
    %v2860 = vrsqrt.pop %v2858
    %v2861 = vmul.f32 %v2847, %v2859
    %v2862 = vmul.f32 %v2848, %v2860
    %v2864 = vlaneseq
    %v2865 = vshrl.u32 %v2864, 7
    %v2866 = vsub.s32 0, %v2865
    %v2867 = vrot.slane %v2838, %v2866
    %v2869 = vmul.f32 %v2861, %v2867
    %v2870 = vmul.f32 %v2862, %v2867
    %v2872 = vlaneseq
    %v2873 = vshrl.u32 %v2872, 7
    %v2874 = vsub.s32 0, %v2873
    %v2875 = vrot.slane %v2840, %v2874
    %v2877 = vadd.f32 %v2869, %v2875
    %v2878 = vadd.f32 %v2870, %v2875
    %v2880 = vrot.slane %v2878, 7
    %vm2882 = vcmask 1040384
    %v2883 = vsel %vm2882, %v2877, %v2880
    %vm2884 = vcmask 1041408
    %v2885 = vsel %vm2884, %v2883, 0.0
    %v2886 = vld [vmem:[%s16] sm:$0xff]
    %v2887 = vld [vmem:[%s16 + $0x8] sm:$0xff]
    %v2888 = vld [vmem:[%s16 + $0x10] sm:$0xff]
    %v2889 = vld [vmem:[%s16 + $0x18] sm:$0xff]
    %v2890 = vld [vmem:[%s16 + $0x20] sm:$0xff]
    %v2891 = vld [vmem:[%s16 + $0x28] sm:$0xff]
    %v2892 = vld [vmem:[%s16 + $0x30] sm:$0xff]
    %v2893 = vld [vmem:[%s16 + $0x38] sm:$0xff]
    %v2894 = vld [vmem:[%s16 + $0x40] sm:$0xff]
    %v2895 = vld [vmem:[%s16 + $0x48] sm:$0xff]
    %v2896 = vld [vmem:[%s16 + $0x50] sm:$0xff]
    %v2897 = vld [vmem:[%s16 + $0x58] sm:$0xff]
    %v2898 = vld [vmem:[%s16 + $0x60] sm:$0xff]
    %v2899 = vld [vmem:[%s16 + $0x68] sm:$0xff]
    %v2900 = vld [vmem:[%s16 + $0x70] sm:$0xff]
    %v2901 = vld [vmem:[%s16 + $0x78] sm:$0xff]
    %v2902 = vld [vmem:[%s17] sm:$0x1]
    %v2904 = vlaneseq
    %v2905 = vshrl.u32 %v2904, 7
    %v2906 = vsub.s32 0, %v2905
    %v2907 = vrot.slane %v2902, %v2906
    %2909 = vmatprep.subr.mxu0 0.0
    %2910 = vmatpush1.msra.mxu0 %v2886
    %2911 = vmatprep.subr.mxu0 0.0
    %2912 = vmatpush1.msra.mxu0 %v2887
    %2913 = vmatprep.subr.mxu0 0.0
    %2914 = vmatpush1.msra.mxu0 %v2888
    %2915 = vmatprep.subr.mxu0 0.0
    %2916 = vmatpush1.msra.mxu0 %v2889
    %2917 = vmatprep.subr.mxu0 0.0
    %2918 = vmatpush1.msra.mxu0 %v2890
    %2919 = vmatprep.subr.mxu0 0.0
    %2920 = vmatpush1.msra.mxu0 %v2891
    %2921 = vmatprep.subr.mxu0 0.0
    %2922 = vmatpush1.msra.mxu0 %v2892
    %2923 = vmatprep.subr.mxu0 0.0
    %2924 = vmatpush1.msra.mxu0 %v2893
    %2925 = vmatprep.subr.mxu0 0.0
    %2926 = vmatpush1.msra.mxu0 %v2894
    %2927 = vmatprep.subr.mxu0 0.0
    %2928 = vmatpush1.msra.mxu0 %v2895
    %2929 = vmatprep.subr.mxu0 0.0
    %2930 = vmatpush1.msra.mxu0 %v2896
    %2931 = vmatprep.subr.mxu0 0.0
    %2932 = vmatpush1.msra.mxu0 %v2897
    %2933 = vmatprep.subr.mxu0 0.0
    %2934 = vmatpush1.msra.mxu0 %v2898
    %2935 = vmatprep.subr.mxu0 0.0
    %2936 = vmatpush1.msra.mxu0 %v2899
    %2937 = vmatprep.subr.mxu0 0.0
    %2938 = vmatpush1.msra.mxu0 %v2900
    %2939 = vmatprep.subr.mxu0 0.0
    %2940 = vmatpush1.msra.mxu0 %v2901
    %2941 = vmatprep.subr.mxu0 0.0
    %2942 = vmatpush1.msra.mxu0 0.0
    %2943 = vmatprep.subr.mxu0 0.0
    %2944 = vmatpush1.msra.mxu0 0.0
    %2945 = vmatprep.subr.mxu0 0.0
    %2946 = vmatpush1.msra.mxu0 0.0
    %2947 = vmatprep.subr.mxu0 0.0
    %2948 = vmatpush1.msra.mxu0 0.0
    %2949 = vmatprep.subr.mxu0 0.0
    %2950 = vmatpush1.msra.mxu0 0.0
    %2951 = vmatprep.subr.mxu0 0.0
    %2952 = vmatpush1.msra.mxu0 0.0
    %2953 = vmatprep.subr.mxu0 0.0
    %2954 = vmatpush1.msra.mxu0 0.0
    %2955 = vmatprep.subr.mxu0 0.0
    %2956 = vmatpush1.msra.mxu0 0.0
    %2957 = vmatprep.subr.mxu0 0.0
    %2958 = vmatpush1.msra.mxu0 0.0
    %2959 = vmatprep.subr.mxu0 0.0
    %2960 = vmatpush1.msra.mxu0 0.0
    %2961 = vmatprep.subr.mxu0 0.0
    %2962 = vmatpush1.msra.mxu0 0.0
    %2963 = vmatprep.subr.mxu0 0.0
    %2964 = vmatpush1.msra.mxu0 0.0
    %2965 = vmatprep.subr.mxu0 0.0
    %2966 = vmatpush1.msra.mxu0 0.0
    %2967 = vmatprep.subr.mxu0 0.0
    %2968 = vmatpush1.msra.mxu0 0.0
    %2969 = vmatprep.subr.mxu0 0.0
    %2970 = vmatpush1.msra.mxu0 0.0
    %2971 = vmatprep.subr.mxu0 0.0
    %2972 = vmatpush1.msra.mxu0 0.0
    %2973 = vmatprep.mubr.f32.mxu0 0.0
    %2974 = vmatmul.mubr.f32.gmra.mrb[0].mxu0 %v2885
    %v2975 = vpop.f32.mrb[0].mxu0
    %v2976 = vadd.f32 %v2907, %v2975
    %v2977 = vpop.f32.mrb[0].mxu0
    %2978 = vdwg.mxu0
    %v2979 = vtanh.pop %v2976
    %v2980 = vld [vmem:[#allocation9] sm:$0xff]
    %v2981 = vld [vmem:[#allocation9 + $0x8] sm:$0xff]
    %v2982 = vld [vmem:[#allocation9 + $0x10] sm:$0xff]
    %v2983 = vld [vmem:[#allocation9 + $0x18] sm:$0xff]
    %v2984 = vld [vmem:[#allocation9 + $0x20] sm:$0xff]
    %v2985 = vld [vmem:[#allocation9 + $0x28] sm:$0xff]
    %v2986 = vld [vmem:[#allocation9 + $0x30] sm:$0xff]
    %v2987 = vld [vmem:[#allocation9 + $0x38] sm:$0xff]
    %v2988 = vld [vmem:[#allocation9 + $0x40] sm:$0xff]
    %v2989 = vld [vmem:[#allocation9 + $0x48] sm:$0xff]
    %v2990 = vld [vmem:[#allocation9 + $0x50] sm:$0xff]
    %v2991 = vld [vmem:[#allocation9 + $0x58] sm:$0xff]
    %v2992 = vld [vmem:[#allocation9 + $0x60] sm:$0xff]
    %v2993 = vld [vmem:[#allocation9 + $0x68] sm:$0xff]
    %v2994 = vld [vmem:[#allocation9 + $0x70] sm:$0xff]
    %v2995 = vld [vmem:[#allocation9 + $0x78] sm:$0xff]
    %v2996 = vld [vmem:[%s19] sm:$0x1]
    %v2998 = vlaneseq
    %v2999 = vshrl.u32 %v2998, 7
    %v3000 = vsub.s32 0, %v2999
    %v3001 = vrot.slane %v2996, %v3000
    %3003 = vmatprep.subr.mxu0 0.0
    %3004 = vmatpush1.msra.mxu0 %v2980
    %3005 = vmatprep.subr.mxu0 0.0
    %3006 = vmatpush1.msra.mxu0 %v2981
    %3007 = vmatprep.subr.mxu0 0.0
    %3008 = vmatpush1.msra.mxu0 %v2982
    %3009 = vmatprep.subr.mxu0 0.0
    %3010 = vmatpush1.msra.mxu0 %v2983
    %3011 = vmatprep.subr.mxu0 0.0
    %3012 = vmatpush1.msra.mxu0 %v2984
    %3013 = vmatprep.subr.mxu0 0.0
    %3014 = vmatpush1.msra.mxu0 %v2985
    %3015 = vmatprep.subr.mxu0 0.0
    %3016 = vmatpush1.msra.mxu0 %v2986
    %3017 = vmatprep.subr.mxu0 0.0
    %3018 = vmatpush1.msra.mxu0 %v2987
    %3019 = vmatprep.subr.mxu0 0.0
    %3020 = vmatpush1.msra.mxu0 %v2988
    %3021 = vmatprep.subr.mxu0 0.0
    %3022 = vmatpush1.msra.mxu0 %v2989
    %3023 = vmatprep.subr.mxu0 0.0
    %3024 = vmatpush1.msra.mxu0 %v2990
    %3025 = vmatprep.subr.mxu0 0.0
    %3026 = vmatpush1.msra.mxu0 %v2991
    %3027 = vmatprep.subr.mxu0 0.0
    %3028 = vmatpush1.msra.mxu0 %v2992
    %3029 = vmatprep.subr.mxu0 0.0
    %3030 = vmatpush1.msra.mxu0 %v2993
    %3031 = vmatprep.subr.mxu0 0.0
    %3032 = vmatpush1.msra.mxu0 %v2994
    %3033 = vmatprep.subr.mxu0 0.0
    %3034 = vmatpush1.msra.mxu0 %v2995
    %3035 = vmatprep.subr.mxu0 0.0
    %3036 = vmatpush1.msra.mxu0 0.0
    %3037 = vmatprep.subr.mxu0 0.0
    %3038 = vmatpush1.msra.mxu0 0.0
    %3039 = vmatprep.subr.mxu0 0.0
    %3040 = vmatpush1.msra.mxu0 0.0
    %3041 = vmatprep.subr.mxu0 0.0
    %3042 = vmatpush1.msra.mxu0 0.0
    %3043 = vmatprep.subr.mxu0 0.0
    %3044 = vmatpush1.msra.mxu0 0.0
    %3045 = vmatprep.subr.mxu0 0.0
    %3046 = vmatpush1.msra.mxu0 0.0
    %3047 = vmatprep.subr.mxu0 0.0
    %3048 = vmatpush1.msra.mxu0 0.0
    %3049 = vmatprep.subr.mxu0 0.0
    %3050 = vmatpush1.msra.mxu0 0.0
    %3051 = vmatprep.subr.mxu0 0.0
    %3052 = vmatpush1.msra.mxu0 0.0
    %3053 = vmatprep.subr.mxu0 0.0
    %3054 = vmatpush1.msra.mxu0 0.0
    %3055 = vmatprep.subr.mxu0 0.0
    %3056 = vmatpush1.msra.mxu0 0.0
    %3057 = vmatprep.subr.mxu0 0.0
    %3058 = vmatpush1.msra.mxu0 0.0
    %3059 = vmatprep.subr.mxu0 0.0
    %3060 = vmatpush1.msra.mxu0 0.0
    %3061 = vmatprep.subr.mxu0 0.0
    %3062 = vmatpush1.msra.mxu0 0.0
    %3063 = vmatprep.subr.mxu0 0.0
    %3064 = vmatpush1.msra.mxu0 0.0
    %3065 = vmatprep.subr.mxu0 0.0
    %3066 = vmatpush1.msra.mxu0 0.0
    %3067 = vmatprep.mubr.f32.mxu0 0.0
    %3068 = vmatmul.mubr.f32.gmra.mrb[0].mxu0 %v2979
    %v3069 = vpop.f32.mrb[0].mxu0
    %v3070 = vadd.f32 %v3001, %v3069
    %v3071 = vpop.f32.mrb[0].mxu0
    %3072 = vdwg.mxu0
    %3073 = vst [vmem:[%s20] sm:$0xff] %v3070
    // Predicated region
    $region102: #{_lambda_.1} parent=1 // pred_check
      _
    $region103: #{_lambda_.1} parent=1 // pred_check_branch
      %3075 = sbr.rel (0) target = $region105
    $region104: #{_lambda_.1} parent=1 // pred_region
      _
    $region105: #{_lambda_.1} parent=1 // pred_fallthru
      _
    // Predicated region
    $region106: #{_lambda_.1} parent=1 // pred_check
      _
    $region107: #{_lambda_.1} parent=1 // pred_check_branch
      %3077 = sbr.rel (0) target = $region109
    $region108: #{_lambda_.1} parent=1 // pred_region
      _
    $region109: #{_lambda_.1} parent=1 // pred_fallthru
      _
    %3078 = vsyncpa [#allocation3], 1
    %3079 = vsyncpa [#allocation5], 1
    %3080 = vsyncpa [#allocation8], 1

</llo_original>
